<compile_context>
chip_gen: v5e
topology: v5e:2x2
jax: 0.10.0
libtpu: 0.0.40
codegen_flags: <defaults>
</compile_context>

<pallas_src>
import jax
import jax.numpy as jnp
from jax.experimental import pallas as pl
from jax.experimental.pallas import tpu as pltpu

L_IN, C_IN = 100, 40          # fc1 expects 32*25 -> input length must be 100
C1, C2 = 16, 32
L1, L2 = 50, 25               # lengths after each MaxPool1d(2, 2)
H_FC, N_CLS = 64, 2
K = 3

assert L_IN % 2 == 0 and L1 % 2 == 0   # pooling-by-reshape relies on even lengths


# --------------------------------- kernel ----------------------------------
def cnn_kernel(x_ref, w1_ref, b1_ref, w2_ref, b2_ref,
               fc1w_ref, fc1b_ref, fc2w_ref, fc2b_ref,
               o_ref, h1_ref, h2_ref, fcin_ref):
    TB = x_ref.shape[1]                                    # batch tile (multiple of 8)

    # ---- conv1: one (100*TB, 40) @ (40, 48) bf16 matmul (taps concatenated on N)
    x = x_ref[...].reshape(L_IN * TB, C_IN)                # leading-dim merge, free
    z1 = jnp.dot(x, w1_ref[...], preferred_element_type=jnp.float32)
    z1 = z1.reshape(L_IN, TB, 3 * C1)                      # (100, TB, 48)

    # y[l] = z1[l-1, :, 0:16] + z1[l, :, 16:32] + z1[l+1, :, 32:48]; rows are
    # l-major so the shift is a whole-TB-row slab shift; boundaries drop a term.
    h1_ref[0] = z1[0, :, C1:2 * C1] + z1[1, :, 2 * C1:]
    h1_ref[1:L_IN - 1] = (z1[:-2, :, :C1]
                          + z1[1:-1, :, C1:2 * C1]
                          + z1[2:, :, 2 * C1:])
    h1_ref[L_IN - 1] = z1[L_IN - 2, :, :C1] + z1[L_IN - 1, :, C1:2 * C1]

    # ---- maxpool1 fused with bias + ReLU (max / +bias / relu commute)
    h1 = h1_ref[...].reshape(L1, 2 * TB, C1)               # pool pair = adjacent TB slabs
    p1 = jnp.maximum(jnp.maximum(h1[:, :TB, :], h1[:, TB:, :]) + b1_ref[...], 0.0)
    p1 = p1.astype(jnp.bfloat16).reshape(L1 * TB, C1)      # (50*TB, 16) bf16

    # ---- conv2: one (50*TB, 16) @ (16, 96) matmul (taps concatenated on N)
    z2 = jnp.dot(p1, w2_ref[...], preferred_element_type=jnp.float32)
    z2 = z2.reshape(L1, TB, 3 * C2)                        # (50, TB, 96)

    h2_ref[0] = z2[0, :, C2:2 * C2] + z2[1, :, 2 * C2:]
    h2_ref[1:L1 - 1] = (z2[:-2, :, :C2]
                        + z2[1:-1, :, C2:2 * C2]
                        + z2[2:, :, 2 * C2:])
    h2_ref[L1 - 1] = z2[L1 - 2, :, :C2] + z2[L1 - 1, :, C2:2 * C2]

    # ---- maxpool2 + bias + ReLU, fused with the (l-major -> batch-major) transpose:
    #      write each pooled (TB, 32) slab to lane block l*32 of the fc1 input.
    b2 = b2_ref[...]
    for l in range(L2):                                    # static unroll (25)
        v = jnp.maximum(jnp.maximum(h2_ref[2 * l], h2_ref[2 * l + 1]) + b2, 0.0)
        fcin_ref[:, l * C2:(l + 1) * C2] = v.astype(jnp.bfloat16)

    # ---- fc1: single (TB, 800) @ (800, 64) matmul
    hfc = jnp.dot(fcin_ref[...], fc1w_ref[...], preferred_element_type=jnp.float32)
    hfc = jnp.maximum(hfc + fc1b_ref[...], 0.0)            # (TB, 64) f32

    # ---- fc2: (TB, 64) @ (64, 2); single batched store
    out = jnp.dot(hfc.astype(jnp.bfloat16), fc2w_ref[...],
                  preferred_element_type=jnp.float32) + fc2b_ref[...]
    o_ref[...] = out.astype(o_ref.dtype)


# -------------------------------- wrapper ----------------------------------
def _round_up(x, m):
    return (x + m - 1) // m * m


def cnn1d_forward(x_ncl, params, tb_max=64):
    """x_ncl: (B, 40, 100) float32 (PyTorch NCL). Returns (B, 2) float32 logits."""
    w1, b1, w2, b2, fc1w, fc1b, fc2w, fc2b = params
    B = x_ncl.shape[0]

    # Batch tile: multiple of 8, capped at 64 (safe for v7x 64 MiB VMEM); prefer
    # >= 2 grid steps so the input DMA overlaps compute and both v7x TCs are used.
    TB = min(tb_max, _round_up(max(B, 1), 8))
    if B > 8 and _round_up(B, TB) == TB:
        TB = max(8, _round_up((B + 1) // 2, 8))
    B_pad = _round_up(B, TB)
    n_tiles = B_pad // TB

    # Raw l-major slab (no im2col): (B, 40, 100) -> (100, B_pad, 40), bf16.
    x_lbc = jnp.transpose(x_ncl, (2, 0, 1))
    if B_pad != B:
        x_lbc = jnp.pad(x_lbc, ((0, 0), (0, B_pad - B), (0, 0)))
    x_lbc = x_lbc.astype(jnp.bfloat16)

    # conv weights with the 3 taps concatenated on the output (lane) axis.
    w1c = jnp.concatenate([w1[:, :, k].T for k in range(K)], axis=1).astype(jnp.bfloat16)  # (40, 48)
    w2c = jnp.concatenate([w2[:, :, k].T for k in range(K)], axis=1).astype(jnp.bfloat16)  # (16, 96)
    # fc1 weight: torch flat index c*25 + l  ->  our lane index l*32 + c.
    fc1wm = (jnp.transpose(fc1w.reshape(H_FC, C2, L2), (2, 1, 0))
             .reshape(L2 * C2, H_FC).astype(jnp.bfloat16))                                 # (800, 64)
    fc2wm = fc2w.T.astype(jnp.bfloat16)                                                    # (64, 2)

    def resident(shape):  # whole-array block, same block every grid step (stays in VMEM)
        n = len(shape)
        return pl.BlockSpec(shape, lambda i, _n=n: (0,) * _n)

    out = pl.pallas_call(
        cnn_kernel,
        out_shape=jax.ShapeDtypeStruct((B_pad, N_CLS), jnp.float32),
        grid=(n_tiles,),
        in_specs=[
            pl.BlockSpec((L_IN, TB, C_IN), lambda i: (0, i, 0)),   # raw x slab (bf16)
            resident((C_IN, K * C1)),                              # conv1 taps (40, 48)
            resident((1, C1)),                                     # conv1 bias (f32)
            resident((C1, K * C2)),                                # conv2 taps (16, 96)
            resident((1, C2)),                                     # conv2 bias
            resident((L2 * C2, H_FC)),                             # fc1 w (800, 64)
            resident((1, H_FC)),                                   # fc1 bias
            resident((H_FC, N_CLS)),                               # fc2 w (64, 2)
            resident((1, N_CLS)),                                  # fc2 bias
        ],
        out_specs=pl.BlockSpec((TB, N_CLS), lambda i: (i, 0)),
        scratch_shapes=[
            pltpu.VMEM((L_IN, TB, C1), jnp.float32),               # conv1 pre-activation
            pltpu.VMEM((L1, TB, C2), jnp.float32),                 # conv2 pre-activation
            pltpu.VMEM((TB, L2 * C2), jnp.bfloat16),               # fc1 input (TB, 800)
        ],
        compiler_params=pltpu.CompilerParams(
            dimension_semantics=("parallel",),                     # independent batch tiles
            vmem_limit_bytes=32 * 1024 * 1024),                    # fits every gen (incl. v7x)
    )(x_lbc, w1c, b1.reshape(1, C1).astype(jnp.float32),
      w2c, b2.reshape(1, C2).astype(jnp.float32),
      fc1wm, fc1b.reshape(1, H_FC).astype(jnp.float32),
      fc2wm, fc2b.reshape(1, N_CLS).astype(jnp.float32))

    return out[:B]


# ---------------------- pure-JAX reference (PyTorch semantics) --------------
def torch_ref(x_ncl, params):
    w1, b1, w2, b2, fc1w, fc1b, fc2w, fc2b = params

    def conv1d(x, w, b):
        y = jax.lax.conv_general_dilated(
            x, w, window_strides=(1,), padding=((1, 1),),
            dimension_numbers=("NCH", "OIH", "NCH"))
        return y + b[None, :, None]

    def pool(x):
        b, c, l = x.shape
        return jnp.max(x.reshape(b, c, l // 2, 2), axis=-1)

    h = jax.nn.relu(conv1d(x_ncl, w1, b1)); h = pool(h)
    h = jax.nn.relu(conv1d(h, w2, b2)); h = pool(h)
    h = h.reshape(x_ncl.shape[0], -1)
    h = jax.nn.relu(h @ fc1w.T + fc1b)
    return h @ fc2w.T + fc2b


if __name__ == "__main__":
    key = jax.random.PRNGKey(0)
    ks = jax.random.split(key, 9)
    params = (
        0.10 * jax.random.normal(ks[0], (C1, C_IN, 3), jnp.float32),   # conv1.weight
        0.10 * jax.random.normal(ks[1], (C1,), jnp.float32),           # conv1.bias
        0.10 * jax.random.normal(ks[2], (C2, C1, 3), jnp.float32),     # conv2.weight
        0.10 * jax.random.normal(ks[3], (C2,), jnp.float32),           # conv2.bias
        0.05 * jax.random.normal(ks[4], (H_FC, C2 * L2), jnp.float32), # fc1.weight
        0.05 * jax.random.normal(ks[5], (H_FC,), jnp.float32),         # fc1.bias
        0.10 * jax.random.normal(ks[6], (N_CLS, H_FC), jnp.float32),   # fc2.weight
        0.10 * jax.random.normal(ks[7], (N_CLS,), jnp.float32),        # fc2.bias
    )
    B = 4
    x = jax.random.normal(ks[8], (B, C_IN, L_IN), jnp.float32)         # (B, 40, 100)

    fwd = jax.jit(cnn1d_forward)
    out = jax.block_until_ready(fwd(x, params))
    ref = jax.block_until_ready(torch_ref(x, params))
    assert out.shape == (B, N_CLS)
    # bf16 inputs/weights (f32 accumulation) vs f32 reference -> loosened tolerance
    assert jnp.allclose(out, ref, atol=5e-2, rtol=5e-2), \
        float(jnp.max(jnp.abs(out - ref)))
    print("KERNEL_OK")
</pallas_src>

<mosaic_0001>
module attributes {stable_mosaic.version = 11 : i64} {
  func.func @cnn_kernel(%arg0: i32, %arg1: memref<100x8x40xbf16, #tpu.memory_space<vmem>>, %arg2: memref<40x48xbf16, #tpu.memory_space<vmem>>, %arg3: memref<1x16xf32, #tpu.memory_space<vmem>>, %arg4: memref<16x96xbf16, #tpu.memory_space<vmem>>, %arg5: memref<1x32xf32, #tpu.memory_space<vmem>>, %arg6: memref<800x64xbf16, #tpu.memory_space<vmem>>, %arg7: memref<1x64xf32, #tpu.memory_space<vmem>>, %arg8: memref<64x2xbf16, #tpu.memory_space<vmem>>, %arg9: memref<1x2xf32, #tpu.memory_space<vmem>>, %arg10: memref<8x2xf32, #tpu.memory_space<vmem>>, %arg11: memref<100x8x16xf32, #tpu.memory_space<vmem>>, %arg12: memref<50x8x32xf32, #tpu.memory_space<vmem>>, %arg13: memref<8x800xbf16, #tpu.memory_space<vmem>>) attributes {dimension_semantics = [#tpu.dimension_semantics<parallel>], iteration_bounds = array<i64: 1>, scalar_prefetch = 0 : i64, scratch_operands = 3 : i64, tpu.core_type = #tpu.core_type<tc>, window_params = [{transform_indices = @transform_0, window_bounds = array<i64: 100, 8, 40>}, {pipeline_mode = #tpu.pipeline_mode<synchronous>, transform_indices = @transform_1, window_bounds = array<i64: 40, 48>}, {pipeline_mode = #tpu.pipeline_mode<synchronous>, transform_indices = @transform_2, window_bounds = array<i64: 1, 16>}, {pipeline_mode = #tpu.pipeline_mode<synchronous>, transform_indices = @transform_3, window_bounds = array<i64: 16, 96>}, {pipeline_mode = #tpu.pipeline_mode<synchronous>, transform_indices = @transform_4, window_bounds = array<i64: 1, 32>}, {pipeline_mode = #tpu.pipeline_mode<synchronous>, transform_indices = @transform_5, window_bounds = array<i64: 800, 64>}, {pipeline_mode = #tpu.pipeline_mode<synchronous>, transform_indices = @transform_6, window_bounds = array<i64: 1, 64>}, {pipeline_mode = #tpu.pipeline_mode<synchronous>, transform_indices = @transform_7, window_bounds = array<i64: 64, 2>}, {pipeline_mode = #tpu.pipeline_mode<synchronous>, transform_indices = @transform_8, window_bounds = array<i64: 1, 2>}, {transform_indices = @transform_9, window_bounds = array<i64: 8, 2>}]} {
    %c0 = arith.constant 0 : index
    %c0_0 = arith.constant 0 : index
    %c0_1 = arith.constant 0 : index
    %0 = vector.load %arg1[%c0, %c0_0, %c0_1] : memref<100x8x40xbf16, #tpu.memory_space<vmem>>, vector<100x8x40xbf16>
    %1 = vector.shape_cast %0 : vector<100x8x40xbf16> to vector<800x40xbf16>
    %c0_2 = arith.constant 0 : index
    %c0_3 = arith.constant 0 : index
    %2 = vector.load %arg2[%c0_2, %c0_3] : memref<40x48xbf16, #tpu.memory_space<vmem>>, vector<40x48xbf16>
    %cst = arith.constant dense<0.000000e+00> : vector<800x48xf32>
    %3 = tpu.matmul %1, %2, %cst {dimension_numbers = #tpu.dot_dimension_numbers<[1], [0], [0], [1], [0, 0, 1, 1], [], []>} : vector<800x40xbf16>, vector<40x48xbf16>, vector<800x48xf32> -> vector<800x48xf32>
    %4 = vector.shape_cast %3 : vector<800x48xf32> to vector<100x8x48xf32>
    %5 = vector.extract_strided_slice %4 {offsets = [0, 0, 16], sizes = [1, 8, 16], strides = [1, 1, 1]} : vector<100x8x48xf32> to vector<1x8x16xf32>
    %6 = vector.shape_cast %5 : vector<1x8x16xf32> to vector<8x16xf32>
    %7 = vector.extract_strided_slice %4 {offsets = [1, 0, 32], sizes = [1, 8, 16], strides = [1, 1, 1]} : vector<100x8x48xf32> to vector<1x8x16xf32>
    %8 = vector.shape_cast %7 : vector<1x8x16xf32> to vector<8x16xf32>
    %9 = arith.addf %6, %8 : vector<8x16xf32>
    %c0_4 = arith.constant 0 : index
    %c0_5 = arith.constant 0 : index
    %c0_6 = arith.constant 0 : index
    %10 = vector.load %arg11[%c0_4, %c0_5, %c0_6] : memref<100x8x16xf32, #tpu.memory_space<vmem>>, vector<1x8x16xf32>
    %11 = vector.shape_cast %10 : vector<1x8x16xf32> to vector<8x16xf32>
    %12 = vector.shape_cast %9 : vector<8x16xf32> to vector<1x8x16xf32>
    tpu.vector_store %arg11[%c0_4, %c0_5, %c0_6], %12 {strides = array<i32>} : memref<100x8x16xf32, #tpu.memory_space<vmem>>, vector<1x8x16xf32>,
    %13 = vector.extract_strided_slice %4 {offsets = [0, 0, 0], sizes = [98, 8, 16], strides = [1, 1, 1]} : vector<100x8x48xf32> to vector<98x8x16xf32>
    %14 = vector.extract_strided_slice %4 {offsets = [1, 0, 16], sizes = [98, 8, 16], strides = [1, 1, 1]} : vector<100x8x48xf32> to vector<98x8x16xf32>
    %15 = arith.addf %13, %14 : vector<98x8x16xf32>
    %16 = vector.extract_strided_slice %4 {offsets = [2, 0, 32], sizes = [98, 8, 16], strides = [1, 1, 1]} : vector<100x8x48xf32> to vector<98x8x16xf32>
    %17 = arith.addf %15, %16 : vector<98x8x16xf32>
    %c1 = arith.constant 1 : index
    %c0_7 = arith.constant 0 : index
    %c0_8 = arith.constant 0 : index
    %18 = vector.load %arg11[%c1, %c0_7, %c0_8] : memref<100x8x16xf32, #tpu.memory_space<vmem>>, vector<98x8x16xf32>
    tpu.vector_store %arg11[%c1, %c0_7, %c0_8], %17 {strides = array<i32>} : memref<100x8x16xf32, #tpu.memory_space<vmem>>, vector<98x8x16xf32>,
    %19 = vector.extract_strided_slice %4 {offsets = [98, 0, 0], sizes = [1, 8, 16], strides = [1, 1, 1]} : vector<100x8x48xf32> to vector<1x8x16xf32>
    %20 = vector.shape_cast %19 : vector<1x8x16xf32> to vector<8x16xf32>
    %21 = vector.extract_strided_slice %4 {offsets = [99, 0, 16], sizes = [1, 8, 16], strides = [1, 1, 1]} : vector<100x8x48xf32> to vector<1x8x16xf32>
    %22 = vector.shape_cast %21 : vector<1x8x16xf32> to vector<8x16xf32>
    %23 = arith.addf %20, %22 : vector<8x16xf32>
    %c99 = arith.constant 99 : index
    %c0_9 = arith.constant 0 : index
    %c0_10 = arith.constant 0 : index
    %24 = vector.load %arg11[%c99, %c0_9, %c0_10] : memref<100x8x16xf32, #tpu.memory_space<vmem>>, vector<1x8x16xf32>
    %25 = vector.shape_cast %24 : vector<1x8x16xf32> to vector<8x16xf32>
    %26 = vector.shape_cast %23 : vector<8x16xf32> to vector<1x8x16xf32>
    tpu.vector_store %arg11[%c99, %c0_9, %c0_10], %26 {strides = array<i32>} : memref<100x8x16xf32, #tpu.memory_space<vmem>>, vector<1x8x16xf32>,
    %c0_11 = arith.constant 0 : index
    %c0_12 = arith.constant 0 : index
    %c0_13 = arith.constant 0 : index
    %27 = vector.load %arg11[%c0_11, %c0_12, %c0_13] : memref<100x8x16xf32, #tpu.memory_space<vmem>>, vector<100x8x16xf32>
    %28 = vector.shape_cast %27 : vector<100x8x16xf32> to vector<50x16x16xf32>
    %29 = vector.extract_strided_slice %28 {offsets = [0, 0, 0], sizes = [50, 8, 16], strides = [1, 1, 1]} : vector<50x16x16xf32> to vector<50x8x16xf32>
    %30 = vector.extract_strided_slice %28 {offsets = [0, 8, 0], sizes = [50, 8, 16], strides = [1, 1, 1]} : vector<50x16x16xf32> to vector<50x8x16xf32>
    %31 = arith.maximumf %29, %30 : vector<50x8x16xf32>
    %c0_14 = arith.constant 0 : index
    %c0_15 = arith.constant 0 : index
    %32 = vector.load %arg3[%c0_14, %c0_15] : memref<1x16xf32, #tpu.memory_space<vmem>>, vector<1x16xf32>
    %33 = vector.shape_cast %32 : vector<1x16xf32> to vector<1x1x16xf32>
    %34 = vector.broadcast %33 : vector<1x1x16xf32> to vector<50x8x16xf32>
    %35 = arith.addf %31, %34 : vector<50x8x16xf32>
    %cst_16 = arith.constant 0.000000e+00 : f32
    %36 = vector.broadcast %cst_16 : f32 to vector<50x8x16xf32>
    %37 = arith.maximumf %35, %36 : vector<50x8x16xf32>
    %38 = arith.truncf %37 : vector<50x8x16xf32> to vector<50x8x16xbf16>
    %39 = vector.shape_cast %38 : vector<50x8x16xbf16> to vector<400x16xbf16>
    %c0_17 = arith.constant 0 : index
    %c0_18 = arith.constant 0 : index
    %40 = vector.load %arg4[%c0_17, %c0_18] : memref<16x96xbf16, #tpu.memory_space<vmem>>, vector<16x96xbf16>
    %cst_19 = arith.constant dense<0.000000e+00> : vector<400x96xf32>
    %41 = tpu.matmul %39, %40, %cst_19 {dimension_numbers = #tpu.dot_dimension_numbers<[1], [0], [0], [1], [0, 0, 1, 1], [], []>} : vector<400x16xbf16>, vector<16x96xbf16>, vector<400x96xf32> -> vector<400x96xf32>
    %42 = vector.shape_cast %41 : vector<400x96xf32> to vector<50x8x96xf32>
    %43 = vector.extract_strided_slice %42 {offsets = [0, 0, 32], sizes = [1, 8, 32], strides = [1, 1, 1]} : vector<50x8x96xf32> to vector<1x8x32xf32>
    %44 = vector.shape_cast %43 : vector<1x8x32xf32> to vector<8x32xf32>
    %45 = vector.extract_strided_slice %42 {offsets = [1, 0, 64], sizes = [1, 8, 32], strides = [1, 1, 1]} : vector<50x8x96xf32> to vector<1x8x32xf32>
    %46 = vector.shape_cast %45 : vector<1x8x32xf32> to vector<8x32xf32>
    %47 = arith.addf %44, %46 : vector<8x32xf32>
    %c0_20 = arith.constant 0 : index
    %c0_21 = arith.constant 0 : index
    %c0_22 = arith.constant 0 : index
    %48 = vector.load %arg12[%c0_20, %c0_21, %c0_22] : memref<50x8x32xf32, #tpu.memory_space<vmem>>, vector<1x8x32xf32>
    %49 = vector.shape_cast %48 : vector<1x8x32xf32> to vector<8x32xf32>
    %50 = vector.shape_cast %47 : vector<8x32xf32> to vector<1x8x32xf32>
    tpu.vector_store %arg12[%c0_20, %c0_21, %c0_22], %50 {strides = array<i32>} : memref<50x8x32xf32, #tpu.memory_space<vmem>>, vector<1x8x32xf32>,
    %51 = vector.extract_strided_slice %42 {offsets = [0, 0, 0], sizes = [48, 8, 32], strides = [1, 1, 1]} : vector<50x8x96xf32> to vector<48x8x32xf32>
    %52 = vector.extract_strided_slice %42 {offsets = [1, 0, 32], sizes = [48, 8, 32], strides = [1, 1, 1]} : vector<50x8x96xf32> to vector<48x8x32xf32>
    %53 = arith.addf %51, %52 : vector<48x8x32xf32>
    %54 = vector.extract_strided_slice %42 {offsets = [2, 0, 64], sizes = [48, 8, 32], strides = [1, 1, 1]} : vector<50x8x96xf32> to vector<48x8x32xf32>
    %55 = arith.addf %53, %54 : vector<48x8x32xf32>
    %c1_23 = arith.constant 1 : index
    %c0_24 = arith.constant 0 : index
    %c0_25 = arith.constant 0 : index
    %56 = vector.load %arg12[%c1_23, %c0_24, %c0_25] : memref<50x8x32xf32, #tpu.memory_space<vmem>>, vector<48x8x32xf32>
    tpu.vector_store %arg12[%c1_23, %c0_24, %c0_25], %55 {strides = array<i32>} : memref<50x8x32xf32, #tpu.memory_space<vmem>>, vector<48x8x32xf32>,
    %57 = vector.extract_strided_slice %42 {offsets = [48, 0, 0], sizes = [1, 8, 32], strides = [1, 1, 1]} : vector<50x8x96xf32> to vector<1x8x32xf32>
    %58 = vector.shape_cast %57 : vector<1x8x32xf32> to vector<8x32xf32>
    %59 = vector.extract_strided_slice %42 {offsets = [49, 0, 32], sizes = [1, 8, 32], strides = [1, 1, 1]} : vector<50x8x96xf32> to vector<1x8x32xf32>
    %60 = vector.shape_cast %59 : vector<1x8x32xf32> to vector<8x32xf32>
    %61 = arith.addf %58, %60 : vector<8x32xf32>
    %c49 = arith.constant 49 : index
    %c0_26 = arith.constant 0 : index
    %c0_27 = arith.constant 0 : index
    %62 = vector.load %arg12[%c49, %c0_26, %c0_27] : memref<50x8x32xf32, #tpu.memory_space<vmem>>, vector<1x8x32xf32>
    %63 = vector.shape_cast %62 : vector<1x8x32xf32> to vector<8x32xf32>
    %64 = vector.shape_cast %61 : vector<8x32xf32> to vector<1x8x32xf32>
    tpu.vector_store %arg12[%c49, %c0_26, %c0_27], %64 {strides = array<i32>} : memref<50x8x32xf32, #tpu.memory_space<vmem>>, vector<1x8x32xf32>,
    %c0_28 = arith.constant 0 : index
    %c0_29 = arith.constant 0 : index
    %65 = vector.load %arg5[%c0_28, %c0_29] : memref<1x32xf32, #tpu.memory_space<vmem>>, vector<1x32xf32>
    %c0_30 = arith.constant 0 : index
    %c0_31 = arith.constant 0 : index
    %c0_32 = arith.constant 0 : index
    %66 = vector.load %arg12[%c0_30, %c0_31, %c0_32] : memref<50x8x32xf32, #tpu.memory_space<vmem>>, vector<1x8x32xf32>
    %67 = vector.shape_cast %66 : vector<1x8x32xf32> to vector<8x32xf32>
    %c1_33 = arith.constant 1 : index
    %c0_34 = arith.constant 0 : index
    %c0_35 = arith.constant 0 : index
    %68 = vector.load %arg12[%c1_33, %c0_34, %c0_35] : memref<50x8x32xf32, #tpu.memory_space<vmem>>, vector<1x8x32xf32>
    %69 = vector.shape_cast %68 : vector<1x8x32xf32> to vector<8x32xf32>
    %70 = arith.maximumf %67, %69 : vector<8x32xf32>
    %71 = vector.broadcast %65 : vector<1x32xf32> to vector<8x32xf32>
    %72 = arith.addf %70, %71 : vector<8x32xf32>
    %cst_36 = arith.constant 0.000000e+00 : f32
    %73 = vector.broadcast %cst_36 : f32 to vector<8x32xf32>
    %74 = arith.maximumf %72, %73 : vector<8x32xf32>
    %75 = arith.truncf %74 : vector<8x32xf32> to vector<8x32xbf16>
    %c0_37 = arith.constant 0 : index
    %c0_38 = arith.constant 0 : index
    %76 = vector.load %arg13[%c0_37, %c0_38] : memref<8x800xbf16, #tpu.memory_space<vmem>>, vector<8x32xbf16>
    tpu.vector_store %arg13[%c0_37, %c0_38], %75 {strides = array<i32>} : memref<8x800xbf16, #tpu.memory_space<vmem>>, vector<8x32xbf16>,
    %c2 = arith.constant 2 : index
    %c0_39 = arith.constant 0 : index
    %c0_40 = arith.constant 0 : index
    %77 = vector.load %arg12[%c2, %c0_39, %c0_40] : memref<50x8x32xf32, #tpu.memory_space<vmem>>, vector<1x8x32xf32>
    %78 = vector.shape_cast %77 : vector<1x8x32xf32> to vector<8x32xf32>
    %c3 = arith.constant 3 : index
    %c0_41 = arith.constant 0 : index
    %c0_42 = arith.constant 0 : index
    %79 = vector.load %arg12[%c3, %c0_41, %c0_42] : memref<50x8x32xf32, #tpu.memory_space<vmem>>, vector<1x8x32xf32>
    %80 = vector.shape_cast %79 : vector<1x8x32xf32> to vector<8x32xf32>
    %81 = arith.maximumf %78, %80 : vector<8x32xf32>
    %82 = vector.broadcast %65 : vector<1x32xf32> to vector<8x32xf32>
    %83 = arith.addf %81, %82 : vector<8x32xf32>
    %cst_43 = arith.constant 0.000000e+00 : f32
    %84 = vector.broadcast %cst_43 : f32 to vector<8x32xf32>
    %85 = arith.maximumf %83, %84 : vector<8x32xf32>
    %86 = arith.truncf %85 : vector<8x32xf32> to vector<8x32xbf16>
    %c0_44 = arith.constant 0 : index
    %c32 = arith.constant 32 : index
    %87 = vector.load %arg13[%c0_44, %c32] : memref<8x800xbf16, #tpu.memory_space<vmem>>, vector<8x32xbf16>
    tpu.vector_store %arg13[%c0_44, %c32], %86 {strides = array<i32>} : memref<8x800xbf16, #tpu.memory_space<vmem>>, vector<8x32xbf16>,
    %c4 = arith.constant 4 : index
    %c0_45 = arith.constant 0 : index
    %c0_46 = arith.constant 0 : index
    %88 = vector.load %arg12[%c4, %c0_45, %c0_46] : memref<50x8x32xf32, #tpu.memory_space<vmem>>, vector<1x8x32xf32>
    %89 = vector.shape_cast %88 : vector<1x8x32xf32> to vector<8x32xf32>
    %c5 = arith.constant 5 : index
    %c0_47 = arith.constant 0 : index
    %c0_48 = arith.constant 0 : index
    %90 = vector.load %arg12[%c5, %c0_47, %c0_48] : memref<50x8x32xf32, #tpu.memory_space<vmem>>, vector<1x8x32xf32>
    %91 = vector.shape_cast %90 : vector<1x8x32xf32> to vector<8x32xf32>
    %92 = arith.maximumf %89, %91 : vector<8x32xf32>
    %93 = vector.broadcast %65 : vector<1x32xf32> to vector<8x32xf32>
    %94 = arith.addf %92, %93 : vector<8x32xf32>
    %cst_49 = arith.constant 0.000000e+00 : f32
    %95 = vector.broadcast %cst_49 : f32 to vector<8x32xf32>
    %96 = arith.maximumf %94, %95 : vector<8x32xf32>
    %97 = arith.truncf %96 : vector<8x32xf32> to vector<8x32xbf16>
    %c0_50 = arith.constant 0 : index
    %c64 = arith.constant 64 : index
    %98 = vector.load %arg13[%c0_50, %c64] : memref<8x800xbf16, #tpu.memory_space<vmem>>, vector<8x32xbf16>
    tpu.vector_store %arg13[%c0_50, %c64], %97 {strides = array<i32>} : memref<8x800xbf16, #tpu.memory_space<vmem>>, vector<8x32xbf16>,
    %c6 = arith.constant 6 : index
    %c0_51 = arith.constant 0 : index
    %c0_52 = arith.constant 0 : index
    %99 = vector.load %arg12[%c6, %c0_51, %c0_52] : memref<50x8x32xf32, #tpu.memory_space<vmem>>, vector<1x8x32xf32>
    %100 = vector.shape_cast %99 : vector<1x8x32xf32> to vector<8x32xf32>
    %c7 = arith.constant 7 : index
    %c0_53 = arith.constant 0 : index
    %c0_54 = arith.constant 0 : index
    %101 = vector.load %arg12[%c7, %c0_53, %c0_54] : memref<50x8x32xf32, #tpu.memory_space<vmem>>, vector<1x8x32xf32>
    %102 = vector.shape_cast %101 : vector<1x8x32xf32> to vector<8x32xf32>
    %103 = arith.maximumf %100, %102 : vector<8x32xf32>
    %104 = vector.broadcast %65 : vector<1x32xf32> to vector<8x32xf32>
    %105 = arith.addf %103, %104 : vector<8x32xf32>
    %cst_55 = arith.constant 0.000000e+00 : f32
    %106 = vector.broadcast %cst_55 : f32 to vector<8x32xf32>
    %107 = arith.maximumf %105, %106 : vector<8x32xf32>
    %108 = arith.truncf %107 : vector<8x32xf32> to vector<8x32xbf16>
    %c0_56 = arith.constant 0 : index
    %c96 = arith.constant 96 : index
    %109 = vector.load %arg13[%c0_56, %c96] : memref<8x800xbf16, #tpu.memory_space<vmem>>, vector<8x32xbf16>
    tpu.vector_store %arg13[%c0_56, %c96], %108 {strides = array<i32>} : memref<8x800xbf16, #tpu.memory_space<vmem>>, vector<8x32xbf16>,
    %c8 = arith.constant 8 : index
    %c0_57 = arith.constant 0 : index
    %c0_58 = arith.constant 0 : index
    %110 = vector.load %arg12[%c8, %c0_57, %c0_58] : memref<50x8x32xf32, #tpu.memory_space<vmem>>, vector<1x8x32xf32>
    %111 = vector.shape_cast %110 : vector<1x8x32xf32> to vector<8x32xf32>
    %c9 = arith.constant 9 : index
    %c0_59 = arith.constant 0 : index
    %c0_60 = arith.constant 0 : index
    %112 = vector.load %arg12[%c9, %c0_59, %c0_60] : memref<50x8x32xf32, #tpu.memory_space<vmem>>, vector<1x8x32xf32>
    %113 = vector.shape_cast %112 : vector<1x8x32xf32> to vector<8x32xf32>
    %114 = arith.maximumf %111, %113 : vector<8x32xf32>
    %115 = vector.broadcast %65 : vector<1x32xf32> to vector<8x32xf32>
    %116 = arith.addf %114, %115 : vector<8x32xf32>
    %cst_61 = arith.constant 0.000000e+00 : f32
    %117 = vector.broadcast %cst_61 : f32 to vector<8x32xf32>
    %118 = arith.maximumf %116, %117 : vector<8x32xf32>
    %119 = arith.truncf %118 : vector<8x32xf32> to vector<8x32xbf16>
    %c0_62 = arith.constant 0 : index
    %c128 = arith.constant 128 : index
    %120 = vector.load %arg13[%c0_62, %c128] : memref<8x800xbf16, #tpu.memory_space<vmem>>, vector<8x32xbf16>
    tpu.vector_store %arg13[%c0_62, %c128], %119 {strides = array<i32>} : memref<8x800xbf16, #tpu.memory_space<vmem>>, vector<8x32xbf16>,
    %c10 = arith.constant 10 : index
    %c0_63 = arith.constant 0 : index
    %c0_64 = arith.constant 0 : index
    %121 = vector.load %arg12[%c10, %c0_63, %c0_64] : memref<50x8x32xf32, #tpu.memory_space<vmem>>, vector<1x8x32xf32>
    %122 = vector.shape_cast %121 : vector<1x8x32xf32> to vector<8x32xf32>
    %c11 = arith.constant 11 : index
    %c0_65 = arith.constant 0 : index
    %c0_66 = arith.constant 0 : index
    %123 = vector.load %arg12[%c11, %c0_65, %c0_66] : memref<50x8x32xf32, #tpu.memory_space<vmem>>, vector<1x8x32xf32>
    %124 = vector.shape_cast %123 : vector<1x8x32xf32> to vector<8x32xf32>
    %125 = arith.maximumf %122, %124 : vector<8x32xf32>
    %126 = vector.broadcast %65 : vector<1x32xf32> to vector<8x32xf32>
    %127 = arith.addf %125, %126 : vector<8x32xf32>
    %cst_67 = arith.constant 0.000000e+00 : f32
    %128 = vector.broadcast %cst_67 : f32 to vector<8x32xf32>
    %129 = arith.maximumf %127, %128 : vector<8x32xf32>
    %130 = arith.truncf %129 : vector<8x32xf32> to vector<8x32xbf16>
    %c0_68 = arith.constant 0 : index
    %c160 = arith.constant 160 : index
    %131 = vector.load %arg13[%c0_68, %c160] : memref<8x800xbf16, #tpu.memory_space<vmem>>, vector<8x32xbf16>
    tpu.vector_store %arg13[%c0_68, %c160], %130 {strides = array<i32>} : memref<8x800xbf16, #tpu.memory_space<vmem>>, vector<8x32xbf16>,
    %c12 = arith.constant 12 : index
    %c0_69 = arith.constant 0 : index
    %c0_70 = arith.constant 0 : index
    %132 = vector.load %arg12[%c12, %c0_69, %c0_70] : memref<50x8x32xf32, #tpu.memory_space<vmem>>, vector<1x8x32xf32>
    %133 = vector.shape_cast %132 : vector<1x8x32xf32> to vector<8x32xf32>
    %c13 = arith.constant 13 : index
    %c0_71 = arith.constant 0 : index
    %c0_72 = arith.constant 0 : index
    %134 = vector.load %arg12[%c13, %c0_71, %c0_72] : memref<50x8x32xf32, #tpu.memory_space<vmem>>, vector<1x8x32xf32>
    %135 = vector.shape_cast %134 : vector<1x8x32xf32> to vector<8x32xf32>
    %136 = arith.maximumf %133, %135 : vector<8x32xf32>
    %137 = vector.broadcast %65 : vector<1x32xf32> to vector<8x32xf32>
    %138 = arith.addf %136, %137 : vector<8x32xf32>
    %cst_73 = arith.constant 0.000000e+00 : f32
    %139 = vector.broadcast %cst_73 : f32 to vector<8x32xf32>
    %140 = arith.maximumf %138, %139 : vector<8x32xf32>
    %141 = arith.truncf %140 : vector<8x32xf32> to vector<8x32xbf16>
    %c0_74 = arith.constant 0 : index
    %c192 = arith.constant 192 : index
    %142 = vector.load %arg13[%c0_74, %c192] : memref<8x800xbf16, #tpu.memory_space<vmem>>, vector<8x32xbf16>
    tpu.vector_store %arg13[%c0_74, %c192], %141 {strides = array<i32>} : memref<8x800xbf16, #tpu.memory_space<vmem>>, vector<8x32xbf16>,
    %c14 = arith.constant 14 : index
    %c0_75 = arith.constant 0 : index
    %c0_76 = arith.constant 0 : index
    %143 = vector.load %arg12[%c14, %c0_75, %c0_76] : memref<50x8x32xf32, #tpu.memory_space<vmem>>, vector<1x8x32xf32>
    %144 = vector.shape_cast %143 : vector<1x8x32xf32> to vector<8x32xf32>
    %c15 = arith.constant 15 : index
    %c0_77 = arith.constant 0 : index
    %c0_78 = arith.constant 0 : index
    %145 = vector.load %arg12[%c15, %c0_77, %c0_78] : memref<50x8x32xf32, #tpu.memory_space<vmem>>, vector<1x8x32xf32>
    %146 = vector.shape_cast %145 : vector<1x8x32xf32> to vector<8x32xf32>
    %147 = arith.maximumf %144, %146 : vector<8x32xf32>
    %148 = vector.broadcast %65 : vector<1x32xf32> to vector<8x32xf32>
    %149 = arith.addf %147, %148 : vector<8x32xf32>
    %cst_79 = arith.constant 0.000000e+00 : f32
    %150 = vector.broadcast %cst_79 : f32 to vector<8x32xf32>
    %151 = arith.maximumf %149, %150 : vector<8x32xf32>
    %152 = arith.truncf %151 : vector<8x32xf32> to vector<8x32xbf16>
    %c0_80 = arith.constant 0 : index
    %c224 = arith.constant 224 : index
    %153 = vector.load %arg13[%c0_80, %c224] : memref<8x800xbf16, #tpu.memory_space<vmem>>, vector<8x32xbf16>
    tpu.vector_store %arg13[%c0_80, %c224], %152 {strides = array<i32>} : memref<8x800xbf16, #tpu.memory_space<vmem>>, vector<8x32xbf16>,
    %c16 = arith.constant 16 : index
    %c0_81 = arith.constant 0 : index
    %c0_82 = arith.constant 0 : index
    %154 = vector.load %arg12[%c16, %c0_81, %c0_82] : memref<50x8x32xf32, #tpu.memory_space<vmem>>, vector<1x8x32xf32>
    %155 = vector.shape_cast %154 : vector<1x8x32xf32> to vector<8x32xf32>
    %c17 = arith.constant 17 : index
    %c0_83 = arith.constant 0 : index
    %c0_84 = arith.constant 0 : index
    %156 = vector.load %arg12[%c17, %c0_83, %c0_84] : memref<50x8x32xf32, #tpu.memory_space<vmem>>, vector<1x8x32xf32>
    %157 = vector.shape_cast %156 : vector<1x8x32xf32> to vector<8x32xf32>
    %158 = arith.maximumf %155, %157 : vector<8x32xf32>
    %159 = vector.broadcast %65 : vector<1x32xf32> to vector<8x32xf32>
    %160 = arith.addf %158, %159 : vector<8x32xf32>
    %cst_85 = arith.constant 0.000000e+00 : f32
    %161 = vector.broadcast %cst_85 : f32 to vector<8x32xf32>
    %162 = arith.maximumf %160, %161 : vector<8x32xf32>
    %163 = arith.truncf %162 : vector<8x32xf32> to vector<8x32xbf16>
    %c0_86 = arith.constant 0 : index
    %c256 = arith.constant 256 : index
    %164 = vector.load %arg13[%c0_86, %c256] : memref<8x800xbf16, #tpu.memory_space<vmem>>, vector<8x32xbf16>
    tpu.vector_store %arg13[%c0_86, %c256], %163 {strides = array<i32>} : memref<8x800xbf16, #tpu.memory_space<vmem>>, vector<8x32xbf16>,
    %c18 = arith.constant 18 : index
    %c0_87 = arith.constant 0 : index
    %c0_88 = arith.constant 0 : index
    %165 = vector.load %arg12[%c18, %c0_87, %c0_88] : memref<50x8x32xf32, #tpu.memory_space<vmem>>, vector<1x8x32xf32>
    %166 = vector.shape_cast %165 : vector<1x8x32xf32> to vector<8x32xf32>
    %c19 = arith.constant 19 : index
    %c0_89 = arith.constant 0 : index
    %c0_90 = arith.constant 0 : index
    %167 = vector.load %arg12[%c19, %c0_89, %c0_90] : memref<50x8x32xf32, #tpu.memory_space<vmem>>, vector<1x8x32xf32>
    %168 = vector.shape_cast %167 : vector<1x8x32xf32> to vector<8x32xf32>
    %169 = arith.maximumf %166, %168 : vector<8x32xf32>
    %170 = vector.broadcast %65 : vector<1x32xf32> to vector<8x32xf32>
    %171 = arith.addf %169, %170 : vector<8x32xf32>
    %cst_91 = arith.constant 0.000000e+00 : f32
    %172 = vector.broadcast %cst_91 : f32 to vector<8x32xf32>
    %173 = arith.maximumf %171, %172 : vector<8x32xf32>
    %174 = arith.truncf %173 : vector<8x32xf32> to vector<8x32xbf16>
    %c0_92 = arith.constant 0 : index
    %c288 = arith.constant 288 : index
    %175 = vector.load %arg13[%c0_92, %c288] : memref<8x800xbf16, #tpu.memory_space<vmem>>, vector<8x32xbf16>
    tpu.vector_store %arg13[%c0_92, %c288], %174 {strides = array<i32>} : memref<8x800xbf16, #tpu.memory_space<vmem>>, vector<8x32xbf16>,
    %c20 = arith.constant 20 : index
    %c0_93 = arith.constant 0 : index
    %c0_94 = arith.constant 0 : index
    %176 = vector.load %arg12[%c20, %c0_93, %c0_94] : memref<50x8x32xf32, #tpu.memory_space<vmem>>, vector<1x8x32xf32>
    %177 = vector.shape_cast %176 : vector<1x8x32xf32> to vector<8x32xf32>
    %c21 = arith.constant 21 : index
    %c0_95 = arith.constant 0 : index
    %c0_96 = arith.constant 0 : index
    %178 = vector.load %arg12[%c21, %c0_95, %c0_96] : memref<50x8x32xf32, #tpu.memory_space<vmem>>, vector<1x8x32xf32>
    %179 = vector.shape_cast %178 : vector<1x8x32xf32> to vector<8x32xf32>
    %180 = arith.maximumf %177, %179 : vector<8x32xf32>
    %181 = vector.broadcast %65 : vector<1x32xf32> to vector<8x32xf32>
    %182 = arith.addf %180, %181 : vector<8x32xf32>
    %cst_97 = arith.constant 0.000000e+00 : f32
    %183 = vector.broadcast %cst_97 : f32 to vector<8x32xf32>
    %184 = arith.maximumf %182, %183 : vector<8x32xf32>
    %185 = arith.truncf %184 : vector<8x32xf32> to vector<8x32xbf16>
    %c0_98 = arith.constant 0 : index
    %c320 = arith.constant 320 : index
    %186 = vector.load %arg13[%c0_98, %c320] : memref<8x800xbf16, #tpu.memory_space<vmem>>, vector<8x32xbf16>
    tpu.vector_store %arg13[%c0_98, %c320], %185 {strides = array<i32>} : memref<8x800xbf16, #tpu.memory_space<vmem>>, vector<8x32xbf16>,
    %c22 = arith.constant 22 : index
    %c0_99 = arith.constant 0 : index
    %c0_100 = arith.constant 0 : index
    %187 = vector.load %arg12[%c22, %c0_99, %c0_100] : memref<50x8x32xf32, #tpu.memory_space<vmem>>, vector<1x8x32xf32>
    %188 = vector.shape_cast %187 : vector<1x8x32xf32> to vector<8x32xf32>
    %c23 = arith.constant 23 : index
    %c0_101 = arith.constant 0 : index
    %c0_102 = arith.constant 0 : index
    %189 = vector.load %arg12[%c23, %c0_101, %c0_102] : memref<50x8x32xf32, #tpu.memory_space<vmem>>, vector<1x8x32xf32>
    %190 = vector.shape_cast %189 : vector<1x8x32xf32> to vector<8x32xf32>
    %191 = arith.maximumf %188, %190 : vector<8x32xf32>
    %192 = vector.broadcast %65 : vector<1x32xf32> to vector<8x32xf32>
    %193 = arith.addf %191, %192 : vector<8x32xf32>
    %cst_103 = arith.constant 0.000000e+00 : f32
    %194 = vector.broadcast %cst_103 : f32 to vector<8x32xf32>
    %195 = arith.maximumf %193, %194 : vector<8x32xf32>
    %196 = arith.truncf %195 : vector<8x32xf32> to vector<8x32xbf16>
    %c0_104 = arith.constant 0 : index
    %c352 = arith.constant 352 : index
    %197 = vector.load %arg13[%c0_104, %c352] : memref<8x800xbf16, #tpu.memory_space<vmem>>, vector<8x32xbf16>
    tpu.vector_store %arg13[%c0_104, %c352], %196 {strides = array<i32>} : memref<8x800xbf16, #tpu.memory_space<vmem>>, vector<8x32xbf16>,
    %c24 = arith.constant 24 : index
    %c0_105 = arith.constant 0 : index
    %c0_106 = arith.constant 0 : index
    %198 = vector.load %arg12[%c24, %c0_105, %c0_106] : memref<50x8x32xf32, #tpu.memory_space<vmem>>, vector<1x8x32xf32>
    %199 = vector.shape_cast %198 : vector<1x8x32xf32> to vector<8x32xf32>
    %c25 = arith.constant 25 : index
    %c0_107 = arith.constant 0 : index
    %c0_108 = arith.constant 0 : index
    %200 = vector.load %arg12[%c25, %c0_107, %c0_108] : memref<50x8x32xf32, #tpu.memory_space<vmem>>, vector<1x8x32xf32>
    %201 = vector.shape_cast %200 : vector<1x8x32xf32> to vector<8x32xf32>
    %202 = arith.maximumf %199, %201 : vector<8x32xf32>
    %203 = vector.broadcast %65 : vector<1x32xf32> to vector<8x32xf32>
    %204 = arith.addf %202, %203 : vector<8x32xf32>
    %cst_109 = arith.constant 0.000000e+00 : f32
    %205 = vector.broadcast %cst_109 : f32 to vector<8x32xf32>
    %206 = arith.maximumf %204, %205 : vector<8x32xf32>
    %207 = arith.truncf %206 : vector<8x32xf32> to vector<8x32xbf16>
    %c0_110 = arith.constant 0 : index
    %c384 = arith.constant 384 : index
    %208 = vector.load %arg13[%c0_110, %c384] : memref<8x800xbf16, #tpu.memory_space<vmem>>, vector<8x32xbf16>
    tpu.vector_store %arg13[%c0_110, %c384], %207 {strides = array<i32>} : memref<8x800xbf16, #tpu.memory_space<vmem>>, vector<8x32xbf16>,
    %c26 = arith.constant 26 : index
    %c0_111 = arith.constant 0 : index
    %c0_112 = arith.constant 0 : index
    %209 = vector.load %arg12[%c26, %c0_111, %c0_112] : memref<50x8x32xf32, #tpu.memory_space<vmem>>, vector<1x8x32xf32>
    %210 = vector.shape_cast %209 : vector<1x8x32xf32> to vector<8x32xf32>
    %c27 = arith.constant 27 : index
    %c0_113 = arith.constant 0 : index
    %c0_114 = arith.constant 0 : index
    %211 = vector.load %arg12[%c27, %c0_113, %c0_114] : memref<50x8x32xf32, #tpu.memory_space<vmem>>, vector<1x8x32xf32>
    %212 = vector.shape_cast %211 : vector<1x8x32xf32> to vector<8x32xf32>
    %213 = arith.maximumf %210, %212 : vector<8x32xf32>
    %214 = vector.broadcast %65 : vector<1x32xf32> to vector<8x32xf32>
    %215 = arith.addf %213, %214 : vector<8x32xf32>
    %cst_115 = arith.constant 0.000000e+00 : f32
    %216 = vector.broadcast %cst_115 : f32 to vector<8x32xf32>
    %217 = arith.maximumf %215, %216 : vector<8x32xf32>
    %218 = arith.truncf %217 : vector<8x32xf32> to vector<8x32xbf16>
    %c0_116 = arith.constant 0 : index
    %c416 = arith.constant 416 : index
    %219 = vector.load %arg13[%c0_116, %c416] : memref<8x800xbf16, #tpu.memory_space<vmem>>, vector<8x32xbf16>
    tpu.vector_store %arg13[%c0_116, %c416], %218 {strides = array<i32>} : memref<8x800xbf16, #tpu.memory_space<vmem>>, vector<8x32xbf16>,
    %c28 = arith.constant 28 : index
    %c0_117 = arith.constant 0 : index
    %c0_118 = arith.constant 0 : index
    %220 = vector.load %arg12[%c28, %c0_117, %c0_118] : memref<50x8x32xf32, #tpu.memory_space<vmem>>, vector<1x8x32xf32>
    %221 = vector.shape_cast %220 : vector<1x8x32xf32> to vector<8x32xf32>
    %c29 = arith.constant 29 : index
    %c0_119 = arith.constant 0 : index
    %c0_120 = arith.constant 0 : index
    %222 = vector.load %arg12[%c29, %c0_119, %c0_120] : memref<50x8x32xf32, #tpu.memory_space<vmem>>, vector<1x8x32xf32>
    %223 = vector.shape_cast %222 : vector<1x8x32xf32> to vector<8x32xf32>
    %224 = arith.maximumf %221, %223 : vector<8x32xf32>
    %225 = vector.broadcast %65 : vector<1x32xf32> to vector<8x32xf32>
    %226 = arith.addf %224, %225 : vector<8x32xf32>
    %cst_121 = arith.constant 0.000000e+00 : f32
    %227 = vector.broadcast %cst_121 : f32 to vector<8x32xf32>
    %228 = arith.maximumf %226, %227 : vector<8x32xf32>
    %229 = arith.truncf %228 : vector<8x32xf32> to vector<8x32xbf16>
    %c0_122 = arith.constant 0 : index
    %c448 = arith.constant 448 : index
    %230 = vector.load %arg13[%c0_122, %c448] : memref<8x800xbf16, #tpu.memory_space<vmem>>, vector<8x32xbf16>
    tpu.vector_store %arg13[%c0_122, %c448], %229 {strides = array<i32>} : memref<8x800xbf16, #tpu.memory_space<vmem>>, vector<8x32xbf16>,
    %c30 = arith.constant 30 : index
    %c0_123 = arith.constant 0 : index
    %c0_124 = arith.constant 0 : index
    %231 = vector.load %arg12[%c30, %c0_123, %c0_124] : memref<50x8x32xf32, #tpu.memory_space<vmem>>, vector<1x8x32xf32>
    %232 = vector.shape_cast %231 : vector<1x8x32xf32> to vector<8x32xf32>
    %c31 = arith.constant 31 : index
    %c0_125 = arith.constant 0 : index
    %c0_126 = arith.constant 0 : index
    %233 = vector.load %arg12[%c31, %c0_125, %c0_126] : memref<50x8x32xf32, #tpu.memory_space<vmem>>, vector<1x8x32xf32>
    %234 = vector.shape_cast %233 : vector<1x8x32xf32> to vector<8x32xf32>
    %235 = arith.maximumf %232, %234 : vector<8x32xf32>
    %236 = vector.broadcast %65 : vector<1x32xf32> to vector<8x32xf32>
    %237 = arith.addf %235, %236 : vector<8x32xf32>
    %cst_127 = arith.constant 0.000000e+00 : f32
    %238 = vector.broadcast %cst_127 : f32 to vector<8x32xf32>
    %239 = arith.maximumf %237, %238 : vector<8x32xf32>
    %240 = arith.truncf %239 : vector<8x32xf32> to vector<8x32xbf16>
    %c0_128 = arith.constant 0 : index
    %c480 = arith.constant 480 : index
    %241 = vector.load %arg13[%c0_128, %c480] : memref<8x800xbf16, #tpu.memory_space<vmem>>, vector<8x32xbf16>
    tpu.vector_store %arg13[%c0_128, %c480], %240 {strides = array<i32>} : memref<8x800xbf16, #tpu.memory_space<vmem>>, vector<8x32xbf16>,
    %c32_129 = arith.constant 32 : index
    %c0_130 = arith.constant 0 : index
    %c0_131 = arith.constant 0 : index
    %242 = vector.load %arg12[%c32_129, %c0_130, %c0_131] : memref<50x8x32xf32, #tpu.memory_space<vmem>>, vector<1x8x32xf32>
    %243 = vector.shape_cast %242 : vector<1x8x32xf32> to vector<8x32xf32>
    %c33 = arith.constant 33 : index
    %c0_132 = arith.constant 0 : index
    %c0_133 = arith.constant 0 : index
    %244 = vector.load %arg12[%c33, %c0_132, %c0_133] : memref<50x8x32xf32, #tpu.memory_space<vmem>>, vector<1x8x32xf32>
    %245 = vector.shape_cast %244 : vector<1x8x32xf32> to vector<8x32xf32>
    %246 = arith.maximumf %243, %245 : vector<8x32xf32>
    %247 = vector.broadcast %65 : vector<1x32xf32> to vector<8x32xf32>
    %248 = arith.addf %246, %247 : vector<8x32xf32>
    %cst_134 = arith.constant 0.000000e+00 : f32
    %249 = vector.broadcast %cst_134 : f32 to vector<8x32xf32>
    %250 = arith.maximumf %248, %249 : vector<8x32xf32>
    %251 = arith.truncf %250 : vector<8x32xf32> to vector<8x32xbf16>
    %c0_135 = arith.constant 0 : index
    %c512 = arith.constant 512 : index
    %252 = vector.load %arg13[%c0_135, %c512] : memref<8x800xbf16, #tpu.memory_space<vmem>>, vector<8x32xbf16>
    tpu.vector_store %arg13[%c0_135, %c512], %251 {strides = array<i32>} : memref<8x800xbf16, #tpu.memory_space<vmem>>, vector<8x32xbf16>,
    %c34 = arith.constant 34 : index
    %c0_136 = arith.constant 0 : index
    %c0_137 = arith.constant 0 : index
    %253 = vector.load %arg12[%c34, %c0_136, %c0_137] : memref<50x8x32xf32, #tpu.memory_space<vmem>>, vector<1x8x32xf32>
    %254 = vector.shape_cast %253 : vector<1x8x32xf32> to vector<8x32xf32>
    %c35 = arith.constant 35 : index
    %c0_138 = arith.constant 0 : index
    %c0_139 = arith.constant 0 : index
    %255 = vector.load %arg12[%c35, %c0_138, %c0_139] : memref<50x8x32xf32, #tpu.memory_space<vmem>>, vector<1x8x32xf32>
    %256 = vector.shape_cast %255 : vector<1x8x32xf32> to vector<8x32xf32>
    %257 = arith.maximumf %254, %256 : vector<8x32xf32>
    %258 = vector.broadcast %65 : vector<1x32xf32> to vector<8x32xf32>
    %259 = arith.addf %257, %258 : vector<8x32xf32>
    %cst_140 = arith.constant 0.000000e+00 : f32
    %260 = vector.broadcast %cst_140 : f32 to vector<8x32xf32>
    %261 = arith.maximumf %259, %260 : vector<8x32xf32>
    %262 = arith.truncf %261 : vector<8x32xf32> to vector<8x32xbf16>
    %c0_141 = arith.constant 0 : index
    %c544 = arith.constant 544 : index
    %263 = vector.load %arg13[%c0_141, %c544] : memref<8x800xbf16, #tpu.memory_space<vmem>>, vector<8x32xbf16>
    tpu.vector_store %arg13[%c0_141, %c544], %262 {strides = array<i32>} : memref<8x800xbf16, #tpu.memory_space<vmem>>, vector<8x32xbf16>,
    %c36 = arith.constant 36 : index
    %c0_142 = arith.constant 0 : index
    %c0_143 = arith.constant 0 : index
    %264 = vector.load %arg12[%c36, %c0_142, %c0_143] : memref<50x8x32xf32, #tpu.memory_space<vmem>>, vector<1x8x32xf32>
    %265 = vector.shape_cast %264 : vector<1x8x32xf32> to vector<8x32xf32>
    %c37 = arith.constant 37 : index
    %c0_144 = arith.constant 0 : index
    %c0_145 = arith.constant 0 : index
    %266 = vector.load %arg12[%c37, %c0_144, %c0_145] : memref<50x8x32xf32, #tpu.memory_space<vmem>>, vector<1x8x32xf32>
    %267 = vector.shape_cast %266 : vector<1x8x32xf32> to vector<8x32xf32>
    %268 = arith.maximumf %265, %267 : vector<8x32xf32>
    %269 = vector.broadcast %65 : vector<1x32xf32> to vector<8x32xf32>
    %270 = arith.addf %268, %269 : vector<8x32xf32>
    %cst_146 = arith.constant 0.000000e+00 : f32
    %271 = vector.broadcast %cst_146 : f32 to vector<8x32xf32>
    %272 = arith.maximumf %270, %271 : vector<8x32xf32>
    %273 = arith.truncf %272 : vector<8x32xf32> to vector<8x32xbf16>
    %c0_147 = arith.constant 0 : index
    %c576 = arith.constant 576 : index
    %274 = vector.load %arg13[%c0_147, %c576] : memref<8x800xbf16, #tpu.memory_space<vmem>>, vector<8x32xbf16>
    tpu.vector_store %arg13[%c0_147, %c576], %273 {strides = array<i32>} : memref<8x800xbf16, #tpu.memory_space<vmem>>, vector<8x32xbf16>,
    %c38 = arith.constant 38 : index
    %c0_148 = arith.constant 0 : index
    %c0_149 = arith.constant 0 : index
    %275 = vector.load %arg12[%c38, %c0_148, %c0_149] : memref<50x8x32xf32, #tpu.memory_space<vmem>>, vector<1x8x32xf32>
    %276 = vector.shape_cast %275 : vector<1x8x32xf32> to vector<8x32xf32>
    %c39 = arith.constant 39 : index
    %c0_150 = arith.constant 0 : index
    %c0_151 = arith.constant 0 : index
    %277 = vector.load %arg12[%c39, %c0_150, %c0_151] : memref<50x8x32xf32, #tpu.memory_space<vmem>>, vector<1x8x32xf32>
    %278 = vector.shape_cast %277 : vector<1x8x32xf32> to vector<8x32xf32>
    %279 = arith.maximumf %276, %278 : vector<8x32xf32>
    %280 = vector.broadcast %65 : vector<1x32xf32> to vector<8x32xf32>
    %281 = arith.addf %279, %280 : vector<8x32xf32>
    %cst_152 = arith.constant 0.000000e+00 : f32
    %282 = vector.broadcast %cst_152 : f32 to vector<8x32xf32>
    %283 = arith.maximumf %281, %282 : vector<8x32xf32>
    %284 = arith.truncf %283 : vector<8x32xf32> to vector<8x32xbf16>
    %c0_153 = arith.constant 0 : index
    %c608 = arith.constant 608 : index
    %285 = vector.load %arg13[%c0_153, %c608] : memref<8x800xbf16, #tpu.memory_space<vmem>>, vector<8x32xbf16>
    tpu.vector_store %arg13[%c0_153, %c608], %284 {strides = array<i32>} : memref<8x800xbf16, #tpu.memory_space<vmem>>, vector<8x32xbf16>,
    %c40 = arith.constant 40 : index
    %c0_154 = arith.constant 0 : index
    %c0_155 = arith.constant 0 : index
    %286 = vector.load %arg12[%c40, %c0_154, %c0_155] : memref<50x8x32xf32, #tpu.memory_space<vmem>>, vector<1x8x32xf32>
    %287 = vector.shape_cast %286 : vector<1x8x32xf32> to vector<8x32xf32>
    %c41 = arith.constant 41 : index
    %c0_156 = arith.constant 0 : index
    %c0_157 = arith.constant 0 : index
    %288 = vector.load %arg12[%c41, %c0_156, %c0_157] : memref<50x8x32xf32, #tpu.memory_space<vmem>>, vector<1x8x32xf32>
    %289 = vector.shape_cast %288 : vector<1x8x32xf32> to vector<8x32xf32>
    %290 = arith.maximumf %287, %289 : vector<8x32xf32>
    %291 = vector.broadcast %65 : vector<1x32xf32> to vector<8x32xf32>
    %292 = arith.addf %290, %291 : vector<8x32xf32>
    %cst_158 = arith.constant 0.000000e+00 : f32
    %293 = vector.broadcast %cst_158 : f32 to vector<8x32xf32>
    %294 = arith.maximumf %292, %293 : vector<8x32xf32>
    %295 = arith.truncf %294 : vector<8x32xf32> to vector<8x32xbf16>
    %c0_159 = arith.constant 0 : index
    %c640 = arith.constant 640 : index
    %296 = vector.load %arg13[%c0_159, %c640] : memref<8x800xbf16, #tpu.memory_space<vmem>>, vector<8x32xbf16>
    tpu.vector_store %arg13[%c0_159, %c640], %295 {strides = array<i32>} : memref<8x800xbf16, #tpu.memory_space<vmem>>, vector<8x32xbf16>,
    %c42 = arith.constant 42 : index
    %c0_160 = arith.constant 0 : index
    %c0_161 = arith.constant 0 : index
    %297 = vector.load %arg12[%c42, %c0_160, %c0_161] : memref<50x8x32xf32, #tpu.memory_space<vmem>>, vector<1x8x32xf32>
    %298 = vector.shape_cast %297 : vector<1x8x32xf32> to vector<8x32xf32>
    %c43 = arith.constant 43 : index
    %c0_162 = arith.constant 0 : index
    %c0_163 = arith.constant 0 : index
    %299 = vector.load %arg12[%c43, %c0_162, %c0_163] : memref<50x8x32xf32, #tpu.memory_space<vmem>>, vector<1x8x32xf32>
    %300 = vector.shape_cast %299 : vector<1x8x32xf32> to vector<8x32xf32>
    %301 = arith.maximumf %298, %300 : vector<8x32xf32>
    %302 = vector.broadcast %65 : vector<1x32xf32> to vector<8x32xf32>
    %303 = arith.addf %301, %302 : vector<8x32xf32>
    %cst_164 = arith.constant 0.000000e+00 : f32
    %304 = vector.broadcast %cst_164 : f32 to vector<8x32xf32>
    %305 = arith.maximumf %303, %304 : vector<8x32xf32>
    %306 = arith.truncf %305 : vector<8x32xf32> to vector<8x32xbf16>
    %c0_165 = arith.constant 0 : index
    %c672 = arith.constant 672 : index
    %307 = vector.load %arg13[%c0_165, %c672] : memref<8x800xbf16, #tpu.memory_space<vmem>>, vector<8x32xbf16>
    tpu.vector_store %arg13[%c0_165, %c672], %306 {strides = array<i32>} : memref<8x800xbf16, #tpu.memory_space<vmem>>, vector<8x32xbf16>,
    %c44 = arith.constant 44 : index
    %c0_166 = arith.constant 0 : index
    %c0_167 = arith.constant 0 : index
    %308 = vector.load %arg12[%c44, %c0_166, %c0_167] : memref<50x8x32xf32, #tpu.memory_space<vmem>>, vector<1x8x32xf32>
    %309 = vector.shape_cast %308 : vector<1x8x32xf32> to vector<8x32xf32>
    %c45 = arith.constant 45 : index
    %c0_168 = arith.constant 0 : index
    %c0_169 = arith.constant 0 : index
    %310 = vector.load %arg12[%c45, %c0_168, %c0_169] : memref<50x8x32xf32, #tpu.memory_space<vmem>>, vector<1x8x32xf32>
    %311 = vector.shape_cast %310 : vector<1x8x32xf32> to vector<8x32xf32>
    %312 = arith.maximumf %309, %311 : vector<8x32xf32>
    %313 = vector.broadcast %65 : vector<1x32xf32> to vector<8x32xf32>
    %314 = arith.addf %312, %313 : vector<8x32xf32>
    %cst_170 = arith.constant 0.000000e+00 : f32
    %315 = vector.broadcast %cst_170 : f32 to vector<8x32xf32>
    %316 = arith.maximumf %314, %315 : vector<8x32xf32>
    %317 = arith.truncf %316 : vector<8x32xf32> to vector<8x32xbf16>
    %c0_171 = arith.constant 0 : index
    %c704 = arith.constant 704 : index
    %318 = vector.load %arg13[%c0_171, %c704] : memref<8x800xbf16, #tpu.memory_space<vmem>>, vector<8x32xbf16>
    tpu.vector_store %arg13[%c0_171, %c704], %317 {strides = array<i32>} : memref<8x800xbf16, #tpu.memory_space<vmem>>, vector<8x32xbf16>,
    %c46 = arith.constant 46 : index
    %c0_172 = arith.constant 0 : index
    %c0_173 = arith.constant 0 : index
    %319 = vector.load %arg12[%c46, %c0_172, %c0_173] : memref<50x8x32xf32, #tpu.memory_space<vmem>>, vector<1x8x32xf32>
    %320 = vector.shape_cast %319 : vector<1x8x32xf32> to vector<8x32xf32>
    %c47 = arith.constant 47 : index
    %c0_174 = arith.constant 0 : index
    %c0_175 = arith.constant 0 : index
    %321 = vector.load %arg12[%c47, %c0_174, %c0_175] : memref<50x8x32xf32, #tpu.memory_space<vmem>>, vector<1x8x32xf32>
    %322 = vector.shape_cast %321 : vector<1x8x32xf32> to vector<8x32xf32>
    %323 = arith.maximumf %320, %322 : vector<8x32xf32>
    %324 = vector.broadcast %65 : vector<1x32xf32> to vector<8x32xf32>
    %325 = arith.addf %323, %324 : vector<8x32xf32>
    %cst_176 = arith.constant 0.000000e+00 : f32
    %326 = vector.broadcast %cst_176 : f32 to vector<8x32xf32>
    %327 = arith.maximumf %325, %326 : vector<8x32xf32>
    %328 = arith.truncf %327 : vector<8x32xf32> to vector<8x32xbf16>
    %c0_177 = arith.constant 0 : index
    %c736 = arith.constant 736 : index
    %329 = vector.load %arg13[%c0_177, %c736] : memref<8x800xbf16, #tpu.memory_space<vmem>>, vector<8x32xbf16>
    tpu.vector_store %arg13[%c0_177, %c736], %328 {strides = array<i32>} : memref<8x800xbf16, #tpu.memory_space<vmem>>, vector<8x32xbf16>,
    %c48 = arith.constant 48 : index
    %c0_178 = arith.constant 0 : index
    %c0_179 = arith.constant 0 : index
    %330 = vector.load %arg12[%c48, %c0_178, %c0_179] : memref<50x8x32xf32, #tpu.memory_space<vmem>>, vector<1x8x32xf32>
    %331 = vector.shape_cast %330 : vector<1x8x32xf32> to vector<8x32xf32>
    %c49_180 = arith.constant 49 : index
    %c0_181 = arith.constant 0 : index
    %c0_182 = arith.constant 0 : index
    %332 = vector.load %arg12[%c49_180, %c0_181, %c0_182] : memref<50x8x32xf32, #tpu.memory_space<vmem>>, vector<1x8x32xf32>
    %333 = vector.shape_cast %332 : vector<1x8x32xf32> to vector<8x32xf32>
    %334 = arith.maximumf %331, %333 : vector<8x32xf32>
    %335 = vector.broadcast %65 : vector<1x32xf32> to vector<8x32xf32>
    %336 = arith.addf %334, %335 : vector<8x32xf32>
    %cst_183 = arith.constant 0.000000e+00 : f32
    %337 = vector.broadcast %cst_183 : f32 to vector<8x32xf32>
    %338 = arith.maximumf %336, %337 : vector<8x32xf32>
    %339 = arith.truncf %338 : vector<8x32xf32> to vector<8x32xbf16>
    %c0_184 = arith.constant 0 : index
    %c768 = arith.constant 768 : index
    %340 = vector.load %arg13[%c0_184, %c768] : memref<8x800xbf16, #tpu.memory_space<vmem>>, vector<8x32xbf16>
    tpu.vector_store %arg13[%c0_184, %c768], %339 {strides = array<i32>} : memref<8x800xbf16, #tpu.memory_space<vmem>>, vector<8x32xbf16>,
    %c0_185 = arith.constant 0 : index
    %c0_186 = arith.constant 0 : index
    %341 = vector.load %arg13[%c0_185, %c0_186] : memref<8x800xbf16, #tpu.memory_space<vmem>>, vector<8x800xbf16>
    %c0_187 = arith.constant 0 : index
    %c0_188 = arith.constant 0 : index
    %342 = vector.load %arg6[%c0_187, %c0_188] : memref<800x64xbf16, #tpu.memory_space<vmem>>, vector<800x64xbf16>
    %cst_189 = arith.constant dense<0.000000e+00> : vector<8x64xf32>
    %343 = tpu.matmul %341, %342, %cst_189 {dimension_numbers = #tpu.dot_dimension_numbers<[1], [0], [0], [1], [0, 0, 1, 1], [], []>} : vector<8x800xbf16>, vector<800x64xbf16>, vector<8x64xf32> -> vector<8x64xf32>
    %c0_190 = arith.constant 0 : index
    %c0_191 = arith.constant 0 : index
    %344 = vector.load %arg7[%c0_190, %c0_191] : memref<1x64xf32, #tpu.memory_space<vmem>>, vector<1x64xf32>
    %345 = vector.broadcast %344 : vector<1x64xf32> to vector<8x64xf32>
    %346 = arith.addf %343, %345 : vector<8x64xf32>
    %cst_192 = arith.constant 0.000000e+00 : f32
    %347 = vector.broadcast %cst_192 : f32 to vector<8x64xf32>
    %348 = arith.maximumf %346, %347 : vector<8x64xf32>
    %349 = arith.truncf %348 : vector<8x64xf32> to vector<8x64xbf16>
    %c0_193 = arith.constant 0 : index
    %c0_194 = arith.constant 0 : index
    %350 = vector.load %arg8[%c0_193, %c0_194] : memref<64x2xbf16, #tpu.memory_space<vmem>>, vector<64x2xbf16>
    %cst_195 = arith.constant dense<0.000000e+00> : vector<8x2xf32>
    %351 = tpu.matmul %349, %350, %cst_195 {dimension_numbers = #tpu.dot_dimension_numbers<[1], [0], [0], [1], [0, 0, 1, 1], [], []>} : vector<8x64xbf16>, vector<64x2xbf16>, vector<8x2xf32> -> vector<8x2xf32>
    %c0_196 = arith.constant 0 : index
    %c0_197 = arith.constant 0 : index
    %352 = vector.load %arg9[%c0_196, %c0_197] : memref<1x2xf32, #tpu.memory_space<vmem>>, vector<1x2xf32>
    %353 = vector.broadcast %352 : vector<1x2xf32> to vector<8x2xf32>
    %354 = arith.addf %351, %353 : vector<8x2xf32>
    %c0_198 = arith.constant 0 : index
    %c0_199 = arith.constant 0 : index
    %355 = vector.load %arg10[%c0_198, %c0_199] : memref<8x2xf32, #tpu.memory_space<vmem>>, vector<8x2xf32>
    tpu.vector_store %arg10[%c0_198, %c0_199], %354 {strides = array<i32>} : memref<8x2xf32, #tpu.memory_space<vmem>>, vector<8x2xf32>,
    return
  }
  func.func @transform_0(%arg0: i32) -> (i32, i32, i32) {
    %c0_i32 = arith.constant 0 : i32
    %c0_i32_0 = arith.constant 0 : i32
    %c0_i32_1 = arith.constant 0 : i32
    return %c0_i32, %arg0, %c0_i32_0 : i32, i32, i32
  }
  func.func @transform_1(%arg0: i32) -> (i32, i32) {
    %c0_i32 = arith.constant 0 : i32
    %c0_i32_0 = arith.constant 0 : i32
    %c0_i32_1 = arith.constant 0 : i32
    return %c0_i32, %c0_i32_0 : i32, i32
  }
  func.func @transform_2(%arg0: i32) -> (i32, i32) {
    %c0_i32 = arith.constant 0 : i32
    %c0_i32_0 = arith.constant 0 : i32
    %c0_i32_1 = arith.constant 0 : i32
    return %c0_i32, %c0_i32_0 : i32, i32
  }
  func.func @transform_3(%arg0: i32) -> (i32, i32) {
    %c0_i32 = arith.constant 0 : i32
    %c0_i32_0 = arith.constant 0 : i32
    %c0_i32_1 = arith.constant 0 : i32
    return %c0_i32, %c0_i32_0 : i32, i32
  }
  func.func @transform_4(%arg0: i32) -> (i32, i32) {
    %c0_i32 = arith.constant 0 : i32
    %c0_i32_0 = arith.constant 0 : i32
    %c0_i32_1 = arith.constant 0 : i32
    return %c0_i32, %c0_i32_0 : i32, i32
  }
  func.func @transform_5(%arg0: i32) -> (i32, i32) {
    %c0_i32 = arith.constant 0 : i32
    %c0_i32_0 = arith.constant 0 : i32
    %c0_i32_1 = arith.constant 0 : i32
    return %c0_i32, %c0_i32_0 : i32, i32
  }
  func.func @transform_6(%arg0: i32) -> (i32, i32) {
    %c0_i32 = arith.constant 0 : i32
    %c0_i32_0 = arith.constant 0 : i32
    %c0_i32_1 = arith.constant 0 : i32
    return %c0_i32, %c0_i32_0 : i32, i32
  }
  func.func @transform_7(%arg0: i32) -> (i32, i32) {
    %c0_i32 = arith.constant 0 : i32
    %c0_i32_0 = arith.constant 0 : i32
    %c0_i32_1 = arith.constant 0 : i32
    return %c0_i32, %c0_i32_0 : i32, i32
  }
  func.func @transform_8(%arg0: i32) -> (i32, i32) {
    %c0_i32 = arith.constant 0 : i32
    %c0_i32_0 = arith.constant 0 : i32
    %c0_i32_1 = arith.constant 0 : i32
    return %c0_i32, %c0_i32_0 : i32, i32
  }
  func.func @transform_9(%arg0: i32) -> (i32, i32) {
    %c0_i32 = arith.constant 0 : i32
    %c0_i32_0 = arith.constant 0 : i32
    return %arg0, %c0_i32 : i32, i32
  }
}

</mosaic_0001>

<llo_original>
// kernel: cnn1d_forward.1
$region0: #{cnn1d_forward.1}
  #allocation0 [shape = 'u32[]', space=smem, size = 0x4, offset = 0x4, fixed_abs, tag = 'smem constant byte address 0x4 - core index']
  #allocation1 [shape = 'u32[72,128]{1,0:T(1,128)}', space=vmem, size = 0x9000, scoped, tag = 'internal scratch']
  #allocation2 [shape = 'f32[100,8,16]{2,1,0:T(8,128)}', space=vmem, size = 0x64000, scoped, tag = 'scratch operand']
  #allocation3 [shape = 'f32[50,8,32]{2,1,0:T(8,128)}', space=vmem, size = 0x32000, scoped, tag = 'scratch operand']
  #allocation4 [shape = 'bf16[8,800]{1,0:T(8,128)(2,1)}', space=vmem, size = 0x3800, scoped, tag = 'scratch operand']
  %s0 = inlined_call_operand.vmem [shape: bf16[100,8,40], index: 0, kind: input, shape index: {}]
  %s1 = inlined_call_operand.vmem [shape: bf16[40,48], index: 1, kind: input, shape index: {}]
  %s2 = inlined_call_operand.vmem [shape: f32[1,16], index: 2, kind: input, shape index: {}]
  %s3 = inlined_call_operand.vmem [shape: bf16[16,96], index: 3, kind: input, shape index: {}]
  %s4 = inlined_call_operand.vmem [shape: f32[1,32], index: 4, kind: input, shape index: {}]
  %s5 = inlined_call_operand.vmem [shape: bf16[800,64], index: 5, kind: input, shape index: {}]
  %s6 = inlined_call_operand.vmem [shape: f32[1,64], index: 6, kind: input, shape index: {}]
  %s7 = inlined_call_operand.vmem [shape: bf16[64,2], index: 7, kind: input, shape index: {}]
  %s8 = inlined_call_operand.vmem [shape: f32[1,2], index: 8, kind: input, shape index: {}]
  %s9 = inlined_call_operand.vmem [shape: f32[8,2], index: 9, kind: output, shape index: {}]
  %s10 = sld [smem:[#allocation0]]
  $region46: #{cnn1d_forward.1} parent=0
    _
  %s12 = ssub.s32 1, %s10
  %s13 = scalar_select 0, %s12, %s10
  // Predicated region
  $region2: #{cnn1d_forward.1} parent=0 // pred_check
    _
  $region3: #{cnn1d_forward.1} parent=0 // pred_check_branch
    %15 = sbr.rel (0) target = $region5
  $region4: #{cnn1d_forward.1} parent=0 // pred_region
    _
  $region5: #{cnn1d_forward.1} parent=0 // pred_fallthru
    _
  // Predicated region
  $region6: #{cnn1d_forward.1} parent=0 // pred_check
    _
  $region7: #{cnn1d_forward.1} parent=0 // pred_check_branch
    %17 = sbr.rel (0) target = $region9
  $region8: #{cnn1d_forward.1} parent=0 // pred_region
    _
  $region9: #{cnn1d_forward.1} parent=0 // pred_fallthru
    _
  // Predicated region
  $region10: #{cnn1d_forward.1} parent=0 // pred_check
    _
  $region11: #{cnn1d_forward.1} parent=0 // pred_check_branch
    %19 = sbr.rel (0) target = $region13
  $region12: #{cnn1d_forward.1} parent=0 // pred_region
    _
  $region13: #{cnn1d_forward.1} parent=0 // pred_fallthru
    _
  // Predicated region
  $region14: #{cnn1d_forward.1} parent=0 // pred_check
    _
  $region15: #{cnn1d_forward.1} parent=0 // pred_check_branch
    %21 = sbr.rel (0) target = $region17
  $region16: #{cnn1d_forward.1} parent=0 // pred_region
    _
  $region17: #{cnn1d_forward.1} parent=0 // pred_fallthru
    _
  // Predicated region
  $region18: #{cnn1d_forward.1} parent=0 // pred_check
    _
  $region19: #{cnn1d_forward.1} parent=0 // pred_check_branch
    %23 = sbr.rel (0) target = $region21
  $region20: #{cnn1d_forward.1} parent=0 // pred_region
    _
  $region21: #{cnn1d_forward.1} parent=0 // pred_fallthru
    _
  // Predicated region
  $region22: #{cnn1d_forward.1} parent=0 // pred_check
    _
  $region23: #{cnn1d_forward.1} parent=0 // pred_check_branch
    %25 = sbr.rel (0) target = $region25
  $region24: #{cnn1d_forward.1} parent=0 // pred_region
    _
  $region25: #{cnn1d_forward.1} parent=0 // pred_fallthru
    _
  // Predicated region
  $region26: #{cnn1d_forward.1} parent=0 // pred_check
    _
  $region27: #{cnn1d_forward.1} parent=0 // pred_check_branch
    %27 = sbr.rel (0) target = $region29
  $region28: #{cnn1d_forward.1} parent=0 // pred_region
    _
  $region29: #{cnn1d_forward.1} parent=0 // pred_fallthru
    _
  // Predicated region
  $region30: #{cnn1d_forward.1} parent=0 // pred_check
    _
  $region31: #{cnn1d_forward.1} parent=0 // pred_check_branch
    %29 = sbr.rel (0) target = $region33
  $region32: #{cnn1d_forward.1} parent=0 // pred_region
    _
  $region33: #{cnn1d_forward.1} parent=0 // pred_fallthru
    _
  // Predicated region
  $region34: #{cnn1d_forward.1} parent=0 // pred_check
    _
  $region35: #{cnn1d_forward.1} parent=0 // pred_check_branch
    %31 = sbr.rel (0) target = $region37
  $region36: #{cnn1d_forward.1} parent=0 // pred_region
    _
  $region37: #{cnn1d_forward.1} parent=0 // pred_fallthru
    _
  %v33 = vld [vmem:[%s0] sm:$0xf]
  %v34 = vld [vmem:[%s0 + $0x4] sm:$0xf]
  %v35 = vld [vmem:[%s0 + $0x8] sm:$0xf]
  %v36 = vld [vmem:[%s0 + $0xc] sm:$0xf]
  %v37 = vld [vmem:[%s0 + $0x10] sm:$0xf]
  %v38 = vld [vmem:[%s0 + $0x14] sm:$0xf]
  %v39 = vld [vmem:[%s0 + $0x18] sm:$0xf]
  %v40 = vld [vmem:[%s0 + $0x1c] sm:$0xf]
  %v41 = vld [vmem:[%s0 + $0x20] sm:$0xf]
  %v42 = vld [vmem:[%s0 + $0x24] sm:$0xf]
  %v43 = vld [vmem:[%s0 + $0x28] sm:$0xf]
  %v44 = vld [vmem:[%s0 + $0x2c] sm:$0xf]
  %v45 = vld [vmem:[%s0 + $0x30] sm:$0xf]
  %v46 = vld [vmem:[%s0 + $0x34] sm:$0xf]
  %v47 = vld [vmem:[%s0 + $0x38] sm:$0xf]
  %v48 = vld [vmem:[%s0 + $0x3c] sm:$0xf]
  %v49 = vld [vmem:[%s0 + $0x40] sm:$0xf]
  %v50 = vld [vmem:[%s0 + $0x44] sm:$0xf]
  %v51 = vld [vmem:[%s0 + $0x48] sm:$0xf]
  %v52 = vld [vmem:[%s0 + $0x4c] sm:$0xf]
  %v53 = vld [vmem:[%s0 + $0x50] sm:$0xf]
  %v54 = vld [vmem:[%s0 + $0x54] sm:$0xf]
  %v55 = vld [vmem:[%s0 + $0x58] sm:$0xf]
  %v56 = vld [vmem:[%s0 + $0x5c] sm:$0xf]
  %v57 = vld [vmem:[%s0 + $0x60] sm:$0xf]
  %v58 = vld [vmem:[%s0 + $0x64] sm:$0xf]
  %v59 = vld [vmem:[%s0 + $0x68] sm:$0xf]
  %v60 = vld [vmem:[%s0 + $0x6c] sm:$0xf]
  %v61 = vld [vmem:[%s0 + $0x70] sm:$0xf]
  %v62 = vld [vmem:[%s0 + $0x74] sm:$0xf]
  %v63 = vld [vmem:[%s0 + $0x78] sm:$0xf]
  %v64 = vld [vmem:[%s0 + $0x7c] sm:$0xf]
  %v65 = vld [vmem:[%s0 + $0x80] sm:$0xf]
  %v66 = vld [vmem:[%s0 + $0x84] sm:$0xf]
  %v67 = vld [vmem:[%s0 + $0x88] sm:$0xf]
  %v68 = vld [vmem:[%s0 + $0x8c] sm:$0xf]
  %v69 = vld [vmem:[%s0 + $0x90] sm:$0xf]
  %v70 = vld [vmem:[%s0 + $0x94] sm:$0xf]
  %v71 = vld [vmem:[%s0 + $0x98] sm:$0xf]
  %v72 = vld [vmem:[%s0 + $0x9c] sm:$0xf]
  %v73 = vld [vmem:[%s0 + $0xa0] sm:$0xf]
  %v74 = vld [vmem:[%s0 + $0xa4] sm:$0xf]
  %v75 = vld [vmem:[%s0 + $0xa8] sm:$0xf]
  %v76 = vld [vmem:[%s0 + $0xac] sm:$0xf]
  %v77 = vld [vmem:[%s0 + $0xb0] sm:$0xf]
  %v78 = vld [vmem:[%s0 + $0xb4] sm:$0xf]
  %v79 = vld [vmem:[%s0 + $0xb8] sm:$0xf]
  %v80 = vld [vmem:[%s0 + $0xbc] sm:$0xf]
  %v81 = vld [vmem:[%s0 + $0xc0] sm:$0xf]
  %v82 = vld [vmem:[%s0 + $0xc4] sm:$0xf]
  %v83 = vld [vmem:[%s0 + $0xc8] sm:$0xf]
  %v84 = vld [vmem:[%s0 + $0xcc] sm:$0xf]
  %v85 = vld [vmem:[%s0 + $0xd0] sm:$0xf]
  %v86 = vld [vmem:[%s0 + $0xd4] sm:$0xf]
  %v87 = vld [vmem:[%s0 + $0xd8] sm:$0xf]
  %v88 = vld [vmem:[%s0 + $0xdc] sm:$0xf]
  %v89 = vld [vmem:[%s0 + $0xe0] sm:$0xf]
  %v90 = vld [vmem:[%s0 + $0xe4] sm:$0xf]
  %v91 = vld [vmem:[%s0 + $0xe8] sm:$0xf]
  %v92 = vld [vmem:[%s0 + $0xec] sm:$0xf]
  %v93 = vld [vmem:[%s0 + $0xf0] sm:$0xf]
  %v94 = vld [vmem:[%s0 + $0xf4] sm:$0xf]
  %v95 = vld [vmem:[%s0 + $0xf8] sm:$0xf]
  %v96 = vld [vmem:[%s0 + $0xfc] sm:$0xf]
  %v97 = vld [vmem:[%s0 + $0x100] sm:$0xf]
  %v98 = vld [vmem:[%s0 + $0x104] sm:$0xf]
  %v99 = vld [vmem:[%s0 + $0x108] sm:$0xf]
  %v100 = vld [vmem:[%s0 + $0x10c] sm:$0xf]
  %v101 = vld [vmem:[%s0 + $0x110] sm:$0xf]
  %v102 = vld [vmem:[%s0 + $0x114] sm:$0xf]
  %v103 = vld [vmem:[%s0 + $0x118] sm:$0xf]
  %v104 = vld [vmem:[%s0 + $0x11c] sm:$0xf]
  %v105 = vld [vmem:[%s0 + $0x120] sm:$0xf]
  %v106 = vld [vmem:[%s0 + $0x124] sm:$0xf]
  %v107 = vld [vmem:[%s0 + $0x128] sm:$0xf]
  %v108 = vld [vmem:[%s0 + $0x12c] sm:$0xf]
  %v109 = vld [vmem:[%s0 + $0x130] sm:$0xf]
  %v110 = vld [vmem:[%s0 + $0x134] sm:$0xf]
  %v111 = vld [vmem:[%s0 + $0x138] sm:$0xf]
  %v112 = vld [vmem:[%s0 + $0x13c] sm:$0xf]
  %v113 = vld [vmem:[%s0 + $0x140] sm:$0xf]
  %v114 = vld [vmem:[%s0 + $0x144] sm:$0xf]
  %v115 = vld [vmem:[%s0 + $0x148] sm:$0xf]
  %v116 = vld [vmem:[%s0 + $0x14c] sm:$0xf]
  %v117 = vld [vmem:[%s0 + $0x150] sm:$0xf]
  %v118 = vld [vmem:[%s0 + $0x154] sm:$0xf]
  %v119 = vld [vmem:[%s0 + $0x158] sm:$0xf]
  %v120 = vld [vmem:[%s0 + $0x15c] sm:$0xf]
  %v121 = vld [vmem:[%s0 + $0x160] sm:$0xf]
  %v122 = vld [vmem:[%s0 + $0x164] sm:$0xf]
  %v123 = vld [vmem:[%s0 + $0x168] sm:$0xf]
  %v124 = vld [vmem:[%s0 + $0x16c] sm:$0xf]
  %v125 = vld [vmem:[%s0 + $0x170] sm:$0xf]
  %v126 = vld [vmem:[%s0 + $0x174] sm:$0xf]
  %v127 = vld [vmem:[%s0 + $0x178] sm:$0xf]
  %v128 = vld [vmem:[%s0 + $0x17c] sm:$0xf]
  %v129 = vld [vmem:[%s0 + $0x180] sm:$0xf]
  %v130 = vld [vmem:[%s0 + $0x184] sm:$0xf]
  %v131 = vld [vmem:[%s0 + $0x188] sm:$0xf]
  %v132 = vld [vmem:[%s0 + $0x18c] sm:$0xf]
  %v133 = vld [vmem:[%s1] sm:$0xf]
  %v134 = vld [vmem:[%s1 + $0x4] sm:$0xf]
  %v135 = vld [vmem:[%s1 + $0x8] sm:$0xf]
  %v136 = vld [vmem:[%s1 + $0xc] sm:$0xf]
  %v137 = vld [vmem:[%s1 + $0x10] sm:$0xf]
  %v238 = vunpack.c.l.b16 %v33
  %v239 = vunpack.c.l.b16 %v34
  %v240 = vunpack.c.l.b16 %v35
  %v241 = vunpack.c.l.b16 %v36
  %v242 = vunpack.c.l.b16 %v37
  %v243 = vunpack.c.l.b16 %v38
  %v244 = vunpack.c.l.b16 %v39
  %v245 = vunpack.c.l.b16 %v40
  %v246 = vunpack.c.l.b16 %v41
  %v247 = vunpack.c.l.b16 %v42
  %v248 = vunpack.c.l.b16 %v43
  %v249 = vunpack.c.l.b16 %v44
  %v250 = vunpack.c.l.b16 %v45
  %v251 = vunpack.c.l.b16 %v46
  %v252 = vunpack.c.l.b16 %v47
  %v253 = vunpack.c.l.b16 %v48
  %v254 = vunpack.c.l.b16 %v49
  %v255 = vunpack.c.l.b16 %v50
  %v256 = vunpack.c.l.b16 %v51
  %v257 = vunpack.c.l.b16 %v52
  %v258 = vunpack.c.l.b16 %v53
  %v259 = vunpack.c.l.b16 %v54
  %v260 = vunpack.c.l.b16 %v55
  %v261 = vunpack.c.l.b16 %v56
  %v262 = vunpack.c.l.b16 %v57
  %v263 = vunpack.c.l.b16 %v58
  %v264 = vunpack.c.l.b16 %v59
  %v265 = vunpack.c.l.b16 %v60
  %v266 = vunpack.c.l.b16 %v61
  %v267 = vunpack.c.l.b16 %v62
  %v268 = vunpack.c.l.b16 %v63
  %v269 = vunpack.c.l.b16 %v64
  %v270 = vunpack.c.l.b16 %v65
  %v271 = vunpack.c.l.b16 %v66
  %v272 = vunpack.c.l.b16 %v67
  %v273 = vunpack.c.l.b16 %v68
  %v274 = vunpack.c.l.b16 %v69
  %v275 = vunpack.c.l.b16 %v70
  %v276 = vunpack.c.l.b16 %v71
  %v277 = vunpack.c.l.b16 %v72
  %v278 = vunpack.c.l.b16 %v73
  %v279 = vunpack.c.l.b16 %v74
  %v280 = vunpack.c.l.b16 %v75
  %v281 = vunpack.c.l.b16 %v76
  %v282 = vunpack.c.l.b16 %v77
  %v283 = vunpack.c.l.b16 %v78
  %v284 = vunpack.c.l.b16 %v79
  %v285 = vunpack.c.l.b16 %v80
  %v286 = vunpack.c.l.b16 %v81
  %v287 = vunpack.c.l.b16 %v82
  %v288 = vunpack.c.l.b16 %v83
  %v289 = vunpack.c.l.b16 %v84
  %v290 = vunpack.c.l.b16 %v85
  %v291 = vunpack.c.l.b16 %v86
  %v292 = vunpack.c.l.b16 %v87
  %v293 = vunpack.c.l.b16 %v88
  %v294 = vunpack.c.l.b16 %v89
  %v295 = vunpack.c.l.b16 %v90
  %v296 = vunpack.c.l.b16 %v91
  %v297 = vunpack.c.l.b16 %v92
  %v298 = vunpack.c.l.b16 %v93
  %v299 = vunpack.c.l.b16 %v94
  %v300 = vunpack.c.l.b16 %v95
  %v301 = vunpack.c.l.b16 %v96
  %v302 = vunpack.c.l.b16 %v97
  %v303 = vunpack.c.l.b16 %v98
  %v304 = vunpack.c.l.b16 %v99
  %v305 = vunpack.c.l.b16 %v100
  %v306 = vunpack.c.l.b16 %v101
  %v307 = vunpack.c.l.b16 %v102
  %v308 = vunpack.c.l.b16 %v103
  %v309 = vunpack.c.l.b16 %v104
  %v310 = vunpack.c.l.b16 %v105
  %v311 = vunpack.c.l.b16 %v106
  %v312 = vunpack.c.l.b16 %v107
  %v313 = vunpack.c.l.b16 %v108
  %v314 = vunpack.c.l.b16 %v109
  %v315 = vunpack.c.l.b16 %v110
  %v316 = vunpack.c.l.b16 %v111
  %v317 = vunpack.c.l.b16 %v112
  %v318 = vunpack.c.l.b16 %v113
  %v319 = vunpack.c.l.b16 %v114
  %v320 = vunpack.c.l.b16 %v115
  %v321 = vunpack.c.l.b16 %v116
  %v322 = vunpack.c.l.b16 %v117
  %v323 = vunpack.c.l.b16 %v118
  %v324 = vunpack.c.l.b16 %v119
  %v325 = vunpack.c.l.b16 %v120
  %v326 = vunpack.c.l.b16 %v121
  %v327 = vunpack.c.l.b16 %v122
  %v328 = vunpack.c.l.b16 %v123
  %v329 = vunpack.c.l.b16 %v124
  %v330 = vunpack.c.l.b16 %v125
  %v331 = vunpack.c.l.b16 %v126
  %v332 = vunpack.c.l.b16 %v127
  %v333 = vunpack.c.l.b16 %v128
  %v334 = vunpack.c.l.b16 %v129
  %v335 = vunpack.c.l.b16 %v130
  %v336 = vunpack.c.l.b16 %v131
  %v337 = vunpack.c.l.b16 %v132
  %v338 = vpack.c.b16 %v239, %v238
  %v339 = vpack.c.b16 %v241, %v240
  %v340 = vpack.c.b16 %v243, %v242
  %v341 = vpack.c.b16 %v245, %v244
  %v342 = vpack.c.b16 %v247, %v246
  %v343 = vpack.c.b16 %v249, %v248
  %v344 = vpack.c.b16 %v251, %v250
  %v345 = vpack.c.b16 %v253, %v252
  %v346 = vpack.c.b16 %v255, %v254
  %v347 = vpack.c.b16 %v257, %v256
  %v348 = vpack.c.b16 %v259, %v258
  %v349 = vpack.c.b16 %v261, %v260
  %v350 = vpack.c.b16 %v263, %v262
  %v351 = vpack.c.b16 %v265, %v264
  %v352 = vpack.c.b16 %v267, %v266
  %v353 = vpack.c.b16 %v269, %v268
  %v354 = vpack.c.b16 %v271, %v270
  %v355 = vpack.c.b16 %v273, %v272
  %v356 = vpack.c.b16 %v275, %v274
  %v357 = vpack.c.b16 %v277, %v276
  %v358 = vpack.c.b16 %v279, %v278
  %v359 = vpack.c.b16 %v281, %v280
  %v360 = vpack.c.b16 %v283, %v282
  %v361 = vpack.c.b16 %v285, %v284
  %v362 = vpack.c.b16 %v287, %v286
  %v363 = vpack.c.b16 %v289, %v288
  %v364 = vpack.c.b16 %v291, %v290
  %v365 = vpack.c.b16 %v293, %v292
  %v366 = vpack.c.b16 %v295, %v294
  %v367 = vpack.c.b16 %v297, %v296
  %v368 = vpack.c.b16 %v299, %v298
  %v369 = vpack.c.b16 %v301, %v300
  %v370 = vpack.c.b16 %v303, %v302
  %v371 = vpack.c.b16 %v305, %v304
  %v372 = vpack.c.b16 %v307, %v306
  %v373 = vpack.c.b16 %v309, %v308
  %v374 = vpack.c.b16 %v311, %v310
  %v375 = vpack.c.b16 %v313, %v312
  %v376 = vpack.c.b16 %v315, %v314
  %v377 = vpack.c.b16 %v317, %v316
  %v378 = vpack.c.b16 %v319, %v318
  %v379 = vpack.c.b16 %v321, %v320
  %v380 = vpack.c.b16 %v323, %v322
  %v381 = vpack.c.b16 %v325, %v324
  %v382 = vpack.c.b16 %v327, %v326
  %v383 = vpack.c.b16 %v329, %v328
  %v384 = vpack.c.b16 %v331, %v330
  %v385 = vpack.c.b16 %v333, %v332
  %v386 = vpack.c.b16 %v335, %v334
  %v387 = vpack.c.b16 %v337, %v336
  %v393 = vunpack.c.l.b16 %v133
  %v394 = vunpack.c.l.b16 %v134
  %v395 = vunpack.c.l.b16 %v135
  %v396 = vunpack.c.l.b16 %v136
  %v397 = vunpack.c.l.b16 %v137
  %v398 = vpack.c.b16 %v394, %v393
  %v399 = vpack.c.b16 %v396, %v395
  %v400 = vpack.c.b16 %v397, %v397
  %vm403 = vcmask 326656
  %v405 = vsel %vm403, %v338, 0
  %v408 = vsel %vm403, %v339, 0
  %v411 = vsel %vm403, %v340, 0
  %v414 = vsel %vm403, %v341, 0
  %v417 = vsel %vm403, %v342, 0
  %v420 = vsel %vm403, %v343, 0
  %v423 = vsel %vm403, %v344, 0
  %v426 = vsel %vm403, %v345, 0
  %v429 = vsel %vm403, %v346, 0
  %v432 = vsel %vm403, %v347, 0
  %v435 = vsel %vm403, %v348, 0
  %v438 = vsel %vm403, %v349, 0
  %v441 = vsel %vm403, %v350, 0
  %v444 = vsel %vm403, %v351, 0
  %v447 = vsel %vm403, %v352, 0
  %v450 = vsel %vm403, %v353, 0
  %v453 = vsel %vm403, %v354, 0
  %v456 = vsel %vm403, %v355, 0
  %v459 = vsel %vm403, %v356, 0
  %v462 = vsel %vm403, %v357, 0
  %v465 = vsel %vm403, %v358, 0
  %v468 = vsel %vm403, %v359, 0
  %v471 = vsel %vm403, %v360, 0
  %v474 = vsel %vm403, %v361, 0
  %v477 = vsel %vm403, %v362, 0
  %v480 = vsel %vm403, %v363, 0
  %v483 = vsel %vm403, %v364, 0
  %v486 = vsel %vm403, %v365, 0
  %v489 = vsel %vm403, %v366, 0
  %v492 = vsel %vm403, %v367, 0
  %v495 = vsel %vm403, %v368, 0
  %v498 = vsel %vm403, %v369, 0
  %v501 = vsel %vm403, %v370, 0
  %v504 = vsel %vm403, %v371, 0
  %v507 = vsel %vm403, %v372, 0
  %v510 = vsel %vm403, %v373, 0
  %v513 = vsel %vm403, %v374, 0
  %v516 = vsel %vm403, %v375, 0
  %v519 = vsel %vm403, %v376, 0
  %v522 = vsel %vm403, %v377, 0
  %v525 = vsel %vm403, %v378, 0
  %v528 = vsel %vm403, %v379, 0
  %v531 = vsel %vm403, %v380, 0
  %v534 = vsel %vm403, %v381, 0
  %v537 = vsel %vm403, %v382, 0
  %v540 = vsel %vm403, %v383, 0
  %v543 = vsel %vm403, %v384, 0
  %v546 = vsel %vm403, %v385, 0
  %v549 = vsel %vm403, %v386, 0
  %v552 = vsel %vm403, %v387, 0
  %vm554 = vcmask 1043456
  %v556 = vsel %vm554, %v400, 0
  %558 = vmatpush.bf16.msra.mxu0 0
  %559 = vmatpush.bf16.msra.mxu0 0
  %560 = vmatpush.bf16.msra.mxu0 0
  %561 = vmatpush.bf16.msra.mxu0 0
  %562 = vmatpush.bf16.msra.mxu0 0
  %563 = vmatpush.bf16.msra.mxu0 %v556
  %564 = vmatpush.bf16.msra.mxu0 %v399
  %565 = vmatpush.bf16.msra.mxu0 %v398
  %566 = vmatmul.bf16.gmra.mxu0 %v405
  %v567 = vpop.f32.mrf.mxu0
  %v568 = vadd.f32 0.0, %v567
  %v569 = vpop.f32.mrf.mxu0
  %v570 = vadd.f32 0.0, %v569
  %571 = vmatmul.bf16.gmra.mxu0 %v408
  %v572 = vpop.f32.mrf.mxu0
  %v573 = vadd.f32 0.0, %v572
  %v574 = vpop.f32.mrf.mxu0
  %v575 = vadd.f32 0.0, %v574
  %576 = vmatmul.bf16.gmra.mxu0 %v411
  %v577 = vpop.f32.mrf.mxu0
  %v578 = vadd.f32 0.0, %v577
  %v579 = vpop.f32.mrf.mxu0
  %v580 = vadd.f32 0.0, %v579
  %581 = vmatmul.bf16.gmra.mxu0 %v414
  %v582 = vpop.f32.mrf.mxu0
  %v583 = vadd.f32 0.0, %v582
  %v584 = vpop.f32.mrf.mxu0
  %v585 = vadd.f32 0.0, %v584
  %586 = vmatmul.bf16.gmra.mxu0 %v417
  %v587 = vpop.f32.mrf.mxu0
  %v588 = vadd.f32 0.0, %v587
  %v589 = vpop.f32.mrf.mxu0
  %v590 = vadd.f32 0.0, %v589
  %591 = vmatmul.bf16.gmra.mxu0 %v420
  %v592 = vpop.f32.mrf.mxu0
  %v593 = vadd.f32 0.0, %v592
  %v594 = vpop.f32.mrf.mxu0
  %v595 = vadd.f32 0.0, %v594
  %596 = vmatmul.bf16.gmra.mxu0 %v423
  %v597 = vpop.f32.mrf.mxu0
  %v598 = vadd.f32 0.0, %v597
  %v599 = vpop.f32.mrf.mxu0
  %v600 = vadd.f32 0.0, %v599
  %601 = vmatmul.bf16.gmra.mxu0 %v426
  %v602 = vpop.f32.mrf.mxu0
  %v603 = vadd.f32 0.0, %v602
  %v604 = vpop.f32.mrf.mxu0
  %v605 = vadd.f32 0.0, %v604
  %606 = vmatmul.bf16.gmra.mxu0 %v429
  %v607 = vpop.f32.mrf.mxu0
  %v608 = vadd.f32 0.0, %v607
  %v609 = vpop.f32.mrf.mxu0
  %v610 = vadd.f32 0.0, %v609
  %611 = vmatmul.bf16.gmra.mxu0 %v432
  %v612 = vpop.f32.mrf.mxu0
  %v613 = vadd.f32 0.0, %v612
  %v614 = vpop.f32.mrf.mxu0
  %v615 = vadd.f32 0.0, %v614
  %616 = vmatmul.bf16.gmra.mxu0 %v435
  %v617 = vpop.f32.mrf.mxu0
  %v618 = vadd.f32 0.0, %v617
  %v619 = vpop.f32.mrf.mxu0
  %v620 = vadd.f32 0.0, %v619
  %621 = vmatmul.bf16.gmra.mxu0 %v438
  %v622 = vpop.f32.mrf.mxu0
  %v623 = vadd.f32 0.0, %v622
  %v624 = vpop.f32.mrf.mxu0
  %v625 = vadd.f32 0.0, %v624
  %626 = vmatmul.bf16.gmra.mxu0 %v441
  %v627 = vpop.f32.mrf.mxu0
  %v628 = vadd.f32 0.0, %v627
  %v629 = vpop.f32.mrf.mxu0
  %v630 = vadd.f32 0.0, %v629
  %631 = vmatmul.bf16.gmra.mxu0 %v444
  %v632 = vpop.f32.mrf.mxu0
  %v633 = vadd.f32 0.0, %v632
  %v634 = vpop.f32.mrf.mxu0
  %v635 = vadd.f32 0.0, %v634
  %636 = vmatmul.bf16.gmra.mxu0 %v447
  %v637 = vpop.f32.mrf.mxu0
  %v638 = vadd.f32 0.0, %v637
  %v639 = vpop.f32.mrf.mxu0
  %v640 = vadd.f32 0.0, %v639
  %641 = vmatmul.bf16.gmra.mxu0 %v450
  %v642 = vpop.f32.mrf.mxu0
  %v643 = vadd.f32 0.0, %v642
  %v644 = vpop.f32.mrf.mxu0
  %v645 = vadd.f32 0.0, %v644
  %646 = vmatmul.bf16.gmra.mxu0 %v453
  %v647 = vpop.f32.mrf.mxu0
  %v648 = vadd.f32 0.0, %v647
  %v649 = vpop.f32.mrf.mxu0
  %v650 = vadd.f32 0.0, %v649
  %651 = vmatmul.bf16.gmra.mxu0 %v456
  %v652 = vpop.f32.mrf.mxu0
  %v653 = vadd.f32 0.0, %v652
  %v654 = vpop.f32.mrf.mxu0
  %v655 = vadd.f32 0.0, %v654
  %656 = vmatmul.bf16.gmra.mxu0 %v459
  %v657 = vpop.f32.mrf.mxu0
  %v658 = vadd.f32 0.0, %v657
  %v659 = vpop.f32.mrf.mxu0
  %v660 = vadd.f32 0.0, %v659
  %661 = vmatmul.bf16.gmra.mxu0 %v462
  %v662 = vpop.f32.mrf.mxu0
  %v663 = vadd.f32 0.0, %v662
  %v664 = vpop.f32.mrf.mxu0
  %v665 = vadd.f32 0.0, %v664
  %666 = vmatmul.bf16.gmra.mxu0 %v465
  %v667 = vpop.f32.mrf.mxu0
  %v668 = vadd.f32 0.0, %v667
  %v669 = vpop.f32.mrf.mxu0
  %v670 = vadd.f32 0.0, %v669
  %671 = vmatmul.bf16.gmra.mxu0 %v468
  %v672 = vpop.f32.mrf.mxu0
  %v673 = vadd.f32 0.0, %v672
  %v674 = vpop.f32.mrf.mxu0
  %v675 = vadd.f32 0.0, %v674
  %676 = vmatmul.bf16.gmra.mxu0 %v471
  %v677 = vpop.f32.mrf.mxu0
  %v678 = vadd.f32 0.0, %v677
  %v679 = vpop.f32.mrf.mxu0
  %v680 = vadd.f32 0.0, %v679
  %681 = vmatmul.bf16.gmra.mxu0 %v474
  %v682 = vpop.f32.mrf.mxu0
  %v683 = vadd.f32 0.0, %v682
  %v684 = vpop.f32.mrf.mxu0
  %v685 = vadd.f32 0.0, %v684
  %686 = vmatmul.bf16.gmra.mxu0 %v477
  %v687 = vpop.f32.mrf.mxu0
  %v688 = vadd.f32 0.0, %v687
  %v689 = vpop.f32.mrf.mxu0
  %v690 = vadd.f32 0.0, %v689
  %691 = vmatmul.bf16.gmra.mxu0 %v480
  %v692 = vpop.f32.mrf.mxu0
  %v693 = vadd.f32 0.0, %v692
  %v694 = vpop.f32.mrf.mxu0
  %v695 = vadd.f32 0.0, %v694
  %696 = vmatmul.bf16.gmra.mxu0 %v483
  %v697 = vpop.f32.mrf.mxu0
  %v698 = vadd.f32 0.0, %v697
  %v699 = vpop.f32.mrf.mxu0
  %v700 = vadd.f32 0.0, %v699
  %701 = vmatmul.bf16.gmra.mxu0 %v486
  %v702 = vpop.f32.mrf.mxu0
  %v703 = vadd.f32 0.0, %v702
  %v704 = vpop.f32.mrf.mxu0
  %v705 = vadd.f32 0.0, %v704
  %706 = vmatmul.bf16.gmra.mxu0 %v489
  %v707 = vpop.f32.mrf.mxu0
  %v708 = vadd.f32 0.0, %v707
  %v709 = vpop.f32.mrf.mxu0
  %v710 = vadd.f32 0.0, %v709
  %711 = vmatmul.bf16.gmra.mxu0 %v492
  %v712 = vpop.f32.mrf.mxu0
  %v713 = vadd.f32 0.0, %v712
  %v714 = vpop.f32.mrf.mxu0
  %v715 = vadd.f32 0.0, %v714
  %716 = vmatmul.bf16.gmra.mxu0 %v495
  %v717 = vpop.f32.mrf.mxu0
  %v718 = vadd.f32 0.0, %v717
  %v719 = vpop.f32.mrf.mxu0
  %v720 = vadd.f32 0.0, %v719
  %721 = vmatmul.bf16.gmra.mxu0 %v498
  %v722 = vpop.f32.mrf.mxu0
  %v723 = vadd.f32 0.0, %v722
  %v724 = vpop.f32.mrf.mxu0
  %v725 = vadd.f32 0.0, %v724
  %726 = vmatmul.bf16.gmra.mxu0 %v501
  %v727 = vpop.f32.mrf.mxu0
  %v728 = vadd.f32 0.0, %v727
  %v729 = vpop.f32.mrf.mxu0
  %v730 = vadd.f32 0.0, %v729
  %731 = vmatmul.bf16.gmra.mxu0 %v504
  %v732 = vpop.f32.mrf.mxu0
  %v733 = vadd.f32 0.0, %v732
  %v734 = vpop.f32.mrf.mxu0
  %v735 = vadd.f32 0.0, %v734
  %736 = vmatmul.bf16.gmra.mxu0 %v507
  %v737 = vpop.f32.mrf.mxu0
  %v738 = vadd.f32 0.0, %v737
  %v739 = vpop.f32.mrf.mxu0
  %v740 = vadd.f32 0.0, %v739
  %741 = vmatmul.bf16.gmra.mxu0 %v510
  %v742 = vpop.f32.mrf.mxu0
  %v743 = vadd.f32 0.0, %v742
  %v744 = vpop.f32.mrf.mxu0
  %v745 = vadd.f32 0.0, %v744
  %746 = vmatmul.bf16.gmra.mxu0 %v513
  %v747 = vpop.f32.mrf.mxu0
  %v748 = vadd.f32 0.0, %v747
  %v749 = vpop.f32.mrf.mxu0
  %v750 = vadd.f32 0.0, %v749
  %751 = vmatmul.bf16.gmra.mxu0 %v516
  %v752 = vpop.f32.mrf.mxu0
  %v753 = vadd.f32 0.0, %v752
  %v754 = vpop.f32.mrf.mxu0
  %v755 = vadd.f32 0.0, %v754
  %756 = vmatmul.bf16.gmra.mxu0 %v519
  %v757 = vpop.f32.mrf.mxu0
  %v758 = vadd.f32 0.0, %v757
  %v759 = vpop.f32.mrf.mxu0
  %v760 = vadd.f32 0.0, %v759
  %761 = vmatmul.bf16.gmra.mxu0 %v522
  %v762 = vpop.f32.mrf.mxu0
  %v763 = vadd.f32 0.0, %v762
  %v764 = vpop.f32.mrf.mxu0
  %v765 = vadd.f32 0.0, %v764
  %766 = vmatmul.bf16.gmra.mxu0 %v525
  %v767 = vpop.f32.mrf.mxu0
  %v768 = vadd.f32 0.0, %v767
  %v769 = vpop.f32.mrf.mxu0
  %v770 = vadd.f32 0.0, %v769
  %771 = vmatmul.bf16.gmra.mxu0 %v528
  %v772 = vpop.f32.mrf.mxu0
  %v773 = vadd.f32 0.0, %v772
  %v774 = vpop.f32.mrf.mxu0
  %v775 = vadd.f32 0.0, %v774
  %776 = vmatmul.bf16.gmra.mxu0 %v531
  %v777 = vpop.f32.mrf.mxu0
  %v778 = vadd.f32 0.0, %v777
  %v779 = vpop.f32.mrf.mxu0
  %v780 = vadd.f32 0.0, %v779
  %781 = vmatmul.bf16.gmra.mxu0 %v534
  %v782 = vpop.f32.mrf.mxu0
  %v783 = vadd.f32 0.0, %v782
  %v784 = vpop.f32.mrf.mxu0
  %v785 = vadd.f32 0.0, %v784
  %786 = vmatmul.bf16.gmra.mxu0 %v537
  %v787 = vpop.f32.mrf.mxu0
  %v788 = vadd.f32 0.0, %v787
  %v789 = vpop.f32.mrf.mxu0
  %v790 = vadd.f32 0.0, %v789
  %791 = vmatmul.bf16.gmra.mxu0 %v540
  %v792 = vpop.f32.mrf.mxu0
  %v793 = vadd.f32 0.0, %v792
  %v794 = vpop.f32.mrf.mxu0
  %v795 = vadd.f32 0.0, %v794
  %796 = vmatmul.bf16.gmra.mxu0 %v543
  %v797 = vpop.f32.mrf.mxu0
  %v798 = vadd.f32 0.0, %v797
  %v799 = vpop.f32.mrf.mxu0
  %v800 = vadd.f32 0.0, %v799
  %801 = vmatmul.bf16.gmra.mxu0 %v546
  %v802 = vpop.f32.mrf.mxu0
  %v803 = vadd.f32 0.0, %v802
  %v804 = vpop.f32.mrf.mxu0
  %v805 = vadd.f32 0.0, %v804
  %806 = vmatmul.bf16.gmra.mxu0 %v549
  %v807 = vpop.f32.mrf.mxu0
  %v808 = vadd.f32 0.0, %v807
  %v809 = vpop.f32.mrf.mxu0
  %v810 = vadd.f32 0.0, %v809
  %811 = vmatmul.bf16.gmra.mxu0 %v552
  %v812 = vpop.f32.mrf.mxu0
  %v813 = vadd.f32 0.0, %v812
  %v814 = vpop.f32.mrf.mxu0
  %v815 = vadd.f32 0.0, %v814
  %816 = vdwg.mxu0
  %818 = vrot.lane.b32.xlu0 %v570, 112
  %v819 = vpop.permute.xlu0 %818
  %v821 = vadd.f32 %v568, %v819
  %823 = vrot.lane.b32.xlu0 %v821, 112
  %v824 = vpop.permute.xlu0 %823
  %vm826 = vcmask 130048
  %827 = vst.msk [vmem:[#allocation2] sm:$0xff] %vm826, %v824
  %925 = vrot.lane.b32.xlu0 %v573, 112
  %v926 = vpop.permute.xlu0 %925
  %927 = vrot.lane.b32.xlu0 %v575, 112
  %v928 = vpop.permute.xlu0 %927
  %929 = vrot.lane.b32.xlu0 %v578, 112
  %v930 = vpop.permute.xlu0 %929
  %931 = vrot.lane.b32.xlu0 %v580, 112
  %v932 = vpop.permute.xlu0 %931
  %933 = vrot.lane.b32.xlu0 %v583, 112
  %v934 = vpop.permute.xlu0 %933
  %935 = vrot.lane.b32.xlu0 %v585, 112
  %v936 = vpop.permute.xlu0 %935
  %937 = vrot.lane.b32.xlu0 %v588, 112
  %v938 = vpop.permute.xlu0 %937
  %939 = vrot.lane.b32.xlu0 %v590, 112
  %v940 = vpop.permute.xlu0 %939
  %941 = vrot.lane.b32.xlu0 %v593, 112
  %v942 = vpop.permute.xlu0 %941
  %943 = vrot.lane.b32.xlu0 %v595, 112
  %v944 = vpop.permute.xlu0 %943
  %945 = vrot.lane.b32.xlu0 %v598, 112
  %v946 = vpop.permute.xlu0 %945
  %947 = vrot.lane.b32.xlu0 %v600, 112
  %v948 = vpop.permute.xlu0 %947
  %949 = vrot.lane.b32.xlu0 %v603, 112
  %v950 = vpop.permute.xlu0 %949
  %951 = vrot.lane.b32.xlu0 %v605, 112
  %v952 = vpop.permute.xlu0 %951
  %953 = vrot.lane.b32.xlu0 %v608, 112
  %v954 = vpop.permute.xlu0 %953
  %955 = vrot.lane.b32.xlu0 %v610, 112
  %v956 = vpop.permute.xlu0 %955
  %957 = vrot.lane.b32.xlu0 %v613, 112
  %v958 = vpop.permute.xlu0 %957
  %959 = vrot.lane.b32.xlu0 %v615, 112
  %v960 = vpop.permute.xlu0 %959
  %961 = vrot.lane.b32.xlu0 %v618, 112
  %v962 = vpop.permute.xlu0 %961
  %963 = vrot.lane.b32.xlu0 %v620, 112
  %v964 = vpop.permute.xlu0 %963
  %965 = vrot.lane.b32.xlu0 %v623, 112
  %v966 = vpop.permute.xlu0 %965
  %967 = vrot.lane.b32.xlu0 %v625, 112
  %v968 = vpop.permute.xlu0 %967
  %969 = vrot.lane.b32.xlu0 %v628, 112
  %v970 = vpop.permute.xlu0 %969
  %971 = vrot.lane.b32.xlu0 %v630, 112
  %v972 = vpop.permute.xlu0 %971
  %973 = vrot.lane.b32.xlu0 %v633, 112
  %v974 = vpop.permute.xlu0 %973
  %975 = vrot.lane.b32.xlu0 %v635, 112
  %v976 = vpop.permute.xlu0 %975
  %977 = vrot.lane.b32.xlu0 %v638, 112
  %v978 = vpop.permute.xlu0 %977
  %979 = vrot.lane.b32.xlu0 %v640, 112
  %v980 = vpop.permute.xlu0 %979
  %981 = vrot.lane.b32.xlu0 %v643, 112
  %v982 = vpop.permute.xlu0 %981
  %983 = vrot.lane.b32.xlu0 %v645, 112
  %v984 = vpop.permute.xlu0 %983
  %985 = vrot.lane.b32.xlu0 %v648, 112
  %v986 = vpop.permute.xlu0 %985
  %987 = vrot.lane.b32.xlu0 %v650, 112
  %v988 = vpop.permute.xlu0 %987
  %989 = vrot.lane.b32.xlu0 %v653, 112
  %v990 = vpop.permute.xlu0 %989
  %991 = vrot.lane.b32.xlu0 %v655, 112
  %v992 = vpop.permute.xlu0 %991
  %993 = vrot.lane.b32.xlu0 %v658, 112
  %v994 = vpop.permute.xlu0 %993
  %995 = vrot.lane.b32.xlu0 %v660, 112
  %v996 = vpop.permute.xlu0 %995
  %997 = vrot.lane.b32.xlu0 %v663, 112
  %v998 = vpop.permute.xlu0 %997
  %999 = vrot.lane.b32.xlu0 %v665, 112
  %v1000 = vpop.permute.xlu0 %999
  %1001 = vrot.lane.b32.xlu0 %v668, 112
  %v1002 = vpop.permute.xlu0 %1001
  %1003 = vrot.lane.b32.xlu0 %v670, 112
  %v1004 = vpop.permute.xlu0 %1003
  %1005 = vrot.lane.b32.xlu0 %v673, 112
  %v1006 = vpop.permute.xlu0 %1005
  %1007 = vrot.lane.b32.xlu0 %v675, 112
  %v1008 = vpop.permute.xlu0 %1007
  %1009 = vrot.lane.b32.xlu0 %v678, 112
  %v1010 = vpop.permute.xlu0 %1009
  %1011 = vrot.lane.b32.xlu0 %v680, 112
  %v1012 = vpop.permute.xlu0 %1011
  %1013 = vrot.lane.b32.xlu0 %v683, 112
  %v1014 = vpop.permute.xlu0 %1013
  %1015 = vrot.lane.b32.xlu0 %v685, 112
  %v1016 = vpop.permute.xlu0 %1015
  %1017 = vrot.lane.b32.xlu0 %v688, 112
  %v1018 = vpop.permute.xlu0 %1017
  %1019 = vrot.lane.b32.xlu0 %v690, 112
  %v1020 = vpop.permute.xlu0 %1019
  %1021 = vrot.lane.b32.xlu0 %v693, 112
  %v1022 = vpop.permute.xlu0 %1021
  %1023 = vrot.lane.b32.xlu0 %v695, 112
  %v1024 = vpop.permute.xlu0 %1023
  %1025 = vrot.lane.b32.xlu0 %v698, 112
  %v1026 = vpop.permute.xlu0 %1025
  %1027 = vrot.lane.b32.xlu0 %v700, 112
  %v1028 = vpop.permute.xlu0 %1027
  %1029 = vrot.lane.b32.xlu0 %v703, 112
  %v1030 = vpop.permute.xlu0 %1029
  %1031 = vrot.lane.b32.xlu0 %v705, 112
  %v1032 = vpop.permute.xlu0 %1031
  %1033 = vrot.lane.b32.xlu0 %v708, 112
  %v1034 = vpop.permute.xlu0 %1033
  %1035 = vrot.lane.b32.xlu0 %v710, 112
  %v1036 = vpop.permute.xlu0 %1035
  %1037 = vrot.lane.b32.xlu0 %v713, 112
  %v1038 = vpop.permute.xlu0 %1037
  %1039 = vrot.lane.b32.xlu0 %v715, 112
  %v1040 = vpop.permute.xlu0 %1039
  %1041 = vrot.lane.b32.xlu0 %v718, 112
  %v1042 = vpop.permute.xlu0 %1041
  %1043 = vrot.lane.b32.xlu0 %v720, 112
  %v1044 = vpop.permute.xlu0 %1043
  %1045 = vrot.lane.b32.xlu0 %v723, 112
  %v1046 = vpop.permute.xlu0 %1045
  %1047 = vrot.lane.b32.xlu0 %v725, 112
  %v1048 = vpop.permute.xlu0 %1047
  %1049 = vrot.lane.b32.xlu0 %v728, 112
  %v1050 = vpop.permute.xlu0 %1049
  %1051 = vrot.lane.b32.xlu0 %v730, 112
  %v1052 = vpop.permute.xlu0 %1051
  %1053 = vrot.lane.b32.xlu0 %v733, 112
  %v1054 = vpop.permute.xlu0 %1053
  %1055 = vrot.lane.b32.xlu0 %v735, 112
  %v1056 = vpop.permute.xlu0 %1055
  %1057 = vrot.lane.b32.xlu0 %v738, 112
  %v1058 = vpop.permute.xlu0 %1057
  %1059 = vrot.lane.b32.xlu0 %v740, 112
  %v1060 = vpop.permute.xlu0 %1059
  %1061 = vrot.lane.b32.xlu0 %v743, 112
  %v1062 = vpop.permute.xlu0 %1061
  %1063 = vrot.lane.b32.xlu0 %v745, 112
  %v1064 = vpop.permute.xlu0 %1063
  %1065 = vrot.lane.b32.xlu0 %v748, 112
  %v1066 = vpop.permute.xlu0 %1065
  %1067 = vrot.lane.b32.xlu0 %v750, 112
  %v1068 = vpop.permute.xlu0 %1067
  %1069 = vrot.lane.b32.xlu0 %v753, 112
  %v1070 = vpop.permute.xlu0 %1069
  %1071 = vrot.lane.b32.xlu0 %v755, 112
  %v1072 = vpop.permute.xlu0 %1071
  %1073 = vrot.lane.b32.xlu0 %v758, 112
  %v1074 = vpop.permute.xlu0 %1073
  %1075 = vrot.lane.b32.xlu0 %v760, 112
  %v1076 = vpop.permute.xlu0 %1075
  %1077 = vrot.lane.b32.xlu0 %v763, 112
  %v1078 = vpop.permute.xlu0 %1077
  %1079 = vrot.lane.b32.xlu0 %v765, 112
  %v1080 = vpop.permute.xlu0 %1079
  %1081 = vrot.lane.b32.xlu0 %v768, 112
  %v1082 = vpop.permute.xlu0 %1081
  %1083 = vrot.lane.b32.xlu0 %v770, 112
  %v1084 = vpop.permute.xlu0 %1083
  %1085 = vrot.lane.b32.xlu0 %v773, 112
  %v1086 = vpop.permute.xlu0 %1085
  %1087 = vrot.lane.b32.xlu0 %v775, 112
  %v1088 = vpop.permute.xlu0 %1087
  %1089 = vrot.lane.b32.xlu0 %v778, 112
  %v1090 = vpop.permute.xlu0 %1089
  %1091 = vrot.lane.b32.xlu0 %v780, 112
  %v1092 = vpop.permute.xlu0 %1091
  %1093 = vrot.lane.b32.xlu0 %v783, 112
  %v1094 = vpop.permute.xlu0 %1093
  %1095 = vrot.lane.b32.xlu0 %v785, 112
  %v1096 = vpop.permute.xlu0 %1095
  %1097 = vrot.lane.b32.xlu0 %v788, 112
  %v1098 = vpop.permute.xlu0 %1097
  %1099 = vrot.lane.b32.xlu0 %v790, 112
  %v1100 = vpop.permute.xlu0 %1099
  %1101 = vrot.lane.b32.xlu0 %v793, 112
  %v1102 = vpop.permute.xlu0 %1101
  %1103 = vrot.lane.b32.xlu0 %v795, 112
  %v1104 = vpop.permute.xlu0 %1103
  %1105 = vrot.lane.b32.xlu0 %v798, 112
  %v1106 = vpop.permute.xlu0 %1105
  %1107 = vrot.lane.b32.xlu0 %v800, 112
  %v1108 = vpop.permute.xlu0 %1107
  %1109 = vrot.lane.b32.xlu0 %v803, 112
  %v1110 = vpop.permute.xlu0 %1109
  %1111 = vrot.lane.b32.xlu0 %v805, 112
  %v1112 = vpop.permute.xlu0 %1111
  %1113 = vrot.lane.b32.xlu0 %v808, 112
  %v1114 = vpop.permute.xlu0 %1113
  %1115 = vrot.lane.b32.xlu0 %v810, 112
  %v1116 = vpop.permute.xlu0 %1115
  %1117 = vrot.lane.b32.xlu0 %v813, 112
  %v1118 = vpop.permute.xlu0 %1117
  %v1216 = vadd.f32 %v570, %v926
  %v1217 = vadd.f32 %v573, %v928
  %v1218 = vadd.f32 %v575, %v930
  %v1219 = vadd.f32 %v578, %v932
  %v1220 = vadd.f32 %v580, %v934
  %v1221 = vadd.f32 %v583, %v936
  %v1222 = vadd.f32 %v585, %v938
  %v1223 = vadd.f32 %v588, %v940
  %v1224 = vadd.f32 %v590, %v942
  %v1225 = vadd.f32 %v593, %v944
  %v1226 = vadd.f32 %v595, %v946
  %v1227 = vadd.f32 %v598, %v948
  %v1228 = vadd.f32 %v600, %v950
  %v1229 = vadd.f32 %v603, %v952
  %v1230 = vadd.f32 %v605, %v954
  %v1231 = vadd.f32 %v608, %v956
  %v1232 = vadd.f32 %v610, %v958
  %v1233 = vadd.f32 %v613, %v960
  %v1234 = vadd.f32 %v615, %v962
  %v1235 = vadd.f32 %v618, %v964
  %v1236 = vadd.f32 %v620, %v966
  %v1237 = vadd.f32 %v623, %v968
  %v1238 = vadd.f32 %v625, %v970
  %v1239 = vadd.f32 %v628, %v972
  %v1240 = vadd.f32 %v630, %v974
  %v1241 = vadd.f32 %v633, %v976
  %v1242 = vadd.f32 %v635, %v978
  %v1243 = vadd.f32 %v638, %v980
  %v1244 = vadd.f32 %v640, %v982
  %v1245 = vadd.f32 %v643, %v984
  %v1246 = vadd.f32 %v645, %v986
  %v1247 = vadd.f32 %v648, %v988
  %v1248 = vadd.f32 %v650, %v990
  %v1249 = vadd.f32 %v653, %v992
  %v1250 = vadd.f32 %v655, %v994
  %v1251 = vadd.f32 %v658, %v996
  %v1252 = vadd.f32 %v660, %v998
  %v1253 = vadd.f32 %v663, %v1000
  %v1254 = vadd.f32 %v665, %v1002
  %v1255 = vadd.f32 %v668, %v1004
  %v1256 = vadd.f32 %v670, %v1006
  %v1257 = vadd.f32 %v673, %v1008
  %v1258 = vadd.f32 %v675, %v1010
  %v1259 = vadd.f32 %v678, %v1012
  %v1260 = vadd.f32 %v680, %v1014
  %v1261 = vadd.f32 %v683, %v1016
  %v1262 = vadd.f32 %v685, %v1018
  %v1263 = vadd.f32 %v688, %v1020
  %v1264 = vadd.f32 %v690, %v1022
  %v1265 = vadd.f32 %v693, %v1024
  %v1266 = vadd.f32 %v695, %v1026
  %v1267 = vadd.f32 %v698, %v1028
  %v1268 = vadd.f32 %v700, %v1030
  %v1269 = vadd.f32 %v703, %v1032
  %v1270 = vadd.f32 %v705, %v1034
  %v1271 = vadd.f32 %v708, %v1036
  %v1272 = vadd.f32 %v710, %v1038
  %v1273 = vadd.f32 %v713, %v1040
  %v1274 = vadd.f32 %v715, %v1042
  %v1275 = vadd.f32 %v718, %v1044
  %v1276 = vadd.f32 %v720, %v1046
  %v1277 = vadd.f32 %v723, %v1048
  %v1278 = vadd.f32 %v725, %v1050
  %v1279 = vadd.f32 %v728, %v1052
  %v1280 = vadd.f32 %v730, %v1054
  %v1281 = vadd.f32 %v733, %v1056
  %v1282 = vadd.f32 %v735, %v1058
  %v1283 = vadd.f32 %v738, %v1060
  %v1284 = vadd.f32 %v740, %v1062
  %v1285 = vadd.f32 %v743, %v1064
  %v1286 = vadd.f32 %v745, %v1066
  %v1287 = vadd.f32 %v748, %v1068
  %v1288 = vadd.f32 %v750, %v1070
  %v1289 = vadd.f32 %v753, %v1072
  %v1290 = vadd.f32 %v755, %v1074
  %v1291 = vadd.f32 %v758, %v1076
  %v1292 = vadd.f32 %v760, %v1078
  %v1293 = vadd.f32 %v763, %v1080
  %v1294 = vadd.f32 %v765, %v1082
  %v1295 = vadd.f32 %v768, %v1084
  %v1296 = vadd.f32 %v770, %v1086
  %v1297 = vadd.f32 %v773, %v1088
  %v1298 = vadd.f32 %v775, %v1090
  %v1299 = vadd.f32 %v778, %v1092
  %v1300 = vadd.f32 %v780, %v1094
  %v1301 = vadd.f32 %v783, %v1096
  %v1302 = vadd.f32 %v785, %v1098
  %v1303 = vadd.f32 %v788, %v1100
  %v1304 = vadd.f32 %v790, %v1102
  %v1305 = vadd.f32 %v793, %v1104
  %v1306 = vadd.f32 %v795, %v1106
  %v1307 = vadd.f32 %v798, %v1108
  %v1308 = vadd.f32 %v800, %v1110
  %v1309 = vadd.f32 %v803, %v1112
  %v1310 = vadd.f32 %v805, %v1114
  %v1311 = vadd.f32 %v808, %v1116
  %v1312 = vadd.f32 %v810, %v1118
  %1314 = vrot.lane.b32.xlu0 %v573, 96
  %v1315 = vpop.permute.xlu0 %1314
  %1316 = vrot.lane.b32.xlu0 %v575, 96
  %v1317 = vpop.permute.xlu0 %1316
  %1318 = vrot.lane.b32.xlu0 %v578, 96
  %v1319 = vpop.permute.xlu0 %1318
  %1320 = vrot.lane.b32.xlu0 %v580, 96
  %v1321 = vpop.permute.xlu0 %1320
  %1322 = vrot.lane.b32.xlu0 %v583, 96
  %v1323 = vpop.permute.xlu0 %1322
  %1324 = vrot.lane.b32.xlu0 %v585, 96
  %v1325 = vpop.permute.xlu0 %1324
  %1326 = vrot.lane.b32.xlu0 %v588, 96
  %v1327 = vpop.permute.xlu0 %1326
  %1328 = vrot.lane.b32.xlu0 %v590, 96
  %v1329 = vpop.permute.xlu0 %1328
  %1330 = vrot.lane.b32.xlu0 %v593, 96
  %v1331 = vpop.permute.xlu0 %1330
  %1332 = vrot.lane.b32.xlu0 %v595, 96
  %v1333 = vpop.permute.xlu0 %1332
  %1334 = vrot.lane.b32.xlu0 %v598, 96
  %v1335 = vpop.permute.xlu0 %1334
  %1336 = vrot.lane.b32.xlu0 %v600, 96
  %v1337 = vpop.permute.xlu0 %1336
  %1338 = vrot.lane.b32.xlu0 %v603, 96
  %v1339 = vpop.permute.xlu0 %1338
  %1340 = vrot.lane.b32.xlu0 %v605, 96
  %v1341 = vpop.permute.xlu0 %1340
  %1342 = vrot.lane.b32.xlu0 %v608, 96
  %v1343 = vpop.permute.xlu0 %1342
  %1344 = vrot.lane.b32.xlu0 %v610, 96
  %v1345 = vpop.permute.xlu0 %1344
  %1346 = vrot.lane.b32.xlu0 %v613, 96
  %v1347 = vpop.permute.xlu0 %1346
  %1348 = vrot.lane.b32.xlu0 %v615, 96
  %v1349 = vpop.permute.xlu0 %1348
  %1350 = vrot.lane.b32.xlu0 %v618, 96
  %v1351 = vpop.permute.xlu0 %1350
  %1352 = vrot.lane.b32.xlu0 %v620, 96
  %v1353 = vpop.permute.xlu0 %1352
  %1354 = vrot.lane.b32.xlu0 %v623, 96
  %v1355 = vpop.permute.xlu0 %1354
  %1356 = vrot.lane.b32.xlu0 %v625, 96
  %v1357 = vpop.permute.xlu0 %1356
  %1358 = vrot.lane.b32.xlu0 %v628, 96
  %v1359 = vpop.permute.xlu0 %1358
  %1360 = vrot.lane.b32.xlu0 %v630, 96
  %v1361 = vpop.permute.xlu0 %1360
  %1362 = vrot.lane.b32.xlu0 %v633, 96
  %v1363 = vpop.permute.xlu0 %1362
  %1364 = vrot.lane.b32.xlu0 %v635, 96
  %v1365 = vpop.permute.xlu0 %1364
  %1366 = vrot.lane.b32.xlu0 %v638, 96
  %v1367 = vpop.permute.xlu0 %1366
  %1368 = vrot.lane.b32.xlu0 %v640, 96
  %v1369 = vpop.permute.xlu0 %1368
  %1370 = vrot.lane.b32.xlu0 %v643, 96
  %v1371 = vpop.permute.xlu0 %1370
  %1372 = vrot.lane.b32.xlu0 %v645, 96
  %v1373 = vpop.permute.xlu0 %1372
  %1374 = vrot.lane.b32.xlu0 %v648, 96
  %v1375 = vpop.permute.xlu0 %1374
  %1376 = vrot.lane.b32.xlu0 %v650, 96
  %v1377 = vpop.permute.xlu0 %1376
  %1378 = vrot.lane.b32.xlu0 %v653, 96
  %v1379 = vpop.permute.xlu0 %1378
  %1380 = vrot.lane.b32.xlu0 %v655, 96
  %v1381 = vpop.permute.xlu0 %1380
  %1382 = vrot.lane.b32.xlu0 %v658, 96
  %v1383 = vpop.permute.xlu0 %1382
  %1384 = vrot.lane.b32.xlu0 %v660, 96
  %v1385 = vpop.permute.xlu0 %1384
  %1386 = vrot.lane.b32.xlu0 %v663, 96
  %v1387 = vpop.permute.xlu0 %1386
  %1388 = vrot.lane.b32.xlu0 %v665, 96
  %v1389 = vpop.permute.xlu0 %1388
  %1390 = vrot.lane.b32.xlu0 %v668, 96
  %v1391 = vpop.permute.xlu0 %1390
  %1392 = vrot.lane.b32.xlu0 %v670, 96
  %v1393 = vpop.permute.xlu0 %1392
  %1394 = vrot.lane.b32.xlu0 %v673, 96
  %v1395 = vpop.permute.xlu0 %1394
  %1396 = vrot.lane.b32.xlu0 %v675, 96
  %v1397 = vpop.permute.xlu0 %1396
  %1398 = vrot.lane.b32.xlu0 %v678, 96
  %v1399 = vpop.permute.xlu0 %1398
  %1400 = vrot.lane.b32.xlu0 %v680, 96
  %v1401 = vpop.permute.xlu0 %1400
  %1402 = vrot.lane.b32.xlu0 %v683, 96
  %v1403 = vpop.permute.xlu0 %1402
  %1404 = vrot.lane.b32.xlu0 %v685, 96
  %v1405 = vpop.permute.xlu0 %1404
  %1406 = vrot.lane.b32.xlu0 %v688, 96
  %v1407 = vpop.permute.xlu0 %1406
  %1408 = vrot.lane.b32.xlu0 %v690, 96
  %v1409 = vpop.permute.xlu0 %1408
  %1410 = vrot.lane.b32.xlu0 %v693, 96
  %v1411 = vpop.permute.xlu0 %1410
  %1412 = vrot.lane.b32.xlu0 %v695, 96
  %v1413 = vpop.permute.xlu0 %1412
  %1414 = vrot.lane.b32.xlu0 %v698, 96
  %v1415 = vpop.permute.xlu0 %1414
  %1416 = vrot.lane.b32.xlu0 %v700, 96
  %v1417 = vpop.permute.xlu0 %1416
  %1418 = vrot.lane.b32.xlu0 %v703, 96
  %v1419 = vpop.permute.xlu0 %1418
  %1420 = vrot.lane.b32.xlu0 %v705, 96
  %v1421 = vpop.permute.xlu0 %1420
  %1422 = vrot.lane.b32.xlu0 %v708, 96
  %v1423 = vpop.permute.xlu0 %1422
  %1424 = vrot.lane.b32.xlu0 %v710, 96
  %v1425 = vpop.permute.xlu0 %1424
  %1426 = vrot.lane.b32.xlu0 %v713, 96
  %v1427 = vpop.permute.xlu0 %1426
  %1428 = vrot.lane.b32.xlu0 %v715, 96
  %v1429 = vpop.permute.xlu0 %1428
  %1430 = vrot.lane.b32.xlu0 %v718, 96
  %v1431 = vpop.permute.xlu0 %1430
  %1432 = vrot.lane.b32.xlu0 %v720, 96
  %v1433 = vpop.permute.xlu0 %1432
  %1434 = vrot.lane.b32.xlu0 %v723, 96
  %v1435 = vpop.permute.xlu0 %1434
  %1436 = vrot.lane.b32.xlu0 %v725, 96
  %v1437 = vpop.permute.xlu0 %1436
  %1438 = vrot.lane.b32.xlu0 %v728, 96
  %v1439 = vpop.permute.xlu0 %1438
  %1440 = vrot.lane.b32.xlu0 %v730, 96
  %v1441 = vpop.permute.xlu0 %1440
  %1442 = vrot.lane.b32.xlu0 %v733, 96
  %v1443 = vpop.permute.xlu0 %1442
  %1444 = vrot.lane.b32.xlu0 %v735, 96
  %v1445 = vpop.permute.xlu0 %1444
  %1446 = vrot.lane.b32.xlu0 %v738, 96
  %v1447 = vpop.permute.xlu0 %1446
  %1448 = vrot.lane.b32.xlu0 %v740, 96
  %v1449 = vpop.permute.xlu0 %1448
  %1450 = vrot.lane.b32.xlu0 %v743, 96
  %v1451 = vpop.permute.xlu0 %1450
  %1452 = vrot.lane.b32.xlu0 %v745, 96
  %v1453 = vpop.permute.xlu0 %1452
  %1454 = vrot.lane.b32.xlu0 %v748, 96
  %v1455 = vpop.permute.xlu0 %1454
  %1456 = vrot.lane.b32.xlu0 %v750, 96
  %v1457 = vpop.permute.xlu0 %1456
  %1458 = vrot.lane.b32.xlu0 %v753, 96
  %v1459 = vpop.permute.xlu0 %1458
  %1460 = vrot.lane.b32.xlu0 %v755, 96
  %v1461 = vpop.permute.xlu0 %1460
  %1462 = vrot.lane.b32.xlu0 %v758, 96
  %v1463 = vpop.permute.xlu0 %1462
  %1464 = vrot.lane.b32.xlu0 %v760, 96
  %v1465 = vpop.permute.xlu0 %1464
  %1466 = vrot.lane.b32.xlu0 %v763, 96
  %v1467 = vpop.permute.xlu0 %1466
  %1468 = vrot.lane.b32.xlu0 %v765, 96
  %v1469 = vpop.permute.xlu0 %1468
  %1470 = vrot.lane.b32.xlu0 %v768, 96
  %v1471 = vpop.permute.xlu0 %1470
  %1472 = vrot.lane.b32.xlu0 %v770, 96
  %v1473 = vpop.permute.xlu0 %1472
  %1474 = vrot.lane.b32.xlu0 %v773, 96
  %v1475 = vpop.permute.xlu0 %1474
  %1476 = vrot.lane.b32.xlu0 %v775, 96
  %v1477 = vpop.permute.xlu0 %1476
  %1478 = vrot.lane.b32.xlu0 %v778, 96
  %v1479 = vpop.permute.xlu0 %1478
  %1480 = vrot.lane.b32.xlu0 %v780, 96
  %v1481 = vpop.permute.xlu0 %1480
  %1482 = vrot.lane.b32.xlu0 %v783, 96
  %v1483 = vpop.permute.xlu0 %1482
  %1484 = vrot.lane.b32.xlu0 %v785, 96
  %v1485 = vpop.permute.xlu0 %1484
  %1486 = vrot.lane.b32.xlu0 %v788, 96
  %v1487 = vpop.permute.xlu0 %1486
  %1488 = vrot.lane.b32.xlu0 %v790, 96
  %v1489 = vpop.permute.xlu0 %1488
  %1490 = vrot.lane.b32.xlu0 %v793, 96
  %v1491 = vpop.permute.xlu0 %1490
  %1492 = vrot.lane.b32.xlu0 %v795, 96
  %v1493 = vpop.permute.xlu0 %1492
  %1494 = vrot.lane.b32.xlu0 %v798, 96
  %v1495 = vpop.permute.xlu0 %1494
  %1496 = vrot.lane.b32.xlu0 %v800, 96
  %v1497 = vpop.permute.xlu0 %1496
  %1498 = vrot.lane.b32.xlu0 %v803, 96
  %v1499 = vpop.permute.xlu0 %1498
  %1500 = vrot.lane.b32.xlu0 %v805, 96
  %v1501 = vpop.permute.xlu0 %1500
  %1502 = vrot.lane.b32.xlu0 %v808, 96
  %v1503 = vpop.permute.xlu0 %1502
  %1504 = vrot.lane.b32.xlu0 %v810, 96
  %v1505 = vpop.permute.xlu0 %1504
  %1506 = vrot.lane.b32.xlu0 %v813, 96
  %v1507 = vpop.permute.xlu0 %1506
  %1508 = vrot.lane.b32.xlu0 %v815, 96
  %v1509 = vpop.permute.xlu0 %1508
  %v1608 = vadd.f32 %v821, %v1315
  %v1609 = vadd.f32 %v1216, %v1317
  %v1610 = vadd.f32 %v1217, %v1319
  %v1611 = vadd.f32 %v1218, %v1321
  %v1612 = vadd.f32 %v1219, %v1323
  %v1613 = vadd.f32 %v1220, %v1325
  %v1614 = vadd.f32 %v1221, %v1327
  %v1615 = vadd.f32 %v1222, %v1329
  %v1616 = vadd.f32 %v1223, %v1331
  %v1617 = vadd.f32 %v1224, %v1333
  %v1618 = vadd.f32 %v1225, %v1335
  %v1619 = vadd.f32 %v1226, %v1337
  %v1620 = vadd.f32 %v1227, %v1339
  %v1621 = vadd.f32 %v1228, %v1341
  %v1622 = vadd.f32 %v1229, %v1343
  %v1623 = vadd.f32 %v1230, %v1345
  %v1624 = vadd.f32 %v1231, %v1347
  %v1625 = vadd.f32 %v1232, %v1349
  %v1626 = vadd.f32 %v1233, %v1351
  %v1627 = vadd.f32 %v1234, %v1353
  %v1628 = vadd.f32 %v1235, %v1355
  %v1629 = vadd.f32 %v1236, %v1357
  %v1630 = vadd.f32 %v1237, %v1359
  %v1631 = vadd.f32 %v1238, %v1361
  %v1632 = vadd.f32 %v1239, %v1363
  %v1633 = vadd.f32 %v1240, %v1365
  %v1634 = vadd.f32 %v1241, %v1367
  %v1635 = vadd.f32 %v1242, %v1369
  %v1636 = vadd.f32 %v1243, %v1371
  %v1637 = vadd.f32 %v1244, %v1373
  %v1638 = vadd.f32 %v1245, %v1375
  %v1639 = vadd.f32 %v1246, %v1377
  %v1640 = vadd.f32 %v1247, %v1379
  %v1641 = vadd.f32 %v1248, %v1381
  %v1642 = vadd.f32 %v1249, %v1383
  %v1643 = vadd.f32 %v1250, %v1385
  %v1644 = vadd.f32 %v1251, %v1387
  %v1645 = vadd.f32 %v1252, %v1389
  %v1646 = vadd.f32 %v1253, %v1391
  %v1647 = vadd.f32 %v1254, %v1393
  %v1648 = vadd.f32 %v1255, %v1395
  %v1649 = vadd.f32 %v1256, %v1397
  %v1650 = vadd.f32 %v1257, %v1399
  %v1651 = vadd.f32 %v1258, %v1401
  %v1652 = vadd.f32 %v1259, %v1403
  %v1653 = vadd.f32 %v1260, %v1405
  %v1654 = vadd.f32 %v1261, %v1407
  %v1655 = vadd.f32 %v1262, %v1409
  %v1656 = vadd.f32 %v1263, %v1411
  %v1657 = vadd.f32 %v1264, %v1413
  %v1658 = vadd.f32 %v1265, %v1415
  %v1659 = vadd.f32 %v1266, %v1417
  %v1660 = vadd.f32 %v1267, %v1419
  %v1661 = vadd.f32 %v1268, %v1421
  %v1662 = vadd.f32 %v1269, %v1423
  %v1663 = vadd.f32 %v1270, %v1425
  %v1664 = vadd.f32 %v1271, %v1427
  %v1665 = vadd.f32 %v1272, %v1429
  %v1666 = vadd.f32 %v1273, %v1431
  %v1667 = vadd.f32 %v1274, %v1433
  %v1668 = vadd.f32 %v1275, %v1435
  %v1669 = vadd.f32 %v1276, %v1437
  %v1670 = vadd.f32 %v1277, %v1439
  %v1671 = vadd.f32 %v1278, %v1441
  %v1672 = vadd.f32 %v1279, %v1443
  %v1673 = vadd.f32 %v1280, %v1445
  %v1674 = vadd.f32 %v1281, %v1447
  %v1675 = vadd.f32 %v1282, %v1449
  %v1676 = vadd.f32 %v1283, %v1451
  %v1677 = vadd.f32 %v1284, %v1453
  %v1678 = vadd.f32 %v1285, %v1455
  %v1679 = vadd.f32 %v1286, %v1457
  %v1680 = vadd.f32 %v1287, %v1459
  %v1681 = vadd.f32 %v1288, %v1461
  %v1682 = vadd.f32 %v1289, %v1463
  %v1683 = vadd.f32 %v1290, %v1465
  %v1684 = vadd.f32 %v1291, %v1467
  %v1685 = vadd.f32 %v1292, %v1469
  %v1686 = vadd.f32 %v1293, %v1471
  %v1687 = vadd.f32 %v1294, %v1473
  %v1688 = vadd.f32 %v1295, %v1475
  %v1689 = vadd.f32 %v1296, %v1477
  %v1690 = vadd.f32 %v1297, %v1479
  %v1691 = vadd.f32 %v1298, %v1481
  %v1692 = vadd.f32 %v1299, %v1483
  %v1693 = vadd.f32 %v1300, %v1485
  %v1694 = vadd.f32 %v1301, %v1487
  %v1695 = vadd.f32 %v1302, %v1489
  %v1696 = vadd.f32 %v1303, %v1491
  %v1697 = vadd.f32 %v1304, %v1493
  %v1698 = vadd.f32 %v1305, %v1495
  %v1699 = vadd.f32 %v1306, %v1497
  %v1700 = vadd.f32 %v1307, %v1499
  %v1701 = vadd.f32 %v1308, %v1501
  %v1702 = vadd.f32 %v1309, %v1503
  %v1703 = vadd.f32 %v1310, %v1505
  %v1704 = vadd.f32 %v1311, %v1507
  %v1705 = vadd.f32 %v1312, %v1509
  %s1706 = scalar_lea.vmem [#allocation2], 8
  %1707 = vst.msk [vmem:[%s1706] sm:$0xff] %vm826, %v1608
  %1708 = vst.msk [vmem:[%s1706 + $0x8] sm:$0xff] %vm826, %v1609
  %1709 = vst.msk [vmem:[%s1706 + $0x10] sm:$0xff] %vm826, %v1610
  %1710 = vst.msk [vmem:[%s1706 + $0x18] sm:$0xff] %vm826, %v1611
  %1711 = vst.msk [vmem:[%s1706 + $0x20] sm:$0xff] %vm826, %v1612
  %1712 = vst.msk [vmem:[%s1706 + $0x28] sm:$0xff] %vm826, %v1613
  %1713 = vst.msk [vmem:[%s1706 + $0x30] sm:$0xff] %vm826, %v1614
  %1714 = vst.msk [vmem:[%s1706 + $0x38] sm:$0xff] %vm826, %v1615
  %1715 = vst.msk [vmem:[%s1706 + $0x40] sm:$0xff] %vm826, %v1616
  %1716 = vst.msk [vmem:[%s1706 + $0x48] sm:$0xff] %vm826, %v1617
  %1717 = vst.msk [vmem:[%s1706 + $0x50] sm:$0xff] %vm826, %v1618
  %1718 = vst.msk [vmem:[%s1706 + $0x58] sm:$0xff] %vm826, %v1619
  %1719 = vst.msk [vmem:[%s1706 + $0x60] sm:$0xff] %vm826, %v1620
  %1720 = vst.msk [vmem:[%s1706 + $0x68] sm:$0xff] %vm826, %v1621
  %1721 = vst.msk [vmem:[%s1706 + $0x70] sm:$0xff] %vm826, %v1622
  %1722 = vst.msk [vmem:[%s1706 + $0x78] sm:$0xff] %vm826, %v1623
  %1723 = vst.msk [vmem:[%s1706 + $0x80] sm:$0xff] %vm826, %v1624
  %1724 = vst.msk [vmem:[%s1706 + $0x88] sm:$0xff] %vm826, %v1625
  %1725 = vst.msk [vmem:[%s1706 + $0x90] sm:$0xff] %vm826, %v1626
  %1726 = vst.msk [vmem:[%s1706 + $0x98] sm:$0xff] %vm826, %v1627
  %1727 = vst.msk [vmem:[%s1706 + $0xa0] sm:$0xff] %vm826, %v1628
  %1728 = vst.msk [vmem:[%s1706 + $0xa8] sm:$0xff] %vm826, %v1629
  %1729 = vst.msk [vmem:[%s1706 + $0xb0] sm:$0xff] %vm826, %v1630
  %1730 = vst.msk [vmem:[%s1706 + $0xb8] sm:$0xff] %vm826, %v1631
  %1731 = vst.msk [vmem:[%s1706 + $0xc0] sm:$0xff] %vm826, %v1632
  %1732 = vst.msk [vmem:[%s1706 + $0xc8] sm:$0xff] %vm826, %v1633
  %1733 = vst.msk [vmem:[%s1706 + $0xd0] sm:$0xff] %vm826, %v1634
  %1734 = vst.msk [vmem:[%s1706 + $0xd8] sm:$0xff] %vm826, %v1635
  %1735 = vst.msk [vmem:[%s1706 + $0xe0] sm:$0xff] %vm826, %v1636
  %1736 = vst.msk [vmem:[%s1706 + $0xe8] sm:$0xff] %vm826, %v1637
  %1737 = vst.msk [vmem:[%s1706 + $0xf0] sm:$0xff] %vm826, %v1638
  %1738 = vst.msk [vmem:[%s1706 + $0xf8] sm:$0xff] %vm826, %v1639
  %1739 = vst.msk [vmem:[%s1706 + $0x100] sm:$0xff] %vm826, %v1640
  %1740 = vst.msk [vmem:[%s1706 + $0x108] sm:$0xff] %vm826, %v1641
  %1741 = vst.msk [vmem:[%s1706 + $0x110] sm:$0xff] %vm826, %v1642
  %1742 = vst.msk [vmem:[%s1706 + $0x118] sm:$0xff] %vm826, %v1643
  %1743 = vst.msk [vmem:[%s1706 + $0x120] sm:$0xff] %vm826, %v1644
  %1744 = vst.msk [vmem:[%s1706 + $0x128] sm:$0xff] %vm826, %v1645
  %1745 = vst.msk [vmem:[%s1706 + $0x130] sm:$0xff] %vm826, %v1646
  %1746 = vst.msk [vmem:[%s1706 + $0x138] sm:$0xff] %vm826, %v1647
  %1747 = vst.msk [vmem:[%s1706 + $0x140] sm:$0xff] %vm826, %v1648
  %1748 = vst.msk [vmem:[%s1706 + $0x148] sm:$0xff] %vm826, %v1649
  %1749 = vst.msk [vmem:[%s1706 + $0x150] sm:$0xff] %vm826, %v1650
  %1750 = vst.msk [vmem:[%s1706 + $0x158] sm:$0xff] %vm826, %v1651
  %1751 = vst.msk [vmem:[%s1706 + $0x160] sm:$0xff] %vm826, %v1652
  %1752 = vst.msk [vmem:[%s1706 + $0x168] sm:$0xff] %vm826, %v1653
  %1753 = vst.msk [vmem:[%s1706 + $0x170] sm:$0xff] %vm826, %v1654
  %1754 = vst.msk [vmem:[%s1706 + $0x178] sm:$0xff] %vm826, %v1655
  %1755 = vst.msk [vmem:[%s1706 + $0x180] sm:$0xff] %vm826, %v1656
  %1756 = vst.msk [vmem:[%s1706 + $0x188] sm:$0xff] %vm826, %v1657
  %1757 = vst.msk [vmem:[%s1706 + $0x190] sm:$0xff] %vm826, %v1658
  %1758 = vst.msk [vmem:[%s1706 + $0x198] sm:$0xff] %vm826, %v1659
  %1759 = vst.msk [vmem:[%s1706 + $0x1a0] sm:$0xff] %vm826, %v1660
  %1760 = vst.msk [vmem:[%s1706 + $0x1a8] sm:$0xff] %vm826, %v1661
  %1761 = vst.msk [vmem:[%s1706 + $0x1b0] sm:$0xff] %vm826, %v1662
  %1762 = vst.msk [vmem:[%s1706 + $0x1b8] sm:$0xff] %vm826, %v1663
  %1763 = vst.msk [vmem:[%s1706 + $0x1c0] sm:$0xff] %vm826, %v1664
  %1764 = vst.msk [vmem:[%s1706 + $0x1c8] sm:$0xff] %vm826, %v1665
  %1765 = vst.msk [vmem:[%s1706 + $0x1d0] sm:$0xff] %vm826, %v1666
  %1766 = vst.msk [vmem:[%s1706 + $0x1d8] sm:$0xff] %vm826, %v1667
  %1767 = vst.msk [vmem:[%s1706 + $0x1e0] sm:$0xff] %vm826, %v1668
  %1768 = vst.msk [vmem:[%s1706 + $0x1e8] sm:$0xff] %vm826, %v1669
  %1769 = vst.msk [vmem:[%s1706 + $0x1f0] sm:$0xff] %vm826, %v1670
  %1770 = vst.msk [vmem:[%s1706 + $0x1f8] sm:$0xff] %vm826, %v1671
  %1771 = vst.msk [vmem:[%s1706 + $0x200] sm:$0xff] %vm826, %v1672
  %1772 = vst.msk [vmem:[%s1706 + $0x208] sm:$0xff] %vm826, %v1673
  %1773 = vst.msk [vmem:[%s1706 + $0x210] sm:$0xff] %vm826, %v1674
  %1774 = vst.msk [vmem:[%s1706 + $0x218] sm:$0xff] %vm826, %v1675
  %1775 = vst.msk [vmem:[%s1706 + $0x220] sm:$0xff] %vm826, %v1676
  %1776 = vst.msk [vmem:[%s1706 + $0x228] sm:$0xff] %vm826, %v1677
  %1777 = vst.msk [vmem:[%s1706 + $0x230] sm:$0xff] %vm826, %v1678
  %1778 = vst.msk [vmem:[%s1706 + $0x238] sm:$0xff] %vm826, %v1679
  %1779 = vst.msk [vmem:[%s1706 + $0x240] sm:$0xff] %vm826, %v1680
  %1780 = vst.msk [vmem:[%s1706 + $0x248] sm:$0xff] %vm826, %v1681
  %1781 = vst.msk [vmem:[%s1706 + $0x250] sm:$0xff] %vm826, %v1682
  %1782 = vst.msk [vmem:[%s1706 + $0x258] sm:$0xff] %vm826, %v1683
  %1783 = vst.msk [vmem:[%s1706 + $0x260] sm:$0xff] %vm826, %v1684
  %1784 = vst.msk [vmem:[%s1706 + $0x268] sm:$0xff] %vm826, %v1685
  %1785 = vst.msk [vmem:[%s1706 + $0x270] sm:$0xff] %vm826, %v1686
  %1786 = vst.msk [vmem:[%s1706 + $0x278] sm:$0xff] %vm826, %v1687
  %1787 = vst.msk [vmem:[%s1706 + $0x280] sm:$0xff] %vm826, %v1688
  %1788 = vst.msk [vmem:[%s1706 + $0x288] sm:$0xff] %vm826, %v1689
  %1789 = vst.msk [vmem:[%s1706 + $0x290] sm:$0xff] %vm826, %v1690
  %1790 = vst.msk [vmem:[%s1706 + $0x298] sm:$0xff] %vm826, %v1691
  %1791 = vst.msk [vmem:[%s1706 + $0x2a0] sm:$0xff] %vm826, %v1692
  %1792 = vst.msk [vmem:[%s1706 + $0x2a8] sm:$0xff] %vm826, %v1693
  %1793 = vst.msk [vmem:[%s1706 + $0x2b0] sm:$0xff] %vm826, %v1694
  %1794 = vst.msk [vmem:[%s1706 + $0x2b8] sm:$0xff] %vm826, %v1695
  %1795 = vst.msk [vmem:[%s1706 + $0x2c0] sm:$0xff] %vm826, %v1696
  %1796 = vst.msk [vmem:[%s1706 + $0x2c8] sm:$0xff] %vm826, %v1697
  %1797 = vst.msk [vmem:[%s1706 + $0x2d0] sm:$0xff] %vm826, %v1698
  %1798 = vst.msk [vmem:[%s1706 + $0x2d8] sm:$0xff] %vm826, %v1699
  %1799 = vst.msk [vmem:[%s1706 + $0x2e0] sm:$0xff] %vm826, %v1700
  %1800 = vst.msk [vmem:[%s1706 + $0x2e8] sm:$0xff] %vm826, %v1701
  %1801 = vst.msk [vmem:[%s1706 + $0x2f0] sm:$0xff] %vm826, %v1702
  %1802 = vst.msk [vmem:[%s1706 + $0x2f8] sm:$0xff] %vm826, %v1703
  %1803 = vst.msk [vmem:[%s1706 + $0x300] sm:$0xff] %vm826, %v1704
  %1804 = vst.msk [vmem:[%s1706 + $0x308] sm:$0xff] %vm826, %v1705
  %1805 = vrot.lane.b32.xlu0 %v815, 112
  %v1806 = vpop.permute.xlu0 %1805
  %v1808 = vadd.f32 %v813, %v1806
  %s1809 = scalar_lea.vmem [#allocation2], 792
  %1810 = vst.msk [vmem:[%s1809] sm:$0xff] %vm826, %v1808
  %v1811 = vld [vmem:[#allocation2] sm:$0xff]
  %v1812 = vld [vmem:[#allocation2 + $0x8] sm:$0xff]
  %v1813 = vld [vmem:[#allocation2 + $0x10] sm:$0xff]
  %v1814 = vld [vmem:[#allocation2 + $0x18] sm:$0xff]
  %v1815 = vld [vmem:[#allocation2 + $0x20] sm:$0xff]
  %v1816 = vld [vmem:[#allocation2 + $0x28] sm:$0xff]
  %v1817 = vld [vmem:[#allocation2 + $0x30] sm:$0xff]
  %v1818 = vld [vmem:[#allocation2 + $0x38] sm:$0xff]
  %v1819 = vld [vmem:[#allocation2 + $0x40] sm:$0xff]
  %v1820 = vld [vmem:[#allocation2 + $0x48] sm:$0xff]
  %v1821 = vld [vmem:[#allocation2 + $0x50] sm:$0xff]
  %v1822 = vld [vmem:[#allocation2 + $0x58] sm:$0xff]
  %v1823 = vld [vmem:[#allocation2 + $0x60] sm:$0xff]
  %v1824 = vld [vmem:[#allocation2 + $0x68] sm:$0xff]
  %v1825 = vld [vmem:[#allocation2 + $0x70] sm:$0xff]
  %v1826 = vld [vmem:[#allocation2 + $0x78] sm:$0xff]
  %v1827 = vld [vmem:[#allocation2 + $0x80] sm:$0xff]
  %v1828 = vld [vmem:[#allocation2 + $0x88] sm:$0xff]
  %v1829 = vld [vmem:[#allocation2 + $0x90] sm:$0xff]
  %v1830 = vld [vmem:[#allocation2 + $0x98] sm:$0xff]
  %v1831 = vld [vmem:[#allocation2 + $0xa0] sm:$0xff]
  %v1832 = vld [vmem:[#allocation2 + $0xa8] sm:$0xff]
  %v1833 = vld [vmem:[#allocation2 + $0xb0] sm:$0xff]
  %v1834 = vld [vmem:[#allocation2 + $0xb8] sm:$0xff]
  %v1835 = vld [vmem:[#allocation2 + $0xc0] sm:$0xff]
  %v1836 = vld [vmem:[#allocation2 + $0xc8] sm:$0xff]
  %v1837 = vld [vmem:[#allocation2 + $0xd0] sm:$0xff]
  %v1838 = vld [vmem:[#allocation2 + $0xd8] sm:$0xff]
  %v1839 = vld [vmem:[#allocation2 + $0xe0] sm:$0xff]
  %v1840 = vld [vmem:[#allocation2 + $0xe8] sm:$0xff]
  %v1841 = vld [vmem:[#allocation2 + $0xf0] sm:$0xff]
  %v1842 = vld [vmem:[#allocation2 + $0xf8] sm:$0xff]
  %v1843 = vld [vmem:[#allocation2 + $0x100] sm:$0xff]
  %v1844 = vld [vmem:[#allocation2 + $0x108] sm:$0xff]
  %v1845 = vld [vmem:[#allocation2 + $0x110] sm:$0xff]
  %v1846 = vld [vmem:[#allocation2 + $0x118] sm:$0xff]
  %v1847 = vld [vmem:[#allocation2 + $0x120] sm:$0xff]
  %v1848 = vld [vmem:[#allocation2 + $0x128] sm:$0xff]
  %v1849 = vld [vmem:[#allocation2 + $0x130] sm:$0xff]
  %v1850 = vld [vmem:[#allocation2 + $0x138] sm:$0xff]
  %v1851 = vld [vmem:[#allocation2 + $0x140] sm:$0xff]
  %v1852 = vld [vmem:[#allocation2 + $0x148] sm:$0xff]
  %v1853 = vld [vmem:[#allocation2 + $0x150] sm:$0xff]
  %v1854 = vld [vmem:[#allocation2 + $0x158] sm:$0xff]
  %v1855 = vld [vmem:[#allocation2 + $0x160] sm:$0xff]
  %v1856 = vld [vmem:[#allocation2 + $0x168] sm:$0xff]
  %v1857 = vld [vmem:[#allocation2 + $0x170] sm:$0xff]
  %v1858 = vld [vmem:[#allocation2 + $0x178] sm:$0xff]
  %v1859 = vld [vmem:[#allocation2 + $0x180] sm:$0xff]
  %v1860 = vld [vmem:[#allocation2 + $0x188] sm:$0xff]
  %v1861 = vld [vmem:[#allocation2 + $0x190] sm:$0xff]
  %v1862 = vld [vmem:[#allocation2 + $0x198] sm:$0xff]
  %v1863 = vld [vmem:[#allocation2 + $0x1a0] sm:$0xff]
  %v1864 = vld [vmem:[#allocation2 + $0x1a8] sm:$0xff]
  %v1865 = vld [vmem:[#allocation2 + $0x1b0] sm:$0xff]
  %v1866 = vld [vmem:[#allocation2 + $0x1b8] sm:$0xff]
  %v1867 = vld [vmem:[#allocation2 + $0x1c0] sm:$0xff]
  %v1868 = vld [vmem:[#allocation2 + $0x1c8] sm:$0xff]
  %v1869 = vld [vmem:[#allocation2 + $0x1d0] sm:$0xff]
  %v1870 = vld [vmem:[#allocation2 + $0x1d8] sm:$0xff]
  %v1871 = vld [vmem:[#allocation2 + $0x1e0] sm:$0xff]
  %v1872 = vld [vmem:[#allocation2 + $0x1e8] sm:$0xff]
  %v1873 = vld [vmem:[#allocation2 + $0x1f0] sm:$0xff]
  %v1874 = vld [vmem:[#allocation2 + $0x1f8] sm:$0xff]
  %v1875 = vld [vmem:[#allocation2 + $0x200] sm:$0xff]
  %v1876 = vld [vmem:[#allocation2 + $0x208] sm:$0xff]
  %v1877 = vld [vmem:[#allocation2 + $0x210] sm:$0xff]
  %v1878 = vld [vmem:[#allocation2 + $0x218] sm:$0xff]
  %v1879 = vld [vmem:[#allocation2 + $0x220] sm:$0xff]
  %v1880 = vld [vmem:[#allocation2 + $0x228] sm:$0xff]
  %v1881 = vld [vmem:[#allocation2 + $0x230] sm:$0xff]
  %v1882 = vld [vmem:[#allocation2 + $0x238] sm:$0xff]
  %v1883 = vld [vmem:[#allocation2 + $0x240] sm:$0xff]
  %v1884 = vld [vmem:[#allocation2 + $0x248] sm:$0xff]
  %v1885 = vld [vmem:[#allocation2 + $0x250] sm:$0xff]
  %v1886 = vld [vmem:[#allocation2 + $0x258] sm:$0xff]
  %v1887 = vld [vmem:[#allocation2 + $0x260] sm:$0xff]
  %v1888 = vld [vmem:[#allocation2 + $0x268] sm:$0xff]
  %v1889 = vld [vmem:[#allocation2 + $0x270] sm:$0xff]
  %v1890 = vld [vmem:[#allocation2 + $0x278] sm:$0xff]
  %v1891 = vld [vmem:[#allocation2 + $0x280] sm:$0xff]
  %v1892 = vld [vmem:[#allocation2 + $0x288] sm:$0xff]
  %v1893 = vld [vmem:[#allocation2 + $0x290] sm:$0xff]
  %v1894 = vld [vmem:[#allocation2 + $0x298] sm:$0xff]
  %v1895 = vld [vmem:[#allocation2 + $0x2a0] sm:$0xff]
  %v1896 = vld [vmem:[#allocation2 + $0x2a8] sm:$0xff]
  %v1897 = vld [vmem:[#allocation2 + $0x2b0] sm:$0xff]
  %v1898 = vld [vmem:[#allocation2 + $0x2b8] sm:$0xff]
  %v1899 = vld [vmem:[#allocation2 + $0x2c0] sm:$0xff]
  %v1900 = vld [vmem:[#allocation2 + $0x2c8] sm:$0xff]
  %v1901 = vld [vmem:[#allocation2 + $0x2d0] sm:$0xff]
  %v1902 = vld [vmem:[#allocation2 + $0x2d8] sm:$0xff]
  %v1903 = vld [vmem:[#allocation2 + $0x2e0] sm:$0xff]
  %v1904 = vld [vmem:[#allocation2 + $0x2e8] sm:$0xff]
  %v1905 = vld [vmem:[#allocation2 + $0x2f0] sm:$0xff]
  %v1906 = vld [vmem:[#allocation2 + $0x2f8] sm:$0xff]
  %v1907 = vld [vmem:[#allocation2 + $0x300] sm:$0xff]
  %v1908 = vld [vmem:[#allocation2 + $0x308] sm:$0xff]
  %v1909 = vld [vmem:[#allocation2 + $0x310] sm:$0xff]
  %v1910 = vld [vmem:[#allocation2 + $0x318] sm:$0xff]
  %v1911 = vmax.f32 %v1811, %v1812
  %v1912 = vmax.f32 %v1813, %v1814
  %v1913 = vmax.f32 %v1815, %v1816
  %v1914 = vmax.f32 %v1817, %v1818
  %v1915 = vmax.f32 %v1819, %v1820
  %v1916 = vmax.f32 %v1821, %v1822
  %v1917 = vmax.f32 %v1823, %v1824
  %v1918 = vmax.f32 %v1825, %v1826
  %v1919 = vmax.f32 %v1827, %v1828
  %v1920 = vmax.f32 %v1829, %v1830
  %v1921 = vmax.f32 %v1831, %v1832
  %v1922 = vmax.f32 %v1833, %v1834
  %v1923 = vmax.f32 %v1835, %v1836
  %v1924 = vmax.f32 %v1837, %v1838
  %v1925 = vmax.f32 %v1839, %v1840
  %v1926 = vmax.f32 %v1841, %v1842
  %v1927 = vmax.f32 %v1843, %v1844
  %v1928 = vmax.f32 %v1845, %v1846
  %v1929 = vmax.f32 %v1847, %v1848
  %v1930 = vmax.f32 %v1849, %v1850
  %v1931 = vmax.f32 %v1851, %v1852
  %v1932 = vmax.f32 %v1853, %v1854
  %v1933 = vmax.f32 %v1855, %v1856
  %v1934 = vmax.f32 %v1857, %v1858
  %v1935 = vmax.f32 %v1859, %v1860
  %v1936 = vmax.f32 %v1861, %v1862
  %v1937 = vmax.f32 %v1863, %v1864
  %v1938 = vmax.f32 %v1865, %v1866
  %v1939 = vmax.f32 %v1867, %v1868
  %v1940 = vmax.f32 %v1869, %v1870
  %v1941 = vmax.f32 %v1871, %v1872
  %v1942 = vmax.f32 %v1873, %v1874
  %v1943 = vmax.f32 %v1875, %v1876
  %v1944 = vmax.f32 %v1877, %v1878
  %v1945 = vmax.f32 %v1879, %v1880
  %v1946 = vmax.f32 %v1881, %v1882
  %v1947 = vmax.f32 %v1883, %v1884
  %v1948 = vmax.f32 %v1885, %v1886
  %v1949 = vmax.f32 %v1887, %v1888
  %v1950 = vmax.f32 %v1889, %v1890
  %v1951 = vmax.f32 %v1891, %v1892
  %v1952 = vmax.f32 %v1893, %v1894
  %v1953 = vmax.f32 %v1895, %v1896
  %v1954 = vmax.f32 %v1897, %v1898
  %v1955 = vmax.f32 %v1899, %v1900
  %v1956 = vmax.f32 %v1901, %v1902
  %v1957 = vmax.f32 %v1903, %v1904
  %v1958 = vmax.f32 %v1905, %v1906
  %v1959 = vmax.f32 %v1907, %v1908
  %v1960 = vmax.f32 %v1909, %v1910
  %v1961 = vld [vmem:[%s2] sm:$0x1]
  %v1963 = vperm.slane %v1961, 0
  %v1965 = vadd.f32 %v1911, %v1963
  %v1966 = vadd.f32 %v1912, %v1963
  %v1967 = vadd.f32 %v1913, %v1963
  %v1968 = vadd.f32 %v1914, %v1963
  %v1969 = vadd.f32 %v1915, %v1963
  %v1970 = vadd.f32 %v1916, %v1963
  %v1971 = vadd.f32 %v1917, %v1963
  %v1972 = vadd.f32 %v1918, %v1963
  %v1973 = vadd.f32 %v1919, %v1963
  %v1974 = vadd.f32 %v1920, %v1963
  %v1975 = vadd.f32 %v1921, %v1963
  %v1976 = vadd.f32 %v1922, %v1963
  %v1977 = vadd.f32 %v1923, %v1963
  %v1978 = vadd.f32 %v1924, %v1963
  %v1979 = vadd.f32 %v1925, %v1963
  %v1980 = vadd.f32 %v1926, %v1963
  %v1981 = vadd.f32 %v1927, %v1963
  %v1982 = vadd.f32 %v1928, %v1963
  %v1983 = vadd.f32 %v1929, %v1963
  %v1984 = vadd.f32 %v1930, %v1963
  %v1985 = vadd.f32 %v1931, %v1963
  %v1986 = vadd.f32 %v1932, %v1963
  %v1987 = vadd.f32 %v1933, %v1963
  %v1988 = vadd.f32 %v1934, %v1963
  %v1989 = vadd.f32 %v1935, %v1963
  %v1990 = vadd.f32 %v1936, %v1963
  %v1991 = vadd.f32 %v1937, %v1963
  %v1992 = vadd.f32 %v1938, %v1963
  %v1993 = vadd.f32 %v1939, %v1963
  %v1994 = vadd.f32 %v1940, %v1963
  %v1995 = vadd.f32 %v1941, %v1963
  %v1996 = vadd.f32 %v1942, %v1963
  %v1997 = vadd.f32 %v1943, %v1963
  %v1998 = vadd.f32 %v1944, %v1963
  %v1999 = vadd.f32 %v1945, %v1963
  %v2000 = vadd.f32 %v1946, %v1963
  %v2001 = vadd.f32 %v1947, %v1963
  %v2002 = vadd.f32 %v1948, %v1963
  %v2003 = vadd.f32 %v1949, %v1963
  %v2004 = vadd.f32 %v1950, %v1963
  %v2005 = vadd.f32 %v1951, %v1963
  %v2006 = vadd.f32 %v1952, %v1963
  %v2007 = vadd.f32 %v1953, %v1963
  %v2008 = vadd.f32 %v1954, %v1963
  %v2009 = vadd.f32 %v1955, %v1963
  %v2010 = vadd.f32 %v1956, %v1963
  %v2011 = vadd.f32 %v1957, %v1963
  %v2012 = vadd.f32 %v1958, %v1963
  %v2013 = vadd.f32 %v1959, %v1963
  %v2014 = vadd.f32 %v1960, %v1963
  %v2015 = vmax.f32 %v1965, 0.0
  %v2016 = vmax.f32 %v1966, 0.0
  %v2017 = vmax.f32 %v1967, 0.0
  %v2018 = vmax.f32 %v1968, 0.0
  %v2019 = vmax.f32 %v1969, 0.0
  %v2020 = vmax.f32 %v1970, 0.0
  %v2021 = vmax.f32 %v1971, 0.0
  %v2022 = vmax.f32 %v1972, 0.0
  %v2023 = vmax.f32 %v1973, 0.0
  %v2024 = vmax.f32 %v1974, 0.0
  %v2025 = vmax.f32 %v1975, 0.0
  %v2026 = vmax.f32 %v1976, 0.0
  %v2027 = vmax.f32 %v1977, 0.0
  %v2028 = vmax.f32 %v1978, 0.0
  %v2029 = vmax.f32 %v1979, 0.0
  %v2030 = vmax.f32 %v1980, 0.0
  %v2031 = vmax.f32 %v1981, 0.0
  %v2032 = vmax.f32 %v1982, 0.0
  %v2033 = vmax.f32 %v1983, 0.0
  %v2034 = vmax.f32 %v1984, 0.0
  %v2035 = vmax.f32 %v1985, 0.0
  %v2036 = vmax.f32 %v1986, 0.0
  %v2037 = vmax.f32 %v1987, 0.0
  %v2038 = vmax.f32 %v1988, 0.0
  %v2039 = vmax.f32 %v1989, 0.0
  %v2040 = vmax.f32 %v1990, 0.0
  %v2041 = vmax.f32 %v1991, 0.0
  %v2042 = vmax.f32 %v1992, 0.0
  %v2043 = vmax.f32 %v1993, 0.0
  %v2044 = vmax.f32 %v1994, 0.0
  %v2045 = vmax.f32 %v1995, 0.0
  %v2046 = vmax.f32 %v1996, 0.0
  %v2047 = vmax.f32 %v1997, 0.0
  %v2048 = vmax.f32 %v1998, 0.0
  %v2049 = vmax.f32 %v1999, 0.0
  %v2050 = vmax.f32 %v2000, 0.0
  %v2051 = vmax.f32 %v2001, 0.0
  %v2052 = vmax.f32 %v2002, 0.0
  %v2053 = vmax.f32 %v2003, 0.0
  %v2054 = vmax.f32 %v2004, 0.0
  %v2055 = vmax.f32 %v2005, 0.0
  %v2056 = vmax.f32 %v2006, 0.0
  %v2057 = vmax.f32 %v2007, 0.0
  %v2058 = vmax.f32 %v2008, 0.0
  %v2059 = vmax.f32 %v2009, 0.0
  %v2060 = vmax.f32 %v2010, 0.0
  %v2061 = vmax.f32 %v2011, 0.0
  %v2062 = vmax.f32 %v2012, 0.0
  %v2063 = vmax.f32 %v2013, 0.0
  %v2064 = vmax.f32 %v2014, 0.0
  %v2065 = vpack.c.bf16 %v2015, %v2015
  %v2066 = vpack.c.bf16 %v2016, %v2016
  %v2067 = vpack.c.bf16 %v2017, %v2017
  %v2068 = vpack.c.bf16 %v2018, %v2018
  %v2069 = vpack.c.bf16 %v2019, %v2019
  %v2070 = vpack.c.bf16 %v2020, %v2020
  %v2071 = vpack.c.bf16 %v2021, %v2021
  %v2072 = vpack.c.bf16 %v2022, %v2022
  %v2073 = vpack.c.bf16 %v2023, %v2023
  %v2074 = vpack.c.bf16 %v2024, %v2024
  %v2075 = vpack.c.bf16 %v2025, %v2025
  %v2076 = vpack.c.bf16 %v2026, %v2026
  %v2077 = vpack.c.bf16 %v2027, %v2027
  %v2078 = vpack.c.bf16 %v2028, %v2028
  %v2079 = vpack.c.bf16 %v2029, %v2029
  %v2080 = vpack.c.bf16 %v2030, %v2030
  %v2081 = vpack.c.bf16 %v2031, %v2031
  %v2082 = vpack.c.bf16 %v2032, %v2032
  %v2083 = vpack.c.bf16 %v2033, %v2033
  %v2084 = vpack.c.bf16 %v2034, %v2034
  %v2085 = vpack.c.bf16 %v2035, %v2035
  %v2086 = vpack.c.bf16 %v2036, %v2036
  %v2087 = vpack.c.bf16 %v2037, %v2037
  %v2088 = vpack.c.bf16 %v2038, %v2038
  %v2089 = vpack.c.bf16 %v2039, %v2039
  %v2090 = vpack.c.bf16 %v2040, %v2040
  %v2091 = vpack.c.bf16 %v2041, %v2041
  %v2092 = vpack.c.bf16 %v2042, %v2042
  %v2093 = vpack.c.bf16 %v2043, %v2043
  %v2094 = vpack.c.bf16 %v2044, %v2044
  %v2095 = vpack.c.bf16 %v2045, %v2045
  %v2096 = vpack.c.bf16 %v2046, %v2046
  %v2097 = vpack.c.bf16 %v2047, %v2047
  %v2098 = vpack.c.bf16 %v2048, %v2048
  %v2099 = vpack.c.bf16 %v2049, %v2049
  %v2100 = vpack.c.bf16 %v2050, %v2050
  %v2101 = vpack.c.bf16 %v2051, %v2051
  %v2102 = vpack.c.bf16 %v2052, %v2052
  %v2103 = vpack.c.bf16 %v2053, %v2053
  %v2104 = vpack.c.bf16 %v2054, %v2054
  %v2105 = vpack.c.bf16 %v2055, %v2055
  %v2106 = vpack.c.bf16 %v2056, %v2056
  %v2107 = vpack.c.bf16 %v2057, %v2057
  %v2108 = vpack.c.bf16 %v2058, %v2058
  %v2109 = vpack.c.bf16 %v2059, %v2059
  %v2110 = vpack.c.bf16 %v2060, %v2060
  %v2111 = vpack.c.bf16 %v2061, %v2061
  %v2112 = vpack.c.bf16 %v2062, %v2062
  %v2113 = vpack.c.bf16 %v2063, %v2063
  %v2114 = vpack.c.bf16 %v2064, %v2064
  %v2115 = vld [vmem:[%s3] sm:$0xf]
  %v2116 = vld [vmem:[%s3 + $0x4] sm:$0xf]
  %v2167 = vunpack.c.l.b16 %v2065
  %v2168 = vunpack.c.l.b16 %v2066
  %v2169 = vunpack.c.l.b16 %v2067
  %v2170 = vunpack.c.l.b16 %v2068
  %v2171 = vunpack.c.l.b16 %v2069
  %v2172 = vunpack.c.l.b16 %v2070
  %v2173 = vunpack.c.l.b16 %v2071
  %v2174 = vunpack.c.l.b16 %v2072
  %v2175 = vunpack.c.l.b16 %v2073
  %v2176 = vunpack.c.l.b16 %v2074
  %v2177 = vunpack.c.l.b16 %v2075
  %v2178 = vunpack.c.l.b16 %v2076
  %v2179 = vunpack.c.l.b16 %v2077
  %v2180 = vunpack.c.l.b16 %v2078
  %v2181 = vunpack.c.l.b16 %v2079
  %v2182 = vunpack.c.l.b16 %v2080
  %v2183 = vunpack.c.l.b16 %v2081
  %v2184 = vunpack.c.l.b16 %v2082
  %v2185 = vunpack.c.l.b16 %v2083
  %v2186 = vunpack.c.l.b16 %v2084
  %v2187 = vunpack.c.l.b16 %v2085
  %v2188 = vunpack.c.l.b16 %v2086
  %v2189 = vunpack.c.l.b16 %v2087
  %v2190 = vunpack.c.l.b16 %v2088
  %v2191 = vunpack.c.l.b16 %v2089
  %v2192 = vunpack.c.l.b16 %v2090
  %v2193 = vunpack.c.l.b16 %v2091
  %v2194 = vunpack.c.l.b16 %v2092
  %v2195 = vunpack.c.l.b16 %v2093
  %v2196 = vunpack.c.l.b16 %v2094
  %v2197 = vunpack.c.l.b16 %v2095
  %v2198 = vunpack.c.l.b16 %v2096
  %v2199 = vunpack.c.l.b16 %v2097
  %v2200 = vunpack.c.l.b16 %v2098
  %v2201 = vunpack.c.l.b16 %v2099
  %v2202 = vunpack.c.l.b16 %v2100
  %v2203 = vunpack.c.l.b16 %v2101
  %v2204 = vunpack.c.l.b16 %v2102
  %v2205 = vunpack.c.l.b16 %v2103
  %v2206 = vunpack.c.l.b16 %v2104
  %v2207 = vunpack.c.l.b16 %v2105
  %v2208 = vunpack.c.l.b16 %v2106
  %v2209 = vunpack.c.l.b16 %v2107
  %v2210 = vunpack.c.l.b16 %v2108
  %v2211 = vunpack.c.l.b16 %v2109
  %v2212 = vunpack.c.l.b16 %v2110
  %v2213 = vunpack.c.l.b16 %v2111
  %v2214 = vunpack.c.l.b16 %v2112
  %v2215 = vunpack.c.l.b16 %v2113
  %v2216 = vunpack.c.l.b16 %v2114
  %v2217 = vpack.c.b16 %v2168, %v2167
  %v2218 = vpack.c.b16 %v2170, %v2169
  %v2219 = vpack.c.b16 %v2172, %v2171
  %v2220 = vpack.c.b16 %v2174, %v2173
  %v2221 = vpack.c.b16 %v2176, %v2175
  %v2222 = vpack.c.b16 %v2178, %v2177
  %v2223 = vpack.c.b16 %v2180, %v2179
  %v2224 = vpack.c.b16 %v2182, %v2181
  %v2225 = vpack.c.b16 %v2184, %v2183
  %v2226 = vpack.c.b16 %v2186, %v2185
  %v2227 = vpack.c.b16 %v2188, %v2187
  %v2228 = vpack.c.b16 %v2190, %v2189
  %v2229 = vpack.c.b16 %v2192, %v2191
  %v2230 = vpack.c.b16 %v2194, %v2193
  %v2231 = vpack.c.b16 %v2196, %v2195
  %v2232 = vpack.c.b16 %v2198, %v2197
  %v2233 = vpack.c.b16 %v2200, %v2199
  %v2234 = vpack.c.b16 %v2202, %v2201
  %v2235 = vpack.c.b16 %v2204, %v2203
  %v2236 = vpack.c.b16 %v2206, %v2205
  %v2237 = vpack.c.b16 %v2208, %v2207
  %v2238 = vpack.c.b16 %v2210, %v2209
  %v2239 = vpack.c.b16 %v2212, %v2211
  %v2240 = vpack.c.b16 %v2214, %v2213
  %v2241 = vpack.c.b16 %v2216, %v2215
  %v2244 = vunpack.c.l.b16 %v2115
  %v2245 = vunpack.c.l.b16 %v2116
  %v2246 = vpack.c.b16 %v2245, %v2244
  %v2249 = vsel %vm826, %v2217, 0
  %v2252 = vsel %vm826, %v2218, 0
  %v2255 = vsel %vm826, %v2219, 0
  %v2258 = vsel %vm826, %v2220, 0
  %v2261 = vsel %vm826, %v2221, 0
  %v2264 = vsel %vm826, %v2222, 0
  %v2267 = vsel %vm826, %v2223, 0
  %v2270 = vsel %vm826, %v2224, 0
  %v2273 = vsel %vm826, %v2225, 0
  %v2276 = vsel %vm826, %v2226, 0
  %v2279 = vsel %vm826, %v2227, 0
  %v2282 = vsel %vm826, %v2228, 0
  %v2285 = vsel %vm826, %v2229, 0
  %v2288 = vsel %vm826, %v2230, 0
  %v2291 = vsel %vm826, %v2231, 0
  %v2294 = vsel %vm826, %v2232, 0
  %v2297 = vsel %vm826, %v2233, 0
  %v2300 = vsel %vm826, %v2234, 0
  %v2303 = vsel %vm826, %v2235, 0
  %v2306 = vsel %vm826, %v2236, 0
  %v2309 = vsel %vm826, %v2237, 0
  %v2312 = vsel %vm826, %v2238, 0
  %v2315 = vsel %vm826, %v2239, 0
  %v2318 = vsel %vm826, %v2240, 0
  %v2321 = vsel %vm826, %v2241, 0
  %2323 = vmatpush.bf16.msra.mxu0 0
  %2324 = vmatpush.bf16.msra.mxu0 0
  %2325 = vmatpush.bf16.msra.mxu0 0
  %2326 = vmatpush.bf16.msra.mxu0 0
  %2327 = vmatpush.bf16.msra.mxu0 0
  %2328 = vmatpush.bf16.msra.mxu0 0
  %2329 = vmatpush.bf16.msra.mxu0 0
  %2330 = vmatpush.bf16.msra.mxu0 %v2246
  %2331 = vmatmul.bf16.gmra.mxu0 %v2249
  %v2332 = vpop.f32.mrf.mxu0
  %v2333 = vadd.f32 0.0, %v2332
  %v2334 = vpop.f32.mrf.mxu0
  %v2335 = vadd.f32 0.0, %v2334
  %2336 = vmatmul.bf16.gmra.mxu0 %v2252
  %v2337 = vpop.f32.mrf.mxu0
  %v2338 = vadd.f32 0.0, %v2337
  %v2339 = vpop.f32.mrf.mxu0
  %v2340 = vadd.f32 0.0, %v2339
  %2341 = vmatmul.bf16.gmra.mxu0 %v2255
  %v2342 = vpop.f32.mrf.mxu0
  %v2343 = vadd.f32 0.0, %v2342
  %v2344 = vpop.f32.mrf.mxu0
  %v2345 = vadd.f32 0.0, %v2344
  %2346 = vmatmul.bf16.gmra.mxu0 %v2258
  %v2347 = vpop.f32.mrf.mxu0
  %v2348 = vadd.f32 0.0, %v2347
  %v2349 = vpop.f32.mrf.mxu0
  %v2350 = vadd.f32 0.0, %v2349
  %2351 = vmatmul.bf16.gmra.mxu0 %v2261
  %v2352 = vpop.f32.mrf.mxu0
  %v2353 = vadd.f32 0.0, %v2352
  %v2354 = vpop.f32.mrf.mxu0
  %v2355 = vadd.f32 0.0, %v2354
  %2356 = vmatmul.bf16.gmra.mxu0 %v2264
  %v2357 = vpop.f32.mrf.mxu0
  %v2358 = vadd.f32 0.0, %v2357
  %v2359 = vpop.f32.mrf.mxu0
  %v2360 = vadd.f32 0.0, %v2359
  %2361 = vmatmul.bf16.gmra.mxu0 %v2267
  %v2362 = vpop.f32.mrf.mxu0
  %v2363 = vadd.f32 0.0, %v2362
  %v2364 = vpop.f32.mrf.mxu0
  %v2365 = vadd.f32 0.0, %v2364
  %2366 = vmatmul.bf16.gmra.mxu0 %v2270
  %v2367 = vpop.f32.mrf.mxu0
  %v2368 = vadd.f32 0.0, %v2367
  %v2369 = vpop.f32.mrf.mxu0
  %v2370 = vadd.f32 0.0, %v2369
  %2371 = vmatmul.bf16.gmra.mxu0 %v2273
  %v2372 = vpop.f32.mrf.mxu0
  %v2373 = vadd.f32 0.0, %v2372
  %v2374 = vpop.f32.mrf.mxu0
  %v2375 = vadd.f32 0.0, %v2374
  %2376 = vmatmul.bf16.gmra.mxu0 %v2276
  %v2377 = vpop.f32.mrf.mxu0
  %v2378 = vadd.f32 0.0, %v2377
  %v2379 = vpop.f32.mrf.mxu0
  %v2380 = vadd.f32 0.0, %v2379
  %2381 = vmatmul.bf16.gmra.mxu0 %v2279
  %v2382 = vpop.f32.mrf.mxu0
  %v2383 = vadd.f32 0.0, %v2382
  %v2384 = vpop.f32.mrf.mxu0
  %v2385 = vadd.f32 0.0, %v2384
  %2386 = vmatmul.bf16.gmra.mxu0 %v2282
  %v2387 = vpop.f32.mrf.mxu0
  %v2388 = vadd.f32 0.0, %v2387
  %v2389 = vpop.f32.mrf.mxu0
  %v2390 = vadd.f32 0.0, %v2389
  %2391 = vmatmul.bf16.gmra.mxu0 %v2285
  %v2392 = vpop.f32.mrf.mxu0
  %v2393 = vadd.f32 0.0, %v2392
  %v2394 = vpop.f32.mrf.mxu0
  %v2395 = vadd.f32 0.0, %v2394
  %2396 = vmatmul.bf16.gmra.mxu0 %v2288
  %v2397 = vpop.f32.mrf.mxu0
  %v2398 = vadd.f32 0.0, %v2397
  %v2399 = vpop.f32.mrf.mxu0
  %v2400 = vadd.f32 0.0, %v2399
  %2401 = vmatmul.bf16.gmra.mxu0 %v2291
  %v2402 = vpop.f32.mrf.mxu0
  %v2403 = vadd.f32 0.0, %v2402
  %v2404 = vpop.f32.mrf.mxu0
  %v2405 = vadd.f32 0.0, %v2404
  %2406 = vmatmul.bf16.gmra.mxu0 %v2294
  %v2407 = vpop.f32.mrf.mxu0
  %v2408 = vadd.f32 0.0, %v2407
  %v2409 = vpop.f32.mrf.mxu0
  %v2410 = vadd.f32 0.0, %v2409
  %2411 = vmatmul.bf16.gmra.mxu0 %v2297
  %v2412 = vpop.f32.mrf.mxu0
  %v2413 = vadd.f32 0.0, %v2412
  %v2414 = vpop.f32.mrf.mxu0
  %v2415 = vadd.f32 0.0, %v2414
  %2416 = vmatmul.bf16.gmra.mxu0 %v2300
  %v2417 = vpop.f32.mrf.mxu0
  %v2418 = vadd.f32 0.0, %v2417
  %v2419 = vpop.f32.mrf.mxu0
  %v2420 = vadd.f32 0.0, %v2419
  %2421 = vmatmul.bf16.gmra.mxu0 %v2303
  %v2422 = vpop.f32.mrf.mxu0
  %v2423 = vadd.f32 0.0, %v2422
  %v2424 = vpop.f32.mrf.mxu0
  %v2425 = vadd.f32 0.0, %v2424
  %2426 = vmatmul.bf16.gmra.mxu0 %v2306
  %v2427 = vpop.f32.mrf.mxu0
  %v2428 = vadd.f32 0.0, %v2427
  %v2429 = vpop.f32.mrf.mxu0
  %v2430 = vadd.f32 0.0, %v2429
  %2431 = vmatmul.bf16.gmra.mxu0 %v2309
  %v2432 = vpop.f32.mrf.mxu0
  %v2433 = vadd.f32 0.0, %v2432
  %v2434 = vpop.f32.mrf.mxu0
  %v2435 = vadd.f32 0.0, %v2434
  %2436 = vmatmul.bf16.gmra.mxu0 %v2312
  %v2437 = vpop.f32.mrf.mxu0
  %v2438 = vadd.f32 0.0, %v2437
  %v2439 = vpop.f32.mrf.mxu0
  %v2440 = vadd.f32 0.0, %v2439
  %2441 = vmatmul.bf16.gmra.mxu0 %v2315
  %v2442 = vpop.f32.mrf.mxu0
  %v2443 = vadd.f32 0.0, %v2442
  %v2444 = vpop.f32.mrf.mxu0
  %v2445 = vadd.f32 0.0, %v2444
  %2446 = vmatmul.bf16.gmra.mxu0 %v2318
  %v2447 = vpop.f32.mrf.mxu0
  %v2448 = vadd.f32 0.0, %v2447
  %v2449 = vpop.f32.mrf.mxu0
  %v2450 = vadd.f32 0.0, %v2449
  %2451 = vmatmul.bf16.gmra.mxu0 %v2321
  %v2452 = vpop.f32.mrf.mxu0
  %v2453 = vadd.f32 0.0, %v2452
  %v2454 = vpop.f32.mrf.mxu0
  %v2455 = vadd.f32 0.0, %v2454
  %2456 = vdwg.mxu0
  %2458 = vrot.lane.b32.xlu0 %v2335, 96
  %v2459 = vpop.permute.xlu0 %2458
  %v2461 = vadd.f32 %v2333, %v2459
  %2463 = vrot.lane.b32.xlu0 %v2461, 96
  %v2464 = vpop.permute.xlu0 %2463
  %vm2466 = vcmask 261120
  %2467 = vst.msk [vmem:[#allocation3] sm:$0xff] %vm2466, %v2464
  %2515 = vrot.lane.b32.xlu0 %v2338, 96
  %v2516 = vpop.permute.xlu0 %2515
  %2517 = vrot.lane.b32.xlu0 %v2340, 96
  %v2518 = vpop.permute.xlu0 %2517
  %2519 = vrot.lane.b32.xlu0 %v2343, 96
  %v2520 = vpop.permute.xlu0 %2519
  %2521 = vrot.lane.b32.xlu0 %v2345, 96
  %v2522 = vpop.permute.xlu0 %2521
  %2523 = vrot.lane.b32.xlu0 %v2348, 96
  %v2524 = vpop.permute.xlu0 %2523
  %2525 = vrot.lane.b32.xlu0 %v2350, 96
  %v2526 = vpop.permute.xlu0 %2525
  %2527 = vrot.lane.b32.xlu0 %v2353, 96
  %v2528 = vpop.permute.xlu0 %2527
  %2529 = vrot.lane.b32.xlu0 %v2355, 96
  %v2530 = vpop.permute.xlu0 %2529
  %2531 = vrot.lane.b32.xlu0 %v2358, 96
  %v2532 = vpop.permute.xlu0 %2531
  %2533 = vrot.lane.b32.xlu0 %v2360, 96
  %v2534 = vpop.permute.xlu0 %2533
  %2535 = vrot.lane.b32.xlu0 %v2363, 96
  %v2536 = vpop.permute.xlu0 %2535
  %2537 = vrot.lane.b32.xlu0 %v2365, 96
  %v2538 = vpop.permute.xlu0 %2537
  %2539 = vrot.lane.b32.xlu0 %v2368, 96
  %v2540 = vpop.permute.xlu0 %2539
  %2541 = vrot.lane.b32.xlu0 %v2370, 96
  %v2542 = vpop.permute.xlu0 %2541
  %2543 = vrot.lane.b32.xlu0 %v2373, 96
  %v2544 = vpop.permute.xlu0 %2543
  %2545 = vrot.lane.b32.xlu0 %v2375, 96
  %v2546 = vpop.permute.xlu0 %2545
  %2547 = vrot.lane.b32.xlu0 %v2378, 96
  %v2548 = vpop.permute.xlu0 %2547
  %2549 = vrot.lane.b32.xlu0 %v2380, 96
  %v2550 = vpop.permute.xlu0 %2549
  %2551 = vrot.lane.b32.xlu0 %v2383, 96
  %v2552 = vpop.permute.xlu0 %2551
  %2553 = vrot.lane.b32.xlu0 %v2385, 96
  %v2554 = vpop.permute.xlu0 %2553
  %2555 = vrot.lane.b32.xlu0 %v2388, 96
  %v2556 = vpop.permute.xlu0 %2555
  %2557 = vrot.lane.b32.xlu0 %v2390, 96
  %v2558 = vpop.permute.xlu0 %2557
  %2559 = vrot.lane.b32.xlu0 %v2393, 96
  %v2560 = vpop.permute.xlu0 %2559
  %2561 = vrot.lane.b32.xlu0 %v2395, 96
  %v2562 = vpop.permute.xlu0 %2561
  %2563 = vrot.lane.b32.xlu0 %v2398, 96
  %v2564 = vpop.permute.xlu0 %2563
  %2565 = vrot.lane.b32.xlu0 %v2400, 96
  %v2566 = vpop.permute.xlu0 %2565
  %2567 = vrot.lane.b32.xlu0 %v2403, 96
  %v2568 = vpop.permute.xlu0 %2567
  %2569 = vrot.lane.b32.xlu0 %v2405, 96
  %v2570 = vpop.permute.xlu0 %2569
  %2571 = vrot.lane.b32.xlu0 %v2408, 96
  %v2572 = vpop.permute.xlu0 %2571
  %2573 = vrot.lane.b32.xlu0 %v2410, 96
  %v2574 = vpop.permute.xlu0 %2573
  %2575 = vrot.lane.b32.xlu0 %v2413, 96
  %v2576 = vpop.permute.xlu0 %2575
  %2577 = vrot.lane.b32.xlu0 %v2415, 96
  %v2578 = vpop.permute.xlu0 %2577
  %2579 = vrot.lane.b32.xlu0 %v2418, 96
  %v2580 = vpop.permute.xlu0 %2579
  %2581 = vrot.lane.b32.xlu0 %v2420, 96
  %v2582 = vpop.permute.xlu0 %2581
  %2583 = vrot.lane.b32.xlu0 %v2423, 96
  %v2584 = vpop.permute.xlu0 %2583
  %2585 = vrot.lane.b32.xlu0 %v2425, 96
  %v2586 = vpop.permute.xlu0 %2585
  %2587 = vrot.lane.b32.xlu0 %v2428, 96
  %v2588 = vpop.permute.xlu0 %2587
  %2589 = vrot.lane.b32.xlu0 %v2430, 96
  %v2590 = vpop.permute.xlu0 %2589
  %2591 = vrot.lane.b32.xlu0 %v2433, 96
  %v2592 = vpop.permute.xlu0 %2591
  %2593 = vrot.lane.b32.xlu0 %v2435, 96
  %v2594 = vpop.permute.xlu0 %2593
  %2595 = vrot.lane.b32.xlu0 %v2438, 96
  %v2596 = vpop.permute.xlu0 %2595
  %2597 = vrot.lane.b32.xlu0 %v2440, 96
  %v2598 = vpop.permute.xlu0 %2597
  %2599 = vrot.lane.b32.xlu0 %v2443, 96
  %v2600 = vpop.permute.xlu0 %2599
  %2601 = vrot.lane.b32.xlu0 %v2445, 96
  %v2602 = vpop.permute.xlu0 %2601
  %2603 = vrot.lane.b32.xlu0 %v2448, 96
  %v2604 = vpop.permute.xlu0 %2603
  %2605 = vrot.lane.b32.xlu0 %v2450, 96
  %v2606 = vpop.permute.xlu0 %2605
  %2607 = vrot.lane.b32.xlu0 %v2453, 96
  %v2608 = vpop.permute.xlu0 %2607
  %v2656 = vadd.f32 %v2335, %v2516
  %v2657 = vadd.f32 %v2338, %v2518
  %v2658 = vadd.f32 %v2340, %v2520
  %v2659 = vadd.f32 %v2343, %v2522
  %v2660 = vadd.f32 %v2345, %v2524
  %v2661 = vadd.f32 %v2348, %v2526
  %v2662 = vadd.f32 %v2350, %v2528
  %v2663 = vadd.f32 %v2353, %v2530
  %v2664 = vadd.f32 %v2355, %v2532
  %v2665 = vadd.f32 %v2358, %v2534
  %v2666 = vadd.f32 %v2360, %v2536
  %v2667 = vadd.f32 %v2363, %v2538
  %v2668 = vadd.f32 %v2365, %v2540
  %v2669 = vadd.f32 %v2368, %v2542
  %v2670 = vadd.f32 %v2370, %v2544
  %v2671 = vadd.f32 %v2373, %v2546
  %v2672 = vadd.f32 %v2375, %v2548
  %v2673 = vadd.f32 %v2378, %v2550
  %v2674 = vadd.f32 %v2380, %v2552
  %v2675 = vadd.f32 %v2383, %v2554
  %v2676 = vadd.f32 %v2385, %v2556
  %v2677 = vadd.f32 %v2388, %v2558
  %v2678 = vadd.f32 %v2390, %v2560
  %v2679 = vadd.f32 %v2393, %v2562
  %v2680 = vadd.f32 %v2395, %v2564
  %v2681 = vadd.f32 %v2398, %v2566
  %v2682 = vadd.f32 %v2400, %v2568
  %v2683 = vadd.f32 %v2403, %v2570
  %v2684 = vadd.f32 %v2405, %v2572
  %v2685 = vadd.f32 %v2408, %v2574
  %v2686 = vadd.f32 %v2410, %v2576
  %v2687 = vadd.f32 %v2413, %v2578
  %v2688 = vadd.f32 %v2415, %v2580
  %v2689 = vadd.f32 %v2418, %v2582
  %v2690 = vadd.f32 %v2420, %v2584
  %v2691 = vadd.f32 %v2423, %v2586
  %v2692 = vadd.f32 %v2425, %v2588
  %v2693 = vadd.f32 %v2428, %v2590
  %v2694 = vadd.f32 %v2430, %v2592
  %v2695 = vadd.f32 %v2433, %v2594
  %v2696 = vadd.f32 %v2435, %v2596
  %v2697 = vadd.f32 %v2438, %v2598
  %v2698 = vadd.f32 %v2440, %v2600
  %v2699 = vadd.f32 %v2443, %v2602
  %v2700 = vadd.f32 %v2445, %v2604
  %v2701 = vadd.f32 %v2448, %v2606
  %v2702 = vadd.f32 %v2450, %v2608
  %2704 = vrot.lane.b32.xlu0 %v2338, 64
  %v2705 = vpop.permute.xlu0 %2704
  %2706 = vrot.lane.b32.xlu0 %v2340, 64
  %v2707 = vpop.permute.xlu0 %2706
  %2708 = vrot.lane.b32.xlu0 %v2343, 64
  %v2709 = vpop.permute.xlu0 %2708
  %2710 = vrot.lane.b32.xlu0 %v2345, 64
  %v2711 = vpop.permute.xlu0 %2710
  %2712 = vrot.lane.b32.xlu0 %v2348, 64
  %v2713 = vpop.permute.xlu0 %2712
  %2714 = vrot.lane.b32.xlu0 %v2350, 64
  %v2715 = vpop.permute.xlu0 %2714
  %2716 = vrot.lane.b32.xlu0 %v2353, 64
  %v2717 = vpop.permute.xlu0 %2716
  %2718 = vrot.lane.b32.xlu0 %v2355, 64
  %v2719 = vpop.permute.xlu0 %2718
  %2720 = vrot.lane.b32.xlu0 %v2358, 64
  %v2721 = vpop.permute.xlu0 %2720
  %2722 = vrot.lane.b32.xlu0 %v2360, 64
  %v2723 = vpop.permute.xlu0 %2722
  %2724 = vrot.lane.b32.xlu0 %v2363, 64
  %v2725 = vpop.permute.xlu0 %2724
  %2726 = vrot.lane.b32.xlu0 %v2365, 64
  %v2727 = vpop.permute.xlu0 %2726
  %2728 = vrot.lane.b32.xlu0 %v2368, 64
  %v2729 = vpop.permute.xlu0 %2728
  %2730 = vrot.lane.b32.xlu0 %v2370, 64
  %v2731 = vpop.permute.xlu0 %2730
  %2732 = vrot.lane.b32.xlu0 %v2373, 64
  %v2733 = vpop.permute.xlu0 %2732
  %2734 = vrot.lane.b32.xlu0 %v2375, 64
  %v2735 = vpop.permute.xlu0 %2734
  %2736 = vrot.lane.b32.xlu0 %v2378, 64
  %v2737 = vpop.permute.xlu0 %2736
  %2738 = vrot.lane.b32.xlu0 %v2380, 64
  %v2739 = vpop.permute.xlu0 %2738
  %2740 = vrot.lane.b32.xlu0 %v2383, 64
  %v2741 = vpop.permute.xlu0 %2740
  %2742 = vrot.lane.b32.xlu0 %v2385, 64
  %v2743 = vpop.permute.xlu0 %2742
  %2744 = vrot.lane.b32.xlu0 %v2388, 64
  %v2745 = vpop.permute.xlu0 %2744
  %2746 = vrot.lane.b32.xlu0 %v2390, 64
  %v2747 = vpop.permute.xlu0 %2746
  %2748 = vrot.lane.b32.xlu0 %v2393, 64
  %v2749 = vpop.permute.xlu0 %2748
  %2750 = vrot.lane.b32.xlu0 %v2395, 64
  %v2751 = vpop.permute.xlu0 %2750
  %2752 = vrot.lane.b32.xlu0 %v2398, 64
  %v2753 = vpop.permute.xlu0 %2752
  %2754 = vrot.lane.b32.xlu0 %v2400, 64
  %v2755 = vpop.permute.xlu0 %2754
  %2756 = vrot.lane.b32.xlu0 %v2403, 64
  %v2757 = vpop.permute.xlu0 %2756
  %2758 = vrot.lane.b32.xlu0 %v2405, 64
  %v2759 = vpop.permute.xlu0 %2758
  %2760 = vrot.lane.b32.xlu0 %v2408, 64
  %v2761 = vpop.permute.xlu0 %2760
  %2762 = vrot.lane.b32.xlu0 %v2410, 64
  %v2763 = vpop.permute.xlu0 %2762
  %2764 = vrot.lane.b32.xlu0 %v2413, 64
  %v2765 = vpop.permute.xlu0 %2764
  %2766 = vrot.lane.b32.xlu0 %v2415, 64
  %v2767 = vpop.permute.xlu0 %2766
  %2768 = vrot.lane.b32.xlu0 %v2418, 64
  %v2769 = vpop.permute.xlu0 %2768
  %2770 = vrot.lane.b32.xlu0 %v2420, 64
  %v2771 = vpop.permute.xlu0 %2770
  %2772 = vrot.lane.b32.xlu0 %v2423, 64
  %v2773 = vpop.permute.xlu0 %2772
  %2774 = vrot.lane.b32.xlu0 %v2425, 64
  %v2775 = vpop.permute.xlu0 %2774
  %2776 = vrot.lane.b32.xlu0 %v2428, 64
  %v2777 = vpop.permute.xlu0 %2776
  %2778 = vrot.lane.b32.xlu0 %v2430, 64
  %v2779 = vpop.permute.xlu0 %2778
  %2780 = vrot.lane.b32.xlu0 %v2433, 64
  %v2781 = vpop.permute.xlu0 %2780
  %2782 = vrot.lane.b32.xlu0 %v2435, 64
  %v2783 = vpop.permute.xlu0 %2782
  %2784 = vrot.lane.b32.xlu0 %v2438, 64
  %v2785 = vpop.permute.xlu0 %2784
  %2786 = vrot.lane.b32.xlu0 %v2440, 64
  %v2787 = vpop.permute.xlu0 %2786
  %2788 = vrot.lane.b32.xlu0 %v2443, 64
  %v2789 = vpop.permute.xlu0 %2788
  %2790 = vrot.lane.b32.xlu0 %v2445, 64
  %v2791 = vpop.permute.xlu0 %2790
  %2792 = vrot.lane.b32.xlu0 %v2448, 64
  %v2793 = vpop.permute.xlu0 %2792
  %2794 = vrot.lane.b32.xlu0 %v2450, 64
  %v2795 = vpop.permute.xlu0 %2794
  %2796 = vrot.lane.b32.xlu0 %v2453, 64
  %v2797 = vpop.permute.xlu0 %2796
  %2798 = vrot.lane.b32.xlu0 %v2455, 64
  %v2799 = vpop.permute.xlu0 %2798
  %v2848 = vadd.f32 %v2461, %v2705
  %v2849 = vadd.f32 %v2656, %v2707
  %v2850 = vadd.f32 %v2657, %v2709
  %v2851 = vadd.f32 %v2658, %v2711
  %v2852 = vadd.f32 %v2659, %v2713
  %v2853 = vadd.f32 %v2660, %v2715
  %v2854 = vadd.f32 %v2661, %v2717
  %v2855 = vadd.f32 %v2662, %v2719
  %v2856 = vadd.f32 %v2663, %v2721
  %v2857 = vadd.f32 %v2664, %v2723
  %v2858 = vadd.f32 %v2665, %v2725
  %v2859 = vadd.f32 %v2666, %v2727
  %v2860 = vadd.f32 %v2667, %v2729
  %v2861 = vadd.f32 %v2668, %v2731
  %v2862 = vadd.f32 %v2669, %v2733
  %v2863 = vadd.f32 %v2670, %v2735
  %v2864 = vadd.f32 %v2671, %v2737
  %v2865 = vadd.f32 %v2672, %v2739
  %v2866 = vadd.f32 %v2673, %v2741
  %v2867 = vadd.f32 %v2674, %v2743
  %v2868 = vadd.f32 %v2675, %v2745
  %v2869 = vadd.f32 %v2676, %v2747
  %v2870 = vadd.f32 %v2677, %v2749
  %v2871 = vadd.f32 %v2678, %v2751
  %v2872 = vadd.f32 %v2679, %v2753
  %v2873 = vadd.f32 %v2680, %v2755
  %v2874 = vadd.f32 %v2681, %v2757
  %v2875 = vadd.f32 %v2682, %v2759
  %v2876 = vadd.f32 %v2683, %v2761
  %v2877 = vadd.f32 %v2684, %v2763
  %v2878 = vadd.f32 %v2685, %v2765
  %v2879 = vadd.f32 %v2686, %v2767
  %v2880 = vadd.f32 %v2687, %v2769
  %v2881 = vadd.f32 %v2688, %v2771
  %v2882 = vadd.f32 %v2689, %v2773
  %v2883 = vadd.f32 %v2690, %v2775
  %v2884 = vadd.f32 %v2691, %v2777
  %v2885 = vadd.f32 %v2692, %v2779
  %v2886 = vadd.f32 %v2693, %v2781
  %v2887 = vadd.f32 %v2694, %v2783
  %v2888 = vadd.f32 %v2695, %v2785
  %v2889 = vadd.f32 %v2696, %v2787
  %v2890 = vadd.f32 %v2697, %v2789
  %v2891 = vadd.f32 %v2698, %v2791
  %v2892 = vadd.f32 %v2699, %v2793
  %v2893 = vadd.f32 %v2700, %v2795
  %v2894 = vadd.f32 %v2701, %v2797
  %v2895 = vadd.f32 %v2702, %v2799
  %s2896 = scalar_lea.vmem [#allocation3], 8
  %2897 = vst.msk [vmem:[%s2896] sm:$0xff] %vm2466, %v2848
  %2898 = vst.msk [vmem:[%s2896 + $0x8] sm:$0xff] %vm2466, %v2849
  %2899 = vst.msk [vmem:[%s2896 + $0x10] sm:$0xff] %vm2466, %v2850
  %2900 = vst.msk [vmem:[%s2896 + $0x18] sm:$0xff] %vm2466, %v2851
  %2901 = vst.msk [vmem:[%s2896 + $0x20] sm:$0xff] %vm2466, %v2852
  %2902 = vst.msk [vmem:[%s2896 + $0x28] sm:$0xff] %vm2466, %v2853
  %2903 = vst.msk [vmem:[%s2896 + $0x30] sm:$0xff] %vm2466, %v2854
  %2904 = vst.msk [vmem:[%s2896 + $0x38] sm:$0xff] %vm2466, %v2855
  %2905 = vst.msk [vmem:[%s2896 + $0x40] sm:$0xff] %vm2466, %v2856
  %2906 = vst.msk [vmem:[%s2896 + $0x48] sm:$0xff] %vm2466, %v2857
  %2907 = vst.msk [vmem:[%s2896 + $0x50] sm:$0xff] %vm2466, %v2858
  %2908 = vst.msk [vmem:[%s2896 + $0x58] sm:$0xff] %vm2466, %v2859
  %2909 = vst.msk [vmem:[%s2896 + $0x60] sm:$0xff] %vm2466, %v2860
  %2910 = vst.msk [vmem:[%s2896 + $0x68] sm:$0xff] %vm2466, %v2861
  %2911 = vst.msk [vmem:[%s2896 + $0x70] sm:$0xff] %vm2466, %v2862
  %2912 = vst.msk [vmem:[%s2896 + $0x78] sm:$0xff] %vm2466, %v2863
  %2913 = vst.msk [vmem:[%s2896 + $0x80] sm:$0xff] %vm2466, %v2864
  %2914 = vst.msk [vmem:[%s2896 + $0x88] sm:$0xff] %vm2466, %v2865
  %2915 = vst.msk [vmem:[%s2896 + $0x90] sm:$0xff] %vm2466, %v2866
  %2916 = vst.msk [vmem:[%s2896 + $0x98] sm:$0xff] %vm2466, %v2867
  %2917 = vst.msk [vmem:[%s2896 + $0xa0] sm:$0xff] %vm2466, %v2868
  %2918 = vst.msk [vmem:[%s2896 + $0xa8] sm:$0xff] %vm2466, %v2869
  %2919 = vst.msk [vmem:[%s2896 + $0xb0] sm:$0xff] %vm2466, %v2870
  %2920 = vst.msk [vmem:[%s2896 + $0xb8] sm:$0xff] %vm2466, %v2871
  %2921 = vst.msk [vmem:[%s2896 + $0xc0] sm:$0xff] %vm2466, %v2872
  %2922 = vst.msk [vmem:[%s2896 + $0xc8] sm:$0xff] %vm2466, %v2873
  %2923 = vst.msk [vmem:[%s2896 + $0xd0] sm:$0xff] %vm2466, %v2874
  %2924 = vst.msk [vmem:[%s2896 + $0xd8] sm:$0xff] %vm2466, %v2875
  %2925 = vst.msk [vmem:[%s2896 + $0xe0] sm:$0xff] %vm2466, %v2876
  %2926 = vst.msk [vmem:[%s2896 + $0xe8] sm:$0xff] %vm2466, %v2877
  %2927 = vst.msk [vmem:[%s2896 + $0xf0] sm:$0xff] %vm2466, %v2878
  %2928 = vst.msk [vmem:[%s2896 + $0xf8] sm:$0xff] %vm2466, %v2879
  %2929 = vst.msk [vmem:[%s2896 + $0x100] sm:$0xff] %vm2466, %v2880
  %2930 = vst.msk [vmem:[%s2896 + $0x108] sm:$0xff] %vm2466, %v2881
  %2931 = vst.msk [vmem:[%s2896 + $0x110] sm:$0xff] %vm2466, %v2882
  %2932 = vst.msk [vmem:[%s2896 + $0x118] sm:$0xff] %vm2466, %v2883
  %2933 = vst.msk [vmem:[%s2896 + $0x120] sm:$0xff] %vm2466, %v2884
  %2934 = vst.msk [vmem:[%s2896 + $0x128] sm:$0xff] %vm2466, %v2885
  %2935 = vst.msk [vmem:[%s2896 + $0x130] sm:$0xff] %vm2466, %v2886
  %2936 = vst.msk [vmem:[%s2896 + $0x138] sm:$0xff] %vm2466, %v2887
  %2937 = vst.msk [vmem:[%s2896 + $0x140] sm:$0xff] %vm2466, %v2888
  %2938 = vst.msk [vmem:[%s2896 + $0x148] sm:$0xff] %vm2466, %v2889
  %2939 = vst.msk [vmem:[%s2896 + $0x150] sm:$0xff] %vm2466, %v2890
  %2940 = vst.msk [vmem:[%s2896 + $0x158] sm:$0xff] %vm2466, %v2891
  %2941 = vst.msk [vmem:[%s2896 + $0x160] sm:$0xff] %vm2466, %v2892
  %2942 = vst.msk [vmem:[%s2896 + $0x168] sm:$0xff] %vm2466, %v2893
  %2943 = vst.msk [vmem:[%s2896 + $0x170] sm:$0xff] %vm2466, %v2894
  %2944 = vst.msk [vmem:[%s2896 + $0x178] sm:$0xff] %vm2466, %v2895
  %2945 = vrot.lane.b32.xlu0 %v2455, 96
  %v2946 = vpop.permute.xlu0 %2945
  %v2948 = vadd.f32 %v2453, %v2946
  %s2949 = scalar_lea.vmem [#allocation3], 392
  %2950 = vst.msk [vmem:[%s2949] sm:$0xff] %vm2466, %v2948
  %v2951 = vld [vmem:[%s4] sm:$0x1]
  %v2952 = vld [vmem:[#allocation3] sm:$0xff]
  %v2953 = vld [vmem:[%s2896] sm:$0xff]
  %v2954 = vmax.f32 %v2952, %v2953
  %v2956 = vperm.slane %v2951, 0
  %v2958 = vadd.f32 %v2954, %v2956
  %v2959 = vmax.f32 %v2958, 0.0
  %v2960 = vpack.c.bf16 %v2959, %v2959
  %vm2961 = vcmask 257024
  %2962 = vst.msk [vmem:[#allocation4] sm:$0xf] %vm2961, %v2960
  %s2963 = scalar_lea.vmem [#allocation3], 16
  %v2964 = vld [vmem:[%s2963] sm:$0xff]
  %s2965 = scalar_lea.vmem [#allocation3], 24
  %v2966 = vld [vmem:[%s2965] sm:$0xff]
  %v2967 = vmax.f32 %v2964, %v2966
  %v2968 = vadd.f32 %v2967, %v2956
  %v2969 = vmax.f32 %v2968, 0.0
  %v2970 = vpack.c.bf16 %v2969, %v2969
  %2972 = vrot.lane.b32.xlu0 %v2970, 32
  %v2973 = vpop.permute.xlu0 %2972
  %vm2975 = vcmask 519424
  %2976 = vst.msk [vmem:[#allocation4] sm:$0xf] %vm2975, %v2973
  %s2977 = scalar_lea.vmem [#allocation3], 32
  %v2978 = vld [vmem:[%s2977] sm:$0xff]
  %s2979 = scalar_lea.vmem [#allocation3], 40
  %v2980 = vld [vmem:[%s2979] sm:$0xff]
  %v2981 = vmax.f32 %v2978, %v2980
  %v2982 = vadd.f32 %v2981, %v2956
  %v2983 = vmax.f32 %v2982, 0.0
  %v2984 = vpack.c.bf16 %v2983, %v2983
  %2986 = vrot.lane.b32.xlu0 %v2984, 64
  %v2987 = vpop.permute.xlu0 %2986
  %vm2989 = vcmask 781824
  %2990 = vst.msk [vmem:[#allocation4] sm:$0xf] %vm2989, %v2987
  %s2991 = scalar_lea.vmem [#allocation3], 48
  %v2992 = vld [vmem:[%s2991] sm:$0xff]
  %s2993 = scalar_lea.vmem [#allocation3], 56
  %v2994 = vld [vmem:[%s2993] sm:$0xff]
  %v2995 = vmax.f32 %v2992, %v2994
  %v2996 = vadd.f32 %v2995, %v2956
  %v2997 = vmax.f32 %v2996, 0.0
  %v2998 = vpack.c.bf16 %v2997, %v2997
  %3000 = vrot.lane.b32.xlu0 %v2998, 96
  %v3001 = vpop.permute.xlu0 %3000
  %vm3003 = vcmask 1044224
  %3004 = vst.msk [vmem:[#allocation4] sm:$0xf] %vm3003, %v3001
  %s3005 = scalar_lea.vmem [#allocation3], 64
  %v3006 = vld [vmem:[%s3005] sm:$0xff]
  %s3007 = scalar_lea.vmem [#allocation3], 72
  %v3008 = vld [vmem:[%s3007] sm:$0xff]
  %v3009 = vmax.f32 %v3006, %v3008
  %v3010 = vadd.f32 %v3009, %v2956
  %v3011 = vmax.f32 %v3010, 0.0
  %v3012 = vpack.c.bf16 %v3011, %v3011
  %3013 = vst.msk [vmem:[#allocation4 + $0x4] sm:$0xf] %vm2961, %v3012
  %s3014 = scalar_lea.vmem [#allocation3], 80
  %v3015 = vld [vmem:[%s3014] sm:$0xff]
  %s3016 = scalar_lea.vmem [#allocation3], 88
  %v3017 = vld [vmem:[%s3016] sm:$0xff]
  %v3018 = vmax.f32 %v3015, %v3017
  %v3019 = vadd.f32 %v3018, %v2956
  %v3020 = vmax.f32 %v3019, 0.0
  %v3021 = vpack.c.bf16 %v3020, %v3020
  %3023 = vrot.lane.b32.xlu0 %v3021, 32
  %v3024 = vpop.permute.xlu0 %3023
  %3026 = vst.msk [vmem:[#allocation4 + $0x4] sm:$0xf] %vm2975, %v3024
  %s3027 = scalar_lea.vmem [#allocation3], 96
  %v3028 = vld [vmem:[%s3027] sm:$0xff]
  %s3029 = scalar_lea.vmem [#allocation3], 104
  %v3030 = vld [vmem:[%s3029] sm:$0xff]
  %v3031 = vmax.f32 %v3028, %v3030
  %v3032 = vadd.f32 %v3031, %v2956
  %v3033 = vmax.f32 %v3032, 0.0
  %v3034 = vpack.c.bf16 %v3033, %v3033
  %3036 = vrot.lane.b32.xlu0 %v3034, 64
  %v3037 = vpop.permute.xlu0 %3036
  %3039 = vst.msk [vmem:[#allocation4 + $0x4] sm:$0xf] %vm2989, %v3037
  %s3040 = scalar_lea.vmem [#allocation3], 112
  %v3041 = vld [vmem:[%s3040] sm:$0xff]
  %s3042 = scalar_lea.vmem [#allocation3], 120
  %v3043 = vld [vmem:[%s3042] sm:$0xff]
  %v3044 = vmax.f32 %v3041, %v3043
  %v3045 = vadd.f32 %v3044, %v2956
  %v3046 = vmax.f32 %v3045, 0.0
  %v3047 = vpack.c.bf16 %v3046, %v3046
  %3049 = vrot.lane.b32.xlu0 %v3047, 96
  %v3050 = vpop.permute.xlu0 %3049
  %3052 = vst.msk [vmem:[#allocation4 + $0x4] sm:$0xf] %vm3003, %v3050
  %s3053 = scalar_lea.vmem [#allocation3], 128
  %v3054 = vld [vmem:[%s3053] sm:$0xff]
  %s3055 = scalar_lea.vmem [#allocation3], 136
  %v3056 = vld [vmem:[%s3055] sm:$0xff]
  %v3057 = vmax.f32 %v3054, %v3056
  %v3058 = vadd.f32 %v3057, %v2956
  %v3059 = vmax.f32 %v3058, 0.0
  %v3060 = vpack.c.bf16 %v3059, %v3059
  %3061 = vst.msk [vmem:[#allocation4 + $0x8] sm:$0xf] %vm2961, %v3060
  %s3062 = scalar_lea.vmem [#allocation3], 144
  %v3063 = vld [vmem:[%s3062] sm:$0xff]
  %s3064 = scalar_lea.vmem [#allocation3], 152
  %v3065 = vld [vmem:[%s3064] sm:$0xff]
  %v3066 = vmax.f32 %v3063, %v3065
  %v3067 = vadd.f32 %v3066, %v2956
  %v3068 = vmax.f32 %v3067, 0.0
  %v3069 = vpack.c.bf16 %v3068, %v3068
  %3071 = vrot.lane.b32.xlu0 %v3069, 32
  %v3072 = vpop.permute.xlu0 %3071
  %3074 = vst.msk [vmem:[#allocation4 + $0x8] sm:$0xf] %vm2975, %v3072
  %s3075 = scalar_lea.vmem [#allocation3], 160
  %v3076 = vld [vmem:[%s3075] sm:$0xff]
  %s3077 = scalar_lea.vmem [#allocation3], 168
  %v3078 = vld [vmem:[%s3077] sm:$0xff]
  %v3079 = vmax.f32 %v3076, %v3078
  %v3080 = vadd.f32 %v3079, %v2956
  %v3081 = vmax.f32 %v3080, 0.0
  %v3082 = vpack.c.bf16 %v3081, %v3081
  %3084 = vrot.lane.b32.xlu0 %v3082, 64
  %v3085 = vpop.permute.xlu0 %3084
  %3087 = vst.msk [vmem:[#allocation4 + $0x8] sm:$0xf] %vm2989, %v3085
  %s3088 = scalar_lea.vmem [#allocation3], 176
  %v3089 = vld [vmem:[%s3088] sm:$0xff]
  %s3090 = scalar_lea.vmem [#allocation3], 184
  %v3091 = vld [vmem:[%s3090] sm:$0xff]
  %v3092 = vmax.f32 %v3089, %v3091
  %v3093 = vadd.f32 %v3092, %v2956
  %v3094 = vmax.f32 %v3093, 0.0
  %v3095 = vpack.c.bf16 %v3094, %v3094
  %3097 = vrot.lane.b32.xlu0 %v3095, 96
  %v3098 = vpop.permute.xlu0 %3097
  %3100 = vst.msk [vmem:[#allocation4 + $0x8] sm:$0xf] %vm3003, %v3098
  %s3101 = scalar_lea.vmem [#allocation3], 192
  %v3102 = vld [vmem:[%s3101] sm:$0xff]
  %s3103 = scalar_lea.vmem [#allocation3], 200
  %v3104 = vld [vmem:[%s3103] sm:$0xff]
  %v3105 = vmax.f32 %v3102, %v3104
  %v3106 = vadd.f32 %v3105, %v2956
  %v3107 = vmax.f32 %v3106, 0.0
  %v3108 = vpack.c.bf16 %v3107, %v3107
  %3109 = vst.msk [vmem:[#allocation4 + $0xc] sm:$0xf] %vm2961, %v3108
  %s3110 = scalar_lea.vmem [#allocation3], 208
  %v3111 = vld [vmem:[%s3110] sm:$0xff]
  %s3112 = scalar_lea.vmem [#allocation3], 216
  %v3113 = vld [vmem:[%s3112] sm:$0xff]
  %v3114 = vmax.f32 %v3111, %v3113
  %v3115 = vadd.f32 %v3114, %v2956
  %v3116 = vmax.f32 %v3115, 0.0
  %v3117 = vpack.c.bf16 %v3116, %v3116
  %3119 = vrot.lane.b32.xlu0 %v3117, 32
  %v3120 = vpop.permute.xlu0 %3119
  %3122 = vst.msk [vmem:[#allocation4 + $0xc] sm:$0xf] %vm2975, %v3120
  %s3123 = scalar_lea.vmem [#allocation3], 224
  %v3124 = vld [vmem:[%s3123] sm:$0xff]
  %s3125 = scalar_lea.vmem [#allocation3], 232
  %v3126 = vld [vmem:[%s3125] sm:$0xff]
  %v3127 = vmax.f32 %v3124, %v3126
  %v3128 = vadd.f32 %v3127, %v2956
  %v3129 = vmax.f32 %v3128, 0.0
  %v3130 = vpack.c.bf16 %v3129, %v3129
  %3132 = vrot.lane.b32.xlu0 %v3130, 64
  %v3133 = vpop.permute.xlu0 %3132
  %3135 = vst.msk [vmem:[#allocation4 + $0xc] sm:$0xf] %vm2989, %v3133
  %s3136 = scalar_lea.vmem [#allocation3], 240
  %v3137 = vld [vmem:[%s3136] sm:$0xff]
  %s3138 = scalar_lea.vmem [#allocation3], 248
  %v3139 = vld [vmem:[%s3138] sm:$0xff]
  %v3140 = vmax.f32 %v3137, %v3139
  %v3141 = vadd.f32 %v3140, %v2956
  %v3142 = vmax.f32 %v3141, 0.0
  %v3143 = vpack.c.bf16 %v3142, %v3142
  %3145 = vrot.lane.b32.xlu0 %v3143, 96
  %v3146 = vpop.permute.xlu0 %3145
  %3148 = vst.msk [vmem:[#allocation4 + $0xc] sm:$0xf] %vm3003, %v3146
  %s3149 = scalar_lea.vmem [#allocation3], 256
  %v3150 = vld [vmem:[%s3149] sm:$0xff]
  %s3151 = scalar_lea.vmem [#allocation3], 264
  %v3152 = vld [vmem:[%s3151] sm:$0xff]
  %v3153 = vmax.f32 %v3150, %v3152
  %v3154 = vadd.f32 %v3153, %v2956
  %v3155 = vmax.f32 %v3154, 0.0
  %v3156 = vpack.c.bf16 %v3155, %v3155
  %3157 = vst.msk [vmem:[#allocation4 + $0x10] sm:$0xf] %vm2961, %v3156
  %s3158 = scalar_lea.vmem [#allocation3], 272
  %v3159 = vld [vmem:[%s3158] sm:$0xff]
  %s3160 = scalar_lea.vmem [#allocation3], 280
  %v3161 = vld [vmem:[%s3160] sm:$0xff]
  %v3162 = vmax.f32 %v3159, %v3161
  %v3163 = vadd.f32 %v3162, %v2956
  %v3164 = vmax.f32 %v3163, 0.0
  %v3165 = vpack.c.bf16 %v3164, %v3164
  %3167 = vrot.lane.b32.xlu0 %v3165, 32
  %v3168 = vpop.permute.xlu0 %3167
  %3170 = vst.msk [vmem:[#allocation4 + $0x10] sm:$0xf] %vm2975, %v3168
  %s3171 = scalar_lea.vmem [#allocation3], 288
  %v3172 = vld [vmem:[%s3171] sm:$0xff]
  %s3173 = scalar_lea.vmem [#allocation3], 296
  %v3174 = vld [vmem:[%s3173] sm:$0xff]
  %v3175 = vmax.f32 %v3172, %v3174
  %v3176 = vadd.f32 %v3175, %v2956
  %v3177 = vmax.f32 %v3176, 0.0
  %v3178 = vpack.c.bf16 %v3177, %v3177
  %3180 = vrot.lane.b32.xlu0 %v3178, 64
  %v3181 = vpop.permute.xlu0 %3180
  %3183 = vst.msk [vmem:[#allocation4 + $0x10] sm:$0xf] %vm2989, %v3181
  %s3184 = scalar_lea.vmem [#allocation3], 304
  %v3185 = vld [vmem:[%s3184] sm:$0xff]
  %s3186 = scalar_lea.vmem [#allocation3], 312
  %v3187 = vld [vmem:[%s3186] sm:$0xff]
  %v3188 = vmax.f32 %v3185, %v3187
  %v3189 = vadd.f32 %v3188, %v2956
  %v3190 = vmax.f32 %v3189, 0.0
  %v3191 = vpack.c.bf16 %v3190, %v3190
  %3193 = vrot.lane.b32.xlu0 %v3191, 96
  %v3194 = vpop.permute.xlu0 %3193
  %3196 = vst.msk [vmem:[#allocation4 + $0x10] sm:$0xf] %vm3003, %v3194
  %s3197 = scalar_lea.vmem [#allocation3], 320
  %v3198 = vld [vmem:[%s3197] sm:$0xff]
  %s3199 = scalar_lea.vmem [#allocation3], 328
  %v3200 = vld [vmem:[%s3199] sm:$0xff]
  %v3201 = vmax.f32 %v3198, %v3200
  %v3202 = vadd.f32 %v3201, %v2956
  %v3203 = vmax.f32 %v3202, 0.0
  %v3204 = vpack.c.bf16 %v3203, %v3203
  %3205 = vst.msk [vmem:[#allocation4 + $0x14] sm:$0xf] %vm2961, %v3204
  %s3206 = scalar_lea.vmem [#allocation3], 336
  %v3207 = vld [vmem:[%s3206] sm:$0xff]
  %s3208 = scalar_lea.vmem [#allocation3], 344
  %v3209 = vld [vmem:[%s3208] sm:$0xff]
  %v3210 = vmax.f32 %v3207, %v3209
  %v3211 = vadd.f32 %v3210, %v2956
  %v3212 = vmax.f32 %v3211, 0.0
  %v3213 = vpack.c.bf16 %v3212, %v3212
  %3215 = vrot.lane.b32.xlu0 %v3213, 32
  %v3216 = vpop.permute.xlu0 %3215
  %3218 = vst.msk [vmem:[#allocation4 + $0x14] sm:$0xf] %vm2975, %v3216
  %s3219 = scalar_lea.vmem [#allocation3], 352
  %v3220 = vld [vmem:[%s3219] sm:$0xff]
  %s3221 = scalar_lea.vmem [#allocation3], 360
  %v3222 = vld [vmem:[%s3221] sm:$0xff]
  %v3223 = vmax.f32 %v3220, %v3222
  %v3224 = vadd.f32 %v3223, %v2956
  %v3225 = vmax.f32 %v3224, 0.0
  %v3226 = vpack.c.bf16 %v3225, %v3225
  %3228 = vrot.lane.b32.xlu0 %v3226, 64
  %v3229 = vpop.permute.xlu0 %3228
  %3231 = vst.msk [vmem:[#allocation4 + $0x14] sm:$0xf] %vm2989, %v3229
  %s3232 = scalar_lea.vmem [#allocation3], 368
  %v3233 = vld [vmem:[%s3232] sm:$0xff]
  %s3234 = scalar_lea.vmem [#allocation3], 376
  %v3235 = vld [vmem:[%s3234] sm:$0xff]
  %v3236 = vmax.f32 %v3233, %v3235
  %v3237 = vadd.f32 %v3236, %v2956
  %v3238 = vmax.f32 %v3237, 0.0
  %v3239 = vpack.c.bf16 %v3238, %v3238
  %3241 = vrot.lane.b32.xlu0 %v3239, 96
  %v3242 = vpop.permute.xlu0 %3241
  %3244 = vst.msk [vmem:[#allocation4 + $0x14] sm:$0xf] %vm3003, %v3242
  %s3245 = scalar_lea.vmem [#allocation3], 384
  %v3246 = vld [vmem:[%s3245] sm:$0xff]
  %v3247 = vld [vmem:[%s2949] sm:$0xff]
  %v3248 = vmax.f32 %v3246, %v3247
  %v3249 = vadd.f32 %v3248, %v2956
  %v3250 = vmax.f32 %v3249, 0.0
  %v3251 = vpack.c.bf16 %v3250, %v3250
  %3252 = vst.msk [vmem:[#allocation4 + $0x18] sm:$0xf] %vm2961, %v3251
  %v3253 = vld [vmem:[#allocation4] sm:$0xff]
  %v3254 = vld [vmem:[#allocation4 + $0x8] sm:$0xff]
  %v3255 = vld [vmem:[#allocation4 + $0x10] sm:$0xff]
  %v3256 = vld [vmem:[#allocation4 + $0x18] sm:$0xf]
  %v3257 = vld [vmem:[%s5] sm:$0xf]
  %v3258 = vld [vmem:[%s5 + $0x4] sm:$0xf]
  %v3259 = vld [vmem:[%s5 + $0x8] sm:$0xf]
  %v3260 = vld [vmem:[%s5 + $0xc] sm:$0xf]
  %v3261 = vld [vmem:[%s5 + $0x10] sm:$0xf]
  %v3262 = vld [vmem:[%s5 + $0x14] sm:$0xf]
  %v3263 = vld [vmem:[%s5 + $0x18] sm:$0xf]
  %v3264 = vld [vmem:[%s5 + $0x1c] sm:$0xf]
  %v3265 = vld [vmem:[%s5 + $0x20] sm:$0xf]
  %v3266 = vld [vmem:[%s5 + $0x24] sm:$0xf]
  %v3267 = vld [vmem:[%s5 + $0x28] sm:$0xf]
  %v3268 = vld [vmem:[%s5 + $0x2c] sm:$0xf]
  %v3269 = vld [vmem:[%s5 + $0x30] sm:$0xf]
  %v3270 = vld [vmem:[%s5 + $0x34] sm:$0xf]
  %v3271 = vld [vmem:[%s5 + $0x38] sm:$0xf]
  %v3272 = vld [vmem:[%s5 + $0x3c] sm:$0xf]
  %v3273 = vld [vmem:[%s5 + $0x40] sm:$0xf]
  %v3274 = vld [vmem:[%s5 + $0x44] sm:$0xf]
  %v3275 = vld [vmem:[%s5 + $0x48] sm:$0xf]
  %v3276 = vld [vmem:[%s5 + $0x4c] sm:$0xf]
  %v3277 = vld [vmem:[%s5 + $0x50] sm:$0xf]
  %v3278 = vld [vmem:[%s5 + $0x54] sm:$0xf]
  %v3279 = vld [vmem:[%s5 + $0x58] sm:$0xf]
  %v3280 = vld [vmem:[%s5 + $0x5c] sm:$0xf]
  %v3281 = vld [vmem:[%s5 + $0x60] sm:$0xf]
  %v3282 = vld [vmem:[%s5 + $0x64] sm:$0xf]
  %v3283 = vld [vmem:[%s5 + $0x68] sm:$0xf]
  %v3284 = vld [vmem:[%s5 + $0x6c] sm:$0xf]
  %v3285 = vld [vmem:[%s5 + $0x70] sm:$0xf]
  %v3286 = vld [vmem:[%s5 + $0x74] sm:$0xf]
  %v3287 = vld [vmem:[%s5 + $0x78] sm:$0xf]
  %v3288 = vld [vmem:[%s5 + $0x7c] sm:$0xf]
  %v3289 = vld [vmem:[%s5 + $0x80] sm:$0xf]
  %v3290 = vld [vmem:[%s5 + $0x84] sm:$0xf]
  %v3291 = vld [vmem:[%s5 + $0x88] sm:$0xf]
  %v3292 = vld [vmem:[%s5 + $0x8c] sm:$0xf]
  %v3293 = vld [vmem:[%s5 + $0x90] sm:$0xf]
  %v3294 = vld [vmem:[%s5 + $0x94] sm:$0xf]
  %v3295 = vld [vmem:[%s5 + $0x98] sm:$0xf]
  %v3296 = vld [vmem:[%s5 + $0x9c] sm:$0xf]
  %v3297 = vld [vmem:[%s5 + $0xa0] sm:$0xf]
  %v3298 = vld [vmem:[%s5 + $0xa4] sm:$0xf]
  %v3299 = vld [vmem:[%s5 + $0xa8] sm:$0xf]
  %v3300 = vld [vmem:[%s5 + $0xac] sm:$0xf]
  %v3301 = vld [vmem:[%s5 + $0xb0] sm:$0xf]
  %v3302 = vld [vmem:[%s5 + $0xb4] sm:$0xf]
  %v3303 = vld [vmem:[%s5 + $0xb8] sm:$0xf]
  %v3304 = vld [vmem:[%s5 + $0xbc] sm:$0xf]
  %v3305 = vld [vmem:[%s5 + $0xc0] sm:$0xf]
  %v3306 = vld [vmem:[%s5 + $0xc4] sm:$0xf]
  %v3307 = vld [vmem:[%s5 + $0xc8] sm:$0xf]
  %v3308 = vld [vmem:[%s5 + $0xcc] sm:$0xf]
  %v3309 = vld [vmem:[%s5 + $0xd0] sm:$0xf]
  %v3310 = vld [vmem:[%s5 + $0xd4] sm:$0xf]
  %v3311 = vld [vmem:[%s5 + $0xd8] sm:$0xf]
  %v3312 = vld [vmem:[%s5 + $0xdc] sm:$0xf]
  %v3313 = vld [vmem:[%s5 + $0xe0] sm:$0xf]
  %v3314 = vld [vmem:[%s5 + $0xe4] sm:$0xf]
  %v3315 = vld [vmem:[%s5 + $0xe8] sm:$0xf]
  %v3316 = vld [vmem:[%s5 + $0xec] sm:$0xf]
  %v3317 = vld [vmem:[%s5 + $0xf0] sm:$0xf]
  %v3318 = vld [vmem:[%s5 + $0xf4] sm:$0xf]
  %v3319 = vld [vmem:[%s5 + $0xf8] sm:$0xf]
  %v3320 = vld [vmem:[%s5 + $0xfc] sm:$0xf]
  %v3321 = vld [vmem:[%s5 + $0x100] sm:$0xf]
  %v3322 = vld [vmem:[%s5 + $0x104] sm:$0xf]
  %v3323 = vld [vmem:[%s5 + $0x108] sm:$0xf]
  %v3324 = vld [vmem:[%s5 + $0x10c] sm:$0xf]
  %v3325 = vld [vmem:[%s5 + $0x110] sm:$0xf]
  %v3326 = vld [vmem:[%s5 + $0x114] sm:$0xf]
  %v3327 = vld [vmem:[%s5 + $0x118] sm:$0xf]
  %v3328 = vld [vmem:[%s5 + $0x11c] sm:$0xf]
  %v3329 = vld [vmem:[%s5 + $0x120] sm:$0xf]
  %v3330 = vld [vmem:[%s5 + $0x124] sm:$0xf]
  %v3331 = vld [vmem:[%s5 + $0x128] sm:$0xf]
  %v3332 = vld [vmem:[%s5 + $0x12c] sm:$0xf]
  %v3333 = vld [vmem:[%s5 + $0x130] sm:$0xf]
  %v3334 = vld [vmem:[%s5 + $0x134] sm:$0xf]
  %v3335 = vld [vmem:[%s5 + $0x138] sm:$0xf]
  %v3336 = vld [vmem:[%s5 + $0x13c] sm:$0xf]
  %v3337 = vld [vmem:[%s5 + $0x140] sm:$0xf]
  %v3338 = vld [vmem:[%s5 + $0x144] sm:$0xf]
  %v3339 = vld [vmem:[%s5 + $0x148] sm:$0xf]
  %v3340 = vld [vmem:[%s5 + $0x14c] sm:$0xf]
  %v3341 = vld [vmem:[%s5 + $0x150] sm:$0xf]
  %v3342 = vld [vmem:[%s5 + $0x154] sm:$0xf]
  %v3343 = vld [vmem:[%s5 + $0x158] sm:$0xf]
  %v3344 = vld [vmem:[%s5 + $0x15c] sm:$0xf]
  %v3345 = vld [vmem:[%s5 + $0x160] sm:$0xf]
  %v3346 = vld [vmem:[%s5 + $0x164] sm:$0xf]
  %v3347 = vld [vmem:[%s5 + $0x168] sm:$0xf]
  %v3348 = vld [vmem:[%s5 + $0x16c] sm:$0xf]
  %v3349 = vld [vmem:[%s5 + $0x170] sm:$0xf]
  %v3350 = vld [vmem:[%s5 + $0x174] sm:$0xf]
  %v3351 = vld [vmem:[%s5 + $0x178] sm:$0xf]
  %v3352 = vld [vmem:[%s5 + $0x17c] sm:$0xf]
  %v3353 = vld [vmem:[%s5 + $0x180] sm:$0xf]
  %v3354 = vld [vmem:[%s5 + $0x184] sm:$0xf]
  %v3355 = vld [vmem:[%s5 + $0x188] sm:$0xf]
  %v3356 = vld [vmem:[%s5 + $0x18c] sm:$0xf]
  %v3357 = vld [vmem:[%s6] sm:$0x1]
  %v3359 = vperm.slane %v3357, 0
  %v3365 = vunpack.c.l.b16 %v3253
  %v3366 = vunpack.c.h.b16 %v3253
  %v3367 = vunpack.c.l.b16 %v3254
  %v3368 = vunpack.c.h.b16 %v3254
  %v3369 = vunpack.c.l.b16 %v3255
  %v3370 = vunpack.c.h.b16 %v3255
  %v3371 = vunpack.c.l.b16 %v3256
  %v3372 = vpack.c.b16 %v3365, %v3365
  %v3373 = vpack.c.b16 %v3366, %v3366
  %v3374 = vpack.c.b16 %v3367, %v3367
  %v3375 = vpack.c.b16 %v3368, %v3368
  %v3376 = vpack.c.b16 %v3369, %v3369
  %v3377 = vpack.c.b16 %v3370, %v3370
  %v3378 = vpack.c.b16 %v3371, %v3371
  %v3485 = vunpack.c.l.b16 %v3257
  %v3486 = vunpack.c.l.b16 %v3258
  %v3487 = vunpack.c.l.b16 %v3259
  %v3488 = vunpack.c.l.b16 %v3260
  %v3489 = vunpack.c.l.b16 %v3261
  %v3490 = vunpack.c.l.b16 %v3262
  %v3491 = vunpack.c.l.b16 %v3263
  %v3492 = vunpack.c.l.b16 %v3264
  %v3493 = vunpack.c.l.b16 %v3265
  %v3494 = vunpack.c.l.b16 %v3266
  %v3495 = vunpack.c.l.b16 %v3267
  %v3496 = vunpack.c.l.b16 %v3268
  %v3497 = vunpack.c.l.b16 %v3269
  %v3498 = vunpack.c.l.b16 %v3270
  %v3499 = vunpack.c.l.b16 %v3271
  %v3500 = vunpack.c.l.b16 %v3272
  %v3501 = vunpack.c.l.b16 %v3273
  %v3502 = vunpack.c.l.b16 %v3274
  %v3503 = vunpack.c.l.b16 %v3275
  %v3504 = vunpack.c.l.b16 %v3276
  %v3505 = vunpack.c.l.b16 %v3277
  %v3506 = vunpack.c.l.b16 %v3278
  %v3507 = vunpack.c.l.b16 %v3279
  %v3508 = vunpack.c.l.b16 %v3280
  %v3509 = vunpack.c.l.b16 %v3281
  %v3510 = vunpack.c.l.b16 %v3282
  %v3511 = vunpack.c.l.b16 %v3283
  %v3512 = vunpack.c.l.b16 %v3284
  %v3513 = vunpack.c.l.b16 %v3285
  %v3514 = vunpack.c.l.b16 %v3286
  %v3515 = vunpack.c.l.b16 %v3287
  %v3516 = vunpack.c.l.b16 %v3288
  %v3517 = vunpack.c.l.b16 %v3289
  %v3518 = vunpack.c.l.b16 %v3290
  %v3519 = vunpack.c.l.b16 %v3291
  %v3520 = vunpack.c.l.b16 %v3292
  %v3521 = vunpack.c.l.b16 %v3293
  %v3522 = vunpack.c.l.b16 %v3294
  %v3523 = vunpack.c.l.b16 %v3295
  %v3524 = vunpack.c.l.b16 %v3296
  %v3525 = vunpack.c.l.b16 %v3297
  %v3526 = vunpack.c.l.b16 %v3298
  %v3527 = vunpack.c.l.b16 %v3299
  %v3528 = vunpack.c.l.b16 %v3300
  %v3529 = vunpack.c.l.b16 %v3301
  %v3530 = vunpack.c.l.b16 %v3302
  %v3531 = vunpack.c.l.b16 %v3303
  %v3532 = vunpack.c.l.b16 %v3304
  %v3533 = vunpack.c.l.b16 %v3305
  %v3534 = vunpack.c.l.b16 %v3306
  %v3535 = vunpack.c.l.b16 %v3307
  %v3536 = vunpack.c.l.b16 %v3308
  %v3537 = vunpack.c.l.b16 %v3309
  %v3538 = vunpack.c.l.b16 %v3310
  %v3539 = vunpack.c.l.b16 %v3311
  %v3540 = vunpack.c.l.b16 %v3312
  %v3541 = vunpack.c.l.b16 %v3313
  %v3542 = vunpack.c.l.b16 %v3314
  %v3543 = vunpack.c.l.b16 %v3315
  %v3544 = vunpack.c.l.b16 %v3316
  %v3545 = vunpack.c.l.b16 %v3317
  %v3546 = vunpack.c.l.b16 %v3318
  %v3547 = vunpack.c.l.b16 %v3319
  %v3548 = vunpack.c.l.b16 %v3320
  %v3549 = vunpack.c.l.b16 %v3321
  %v3550 = vunpack.c.l.b16 %v3322
  %v3551 = vunpack.c.l.b16 %v3323
  %v3552 = vunpack.c.l.b16 %v3324
  %v3553 = vunpack.c.l.b16 %v3325
  %v3554 = vunpack.c.l.b16 %v3326
  %v3555 = vunpack.c.l.b16 %v3327
  %v3556 = vunpack.c.l.b16 %v3328
  %v3557 = vunpack.c.l.b16 %v3329
  %v3558 = vunpack.c.l.b16 %v3330
  %v3559 = vunpack.c.l.b16 %v3331
  %v3560 = vunpack.c.l.b16 %v3332
  %v3561 = vunpack.c.l.b16 %v3333
  %v3562 = vunpack.c.l.b16 %v3334
  %v3563 = vunpack.c.l.b16 %v3335
  %v3564 = vunpack.c.l.b16 %v3336
  %v3565 = vunpack.c.l.b16 %v3337
  %v3566 = vunpack.c.l.b16 %v3338
  %v3567 = vunpack.c.l.b16 %v3339
  %v3568 = vunpack.c.l.b16 %v3340
  %v3569 = vunpack.c.l.b16 %v3341
  %v3570 = vunpack.c.l.b16 %v3342
  %v3571 = vunpack.c.l.b16 %v3343
  %v3572 = vunpack.c.l.b16 %v3344
  %v3573 = vunpack.c.l.b16 %v3345
  %v3574 = vunpack.c.l.b16 %v3346
  %v3575 = vunpack.c.l.b16 %v3347
  %v3576 = vunpack.c.l.b16 %v3348
  %v3577 = vunpack.c.l.b16 %v3349
  %v3578 = vunpack.c.l.b16 %v3350
  %v3579 = vunpack.c.l.b16 %v3351
  %v3580 = vunpack.c.l.b16 %v3352
  %v3581 = vunpack.c.l.b16 %v3353
  %v3582 = vunpack.c.l.b16 %v3354
  %v3583 = vunpack.c.l.b16 %v3355
  %v3584 = vunpack.c.l.b16 %v3356
  %v3585 = vpack.c.b16 %v3486, %v3485
  %v3586 = vpack.c.b16 %v3488, %v3487
  %v3587 = vpack.c.b16 %v3490, %v3489
  %v3588 = vpack.c.b16 %v3492, %v3491
  %v3589 = vpack.c.b16 %v3494, %v3493
  %v3590 = vpack.c.b16 %v3496, %v3495
  %v3591 = vpack.c.b16 %v3498, %v3497
  %v3592 = vpack.c.b16 %v3500, %v3499
  %v3593 = vpack.c.b16 %v3502, %v3501
  %v3594 = vpack.c.b16 %v3504, %v3503
  %v3595 = vpack.c.b16 %v3506, %v3505
  %v3596 = vpack.c.b16 %v3508, %v3507
  %v3597 = vpack.c.b16 %v3510, %v3509
  %v3598 = vpack.c.b16 %v3512, %v3511
  %v3599 = vpack.c.b16 %v3514, %v3513
  %v3600 = vpack.c.b16 %v3516, %v3515
  %v3601 = vpack.c.b16 %v3518, %v3517
  %v3602 = vpack.c.b16 %v3520, %v3519
  %v3603 = vpack.c.b16 %v3522, %v3521
  %v3604 = vpack.c.b16 %v3524, %v3523
  %v3605 = vpack.c.b16 %v3526, %v3525
  %v3606 = vpack.c.b16 %v3528, %v3527
  %v3607 = vpack.c.b16 %v3530, %v3529
  %v3608 = vpack.c.b16 %v3532, %v3531
  %v3609 = vpack.c.b16 %v3534, %v3533
  %v3610 = vpack.c.b16 %v3536, %v3535
  %v3611 = vpack.c.b16 %v3538, %v3537
  %v3612 = vpack.c.b16 %v3540, %v3539
  %v3613 = vpack.c.b16 %v3542, %v3541
  %v3614 = vpack.c.b16 %v3544, %v3543
  %v3615 = vpack.c.b16 %v3546, %v3545
  %v3616 = vpack.c.b16 %v3548, %v3547
  %v3617 = vpack.c.b16 %v3550, %v3549
  %v3618 = vpack.c.b16 %v3552, %v3551
  %v3619 = vpack.c.b16 %v3554, %v3553
  %v3620 = vpack.c.b16 %v3556, %v3555
  %v3621 = vpack.c.b16 %v3558, %v3557
  %v3622 = vpack.c.b16 %v3560, %v3559
  %v3623 = vpack.c.b16 %v3562, %v3561
  %v3624 = vpack.c.b16 %v3564, %v3563
  %v3625 = vpack.c.b16 %v3566, %v3565
  %v3626 = vpack.c.b16 %v3568, %v3567
  %v3627 = vpack.c.b16 %v3570, %v3569
  %v3628 = vpack.c.b16 %v3572, %v3571
  %v3629 = vpack.c.b16 %v3574, %v3573
  %v3630 = vpack.c.b16 %v3576, %v3575
  %v3631 = vpack.c.b16 %v3578, %v3577
  %v3632 = vpack.c.b16 %v3580, %v3579
  %v3633 = vpack.c.b16 %v3582, %v3581
  %v3634 = vpack.c.b16 %v3584, %v3583
  %v3686 = vsel %vm2466, %v3378, 0
  %3688 = vmatpush.bf16.msra.mxu0 %v3592
  %3689 = vmatpush.bf16.msra.mxu0 %v3591
  %3690 = vmatpush.bf16.msra.mxu0 %v3590
  %3691 = vmatpush.bf16.msra.mxu0 %v3589
  %3692 = vmatpush.bf16.msra.mxu0 %v3588
  %3693 = vmatpush.bf16.msra.mxu0 %v3587
  %3694 = vmatpush.bf16.msra.mxu0 %v3586
  %3695 = vmatpush.bf16.msra.mxu0 %v3585
  %3696 = vmatmul.bf16.gmra.mxu0 %v3372
  %v3697 = vpop.f32.mrf.mxu0
  %v3698 = vadd.f32 %v3359, %v3697
  %v3699 = vpop.f32.mrf.mxu0
  %3700 = vdwg.mxu0
  %3701 = vmatpush.bf16.msra.mxu0 %v3600
  %3702 = vmatpush.bf16.msra.mxu0 %v3599
  %3703 = vmatpush.bf16.msra.mxu0 %v3598
  %3704 = vmatpush.bf16.msra.mxu0 %v3597
  %3705 = vmatpush.bf16.msra.mxu0 %v3596
  %3706 = vmatpush.bf16.msra.mxu0 %v3595
  %3707 = vmatpush.bf16.msra.mxu0 %v3594
  %3708 = vmatpush.bf16.msra.mxu0 %v3593
  %3709 = vmatmul.bf16.gmra.mxu0 %v3373
  %v3710 = vpop.f32.mrf.mxu0
  %v3711 = vadd.f32 %v3698, %v3710
  %v3712 = vpop.f32.mrf.mxu0
  %3713 = vdwg.mxu0
  %3714 = vmatpush.bf16.msra.mxu0 %v3608
  %3715 = vmatpush.bf16.msra.mxu0 %v3607
  %3716 = vmatpush.bf16.msra.mxu0 %v3606
  %3717 = vmatpush.bf16.msra.mxu0 %v3605
  %3718 = vmatpush.bf16.msra.mxu0 %v3604
  %3719 = vmatpush.bf16.msra.mxu0 %v3603
  %3720 = vmatpush.bf16.msra.mxu0 %v3602
  %3721 = vmatpush.bf16.msra.mxu0 %v3601
  %3722 = vmatmul.bf16.gmra.mxu0 %v3374
  %v3723 = vpop.f32.mrf.mxu0
  %v3724 = vadd.f32 %v3711, %v3723
  %v3725 = vpop.f32.mrf.mxu0
  %3726 = vdwg.mxu0
  %3727 = vmatpush.bf16.msra.mxu0 %v3616
  %3728 = vmatpush.bf16.msra.mxu0 %v3615
  %3729 = vmatpush.bf16.msra.mxu0 %v3614
  %3730 = vmatpush.bf16.msra.mxu0 %v3613
  %3731 = vmatpush.bf16.msra.mxu0 %v3612
  %3732 = vmatpush.bf16.msra.mxu0 %v3611
  %3733 = vmatpush.bf16.msra.mxu0 %v3610
  %3734 = vmatpush.bf16.msra.mxu0 %v3609
  %3735 = vmatmul.bf16.gmra.mxu0 %v3375
  %v3736 = vpop.f32.mrf.mxu0
  %v3737 = vadd.f32 %v3724, %v3736
  %v3738 = vpop.f32.mrf.mxu0
  %3739 = vdwg.mxu0
  %3740 = vmatpush.bf16.msra.mxu0 %v3624
  %3741 = vmatpush.bf16.msra.mxu0 %v3623
  %3742 = vmatpush.bf16.msra.mxu0 %v3622
  %3743 = vmatpush.bf16.msra.mxu0 %v3621
  %3744 = vmatpush.bf16.msra.mxu0 %v3620
  %3745 = vmatpush.bf16.msra.mxu0 %v3619
  %3746 = vmatpush.bf16.msra.mxu0 %v3618
  %3747 = vmatpush.bf16.msra.mxu0 %v3617
  %3748 = vmatmul.bf16.gmra.mxu0 %v3376
  %v3749 = vpop.f32.mrf.mxu0
  %v3750 = vadd.f32 %v3737, %v3749
  %v3751 = vpop.f32.mrf.mxu0
  %3752 = vdwg.mxu0
  %3753 = vmatpush.bf16.msra.mxu0 %v3632
  %3754 = vmatpush.bf16.msra.mxu0 %v3631
  %3755 = vmatpush.bf16.msra.mxu0 %v3630
  %3756 = vmatpush.bf16.msra.mxu0 %v3629
  %3757 = vmatpush.bf16.msra.mxu0 %v3628
  %3758 = vmatpush.bf16.msra.mxu0 %v3627
  %3759 = vmatpush.bf16.msra.mxu0 %v3626
  %3760 = vmatpush.bf16.msra.mxu0 %v3625
  %3761 = vmatmul.bf16.gmra.mxu0 %v3377
  %v3762 = vpop.f32.mrf.mxu0
  %v3763 = vadd.f32 %v3750, %v3762
  %v3764 = vpop.f32.mrf.mxu0
  %3765 = vdwg.mxu0
  %3766 = vmatpush.bf16.msra.mxu0 0
  %3767 = vmatpush.bf16.msra.mxu0 0
  %3768 = vmatpush.bf16.msra.mxu0 0
  %3769 = vmatpush.bf16.msra.mxu0 0
  %3770 = vmatpush.bf16.msra.mxu0 0
  %3771 = vmatpush.bf16.msra.mxu0 0
  %3772 = vmatpush.bf16.msra.mxu0 %v3634
  %3773 = vmatpush.bf16.msra.mxu0 %v3633
  %3774 = vmatmul.bf16.gmra.mxu0 %v3686
  %v3775 = vpop.f32.mrf.mxu0
  %v3776 = vadd.f32 %v3763, %v3775
  %v3777 = vpop.f32.mrf.mxu0
  %3778 = vdwg.mxu0
  %v3779 = vmax.f32 %v3776, 0.0
  %v3780 = vpack.c.bf16 %v3779, %v3779
  %v3781 = vld [vmem:[%s7] sm:$0xf]
  %v3782 = vld [vmem:[%s7 + $0x4] sm:$0xf]
  %v3783 = vld [vmem:[%s7 + $0x8] sm:$0xf]
  %v3784 = vld [vmem:[%s7 + $0xc] sm:$0xf]
  %v3785 = vld [vmem:[%s7 + $0x10] sm:$0xf]
  %v3786 = vld [vmem:[%s7 + $0x14] sm:$0xf]
  %v3787 = vld [vmem:[%s7 + $0x18] sm:$0xf]
  %v3788 = vld [vmem:[%s7 + $0x1c] sm:$0xf]
  %v3789 = vld [vmem:[%s8] sm:$0x1]
  %v3791 = vperm.slane %v3789, 0
  %v3801 = vunpack.c.l.b16 %v3781
  %v3802 = vunpack.c.l.b16 %v3782
  %v3803 = vunpack.c.l.b16 %v3783
  %v3804 = vunpack.c.l.b16 %v3784
  %v3805 = vunpack.c.l.b16 %v3785
  %v3806 = vunpack.c.l.b16 %v3786
  %v3807 = vunpack.c.l.b16 %v3787
  %v3808 = vunpack.c.l.b16 %v3788
  %v3809 = vpack.c.b16 %v3802, %v3801
  %v3810 = vpack.c.b16 %v3804, %v3803
  %v3811 = vpack.c.b16 %v3806, %v3805
  %v3812 = vpack.c.b16 %v3808, %v3807
  %vm3817 = vcmask 523264
  %v3819 = vsel %vm3817, %v3780, 0
  %3821 = vmatpush.bf16.msra.mxu0 0
  %3822 = vmatpush.bf16.msra.mxu0 0
  %3823 = vmatpush.bf16.msra.mxu0 0
  %3824 = vmatpush.bf16.msra.mxu0 0
  %3825 = vmatpush.bf16.msra.mxu0 %v3812
  %3826 = vmatpush.bf16.msra.mxu0 %v3811
  %3827 = vmatpush.bf16.msra.mxu0 %v3810
  %3828 = vmatpush.bf16.msra.mxu0 %v3809
  %3829 = vmatmul.bf16.gmra.mxu0 %v3819
  %v3830 = vpop.f32.mrf.mxu0
  %v3831 = vadd.f32 %v3791, %v3830
  %v3832 = vpop.f32.mrf.mxu0
  %3833 = vdwg.mxu0
  %vm3834 = vcmask 15360
  %3835 = vst.msk [vmem:[%s9] sm:$0xff] %vm3834, %v3831
  // Predicated region
  $region38: #{cnn1d_forward.1} parent=0 // pred_check
    _
  $region39: #{cnn1d_forward.1} parent=0 // pred_check_branch
    %3837 = sbr.rel (0) target = $region41
  $region40: #{cnn1d_forward.1} parent=0 // pred_region
    _
  $region41: #{cnn1d_forward.1} parent=0 // pred_fallthru
    _
  // Predicated region
  $region42: #{cnn1d_forward.1} parent=0 // pred_check
    _
  $region43: #{cnn1d_forward.1} parent=0 // pred_check_branch
    %3839 = sbr.rel (0) target = $region45
  $region44: #{cnn1d_forward.1} parent=0 // pred_region
    _
  $region45: #{cnn1d_forward.1} parent=0 // pred_fallthru
    _

</llo_original>
